<compile_context>
chip_gen: v5e
topology: v5e:2x2
jax: 0.10.0
libtpu: 0.0.40
codegen_flags: <defaults>
</compile_context>

<pallas_src>
import jax
import jax.numpy as jnp
import numpy as np
from jax.experimental import pallas as pl
from jax.experimental.pallas import tpu as pltpu

IN = 27     # inputSize (27-dim one-hot characters)
H0 = 100    # hidden0size
H1 = 50     # hidden1size
H2 = 25     # hidden2size
H3 = 10     # hidden3size
OUT = 1     # outputSize

HP = 128        # padded per-gate width (lane aligned), both LSTM layers
GP = 4 * HP     # 512: padded concatenated-gate width
NP = 128        # padded feature width for the FC head / kernel output
INP = 128       # padded character one-hot width
BP = 8          # words per group = MXU/LHS sublane rows


def _make_kernel(t_max):
    """Builds the kernel for a static maximum word length t_max."""
    TB = t_max * BP

    def kernel(x_ref, mask_ref, w0_ref, w1_ref, b_ref, hw_ref, hb_ref,
               out_ref, xproj_ref):
        b0 = b_ref[0:1, :]                               # (1, 512) f32
        b1 = b_ref[1:2, :]                               # (1, 512) f32

        # ---- hoisted, time-parallel layer-0 input projection --------------
        # (TB, 128)bf16 @ (128, 512)bf16 -> (TB, 512)f32; layer-0 bias folded
        # in once.  Spilled to VMEM scratch; rows re-loaded per step.
        x_bf = x_ref[0].astype(jnp.bfloat16)             # one-hot: exact
        xproj_ref[...] = jnp.dot(x_bf, w0_ref[0:HP, :],
                                 preferred_element_type=jnp.float32) + b0

        whh0 = w0_ref[HP:2 * HP, :]                      # (128, 512) bf16
        w1_ih = w1_ref[0:HP, :]                          # (128, 512) bf16
        w1_hh = w1_ref[HP:2 * HP, :]                     # (128, 512) bf16

        def gate_act(g):
            # gates sit at lane offsets 0/128/256/384 -> whole-vreg slices.
            i = jax.nn.sigmoid(g[:, 0 * HP:1 * HP])
            f = jax.nn.sigmoid(g[:, 1 * HP:2 * HP])
            gg = jnp.tanh(g[:, 2 * HP:3 * HP])
            o = jax.nn.sigmoid(g[:, 3 * HP:4 * HP])
            return i, f, gg, o

        zeros = jnp.zeros((BP, HP), jnp.float32)
        h0, c0, h1, c1 = zeros, zeros, zeros, zeros

        # t_max is small and static: fully unrolled recurrence; carries stay
        # register resident (8x128 f32 each).
        for t in range(t_max):
            m = mask_ref[0, t]                           # (BP, HP) 1.0/0.0
            active = m > 0.5

            # LSTMCell 0: only the recurrent matmul is on the critical path.
            g0 = xproj_ref[t * BP:(t + 1) * BP, :] + jnp.dot(
                h0.astype(jnp.bfloat16), whh0,
                preferred_element_type=jnp.float32)
            i0, f0, gg0, o0 = gate_act(g0)
            c0p = f0 * c0 + i0 * gg0
            h0p = jnp.maximum(o0 * jnp.tanh(c0p), 0.0)   # ReLU on hidden
            c0p = jnp.maximum(c0p, 0.0)                  # ReLU on cell (as in module)
            h0 = jnp.where(active, h0p, h0)              # freeze ended words
            c0 = jnp.where(active, c0p, c0)

            # LSTMCell 1: two accumulating dots, no concatenate.
            g1 = (jnp.dot(h0.astype(jnp.bfloat16), w1_ih,
                          preferred_element_type=jnp.float32)
                  + jnp.dot(h1.astype(jnp.bfloat16), w1_hh,
                            preferred_element_type=jnp.float32)
                  + b1)
            i1, f1, gg1, o1 = gate_act(g1)
            c1p = f1 * c1 + i1 * gg1
            h1p = jnp.maximum(o1 * jnp.tanh(c1p), 0.0)
            c1p = jnp.maximum(c1p, 0.0)
            h1 = jnp.where(active, h1p, h1)
            c1 = jnp.where(active, c1p, c1)

        # ---- final-letter head: FC -> ReLU -> FC -> ReLU -> FC -> sigmoid -
        z = jnp.maximum(
            jnp.dot(h1.astype(jnp.bfloat16), hw_ref[0],
                    preferred_element_type=jnp.float32) + hb_ref[0:1, :], 0.0)
        z = jnp.maximum(
            jnp.dot(z.astype(jnp.bfloat16), hw_ref[1],
                    preferred_element_type=jnp.float32) + hb_ref[1:2, :], 0.0)
        z = (jnp.dot(z.astype(jnp.bfloat16), hw_ref[2],
                     preferred_element_type=jnp.float32) + hb_ref[2:3, :])
        out_ref[...] = jax.nn.sigmoid(z)[None, :, :]     # lane-dense (1,8,128)

    return kernel


def pack_inputs(char_ids, lengths, t_max):
    """Pack a batch of words into the padded, masked kernel layout."""
    ids = np.asarray(char_ids)
    lens = np.asarray(lengths)
    B = ids.shape[0]
    G = (B + BP - 1) // BP
    TB = t_max * BP
    x = np.zeros((G, TB, INP), np.float32)
    mask = np.zeros((G, t_max, BP, HP), np.float32)
    for b in range(B):
        g, r = divmod(b, BP)
        for t in range(int(lens[b])):
            x[g, t * BP + r, int(ids[b, t])] = 1.0
            mask[g, t, r, :] = 1.0
    return jnp.asarray(x), jnp.asarray(mask), G


def subject_generator_forward_batch(char_ids, lengths, packed):
    """char_ids: (B, t_max) int char ids (padding ignored); lengths: (B,).
    Returns (B, 1) sigmoid predictions, one per word (batched forward)."""
    B = int(char_ids.shape[0])
    t_max = int(char_ids.shape[1])
    TB = t_max * BP

    xslab, mask, G = pack_inputs(char_ids, lengths, t_max)

    out = pl.pallas_call(
        _make_kernel(t_max),
        out_shape=jax.ShapeDtypeStruct((G, BP, NP), jnp.float32),
        grid_spec=pltpu.PrefetchScalarGridSpec(
            num_scalar_prefetch=0,
            grid=(G,),                     # word-groups; sharded across TCs
            in_specs=[
                pl.BlockSpec((1, TB, INP), lambda g: (g, 0, 0)),       # x
                pl.BlockSpec((1, t_max, BP, HP), lambda g: (g, 0, 0, 0)),  # mask
                pl.BlockSpec((2 * HP, GP), lambda g: (0, 0)),          # w0 bf16
                pl.BlockSpec((2 * HP, GP), lambda g: (0, 0)),          # w1 bf16
                pl.BlockSpec((8, GP), lambda g: (0, 0)),               # biases
                pl.BlockSpec((3, NP, NP), lambda g: (0, 0, 0)),        # head w
                pl.BlockSpec((8, NP), lambda g: (0, 0)),               # head b
            ],
            out_specs=pl.BlockSpec((1, BP, NP), lambda g: (g, 0, 0)),
            scratch_shapes=[pltpu.VMEM((TB, GP), jnp.float32)],        # xproj
        ),
        compiler_params=pltpu.CompilerParams(
            dimension_semantics=("parallel",)),
    )(xslab, mask, packed["w0"], packed["w1"], packed["b01"],
      packed["head_w"], packed["head_b"])

    return out.reshape(G * BP, NP)[:B, :OUT]


# ---------------------------------------------------------------------------
# Parameter init (PyTorch-style uniform(-1/sqrt(h), 1/sqrt(h))) and packing
# into lane-aligned, zero-padded slabs (weights bf16, biases f32).
# ---------------------------------------------------------------------------
def init_params(key):
    ks = jax.random.split(key, 14)

    def u(k, shape, fan):
        bound = 1.0 / np.sqrt(fan)
        return jax.random.uniform(k, shape, jnp.float32, -bound, bound)

    return {
        # LSTMCell 0 (gate order i, f, g, o)
        "wih0": u(ks[0], (4 * H0, IN), H0),
        "whh0": u(ks[1], (4 * H0, H0), H0),
        "bih0": u(ks[2], (4 * H0,), H0),
        "bhh0": u(ks[3], (4 * H0,), H0),
        # LSTMCell 1
        "wih1": u(ks[4], (4 * H1, H0), H1),
        "whh1": u(ks[5], (4 * H1, H1), H1),
        "bih1": u(ks[6], (4 * H1,), H1),
        "bhh1": u(ks[7], (4 * H1,), H1),
        # Linear head
        "wfc0": u(ks[8], (H2, H1), H1),
        "bfc0": u(ks[9], (H2,), H1),
        "wfc1": u(ks[10], (H3, H2), H2),
        "bfc1": u(ks[11], (H3,), H2),
        "wout": u(ks[12], (OUT, H3), H3),
        "bout": u(ks[13], (OUT,), H3),
    }


def pack_params(raw):
    """Pack weights into padded slabs: gates land at 128-lane offsets, all
    padded entries are exactly zero (keeps padded h/c lanes at zero).
    Weight slabs are bf16 (halved VMEM->MXU streaming); biases stay f32."""
    w0 = np.zeros((2 * HP, GP), np.float32)       # [W_ih0 ; W_hh0] (transposed)
    w1 = np.zeros((2 * HP, GP), np.float32)       # [W_ih1 ; W_hh1] (transposed)
    b01 = np.zeros((8, GP), np.float32)           # row0: layer0 bias, row1: layer1
    head_w = np.zeros((3, NP, NP), np.float32)    # fc0ᵀ, fc1ᵀ, outᵀ (padded)
    head_b = np.zeros((8, NP), np.float32)        # rows 0,1,2: head biases

    wih0 = np.asarray(raw["wih0"]); whh0 = np.asarray(raw["whh0"])
    b0 = np.asarray(raw["bih0"]) + np.asarray(raw["bhh0"])
    wih1 = np.asarray(raw["wih1"]); whh1 = np.asarray(raw["whh1"])
    b1 = np.asarray(raw["bih1"]) + np.asarray(raw["bhh1"])

    for g in range(4):
        # layer 0: gate g at lanes [g*128, g*128+H0)
        w0[:IN, g * HP:g * HP + H0] = wih0[g * H0:(g + 1) * H0, :].T
        w0[HP:HP + H0, g * HP:g * HP + H0] = whh0[g * H0:(g + 1) * H0, :].T
        b01[0, g * HP:g * HP + H0] = b0[g * H0:(g + 1) * H0]
        # layer 1 (rows [0:128)=W_ih1ᵀ, rows [128:256)=W_hh1ᵀ)
        w1[:H0, g * HP:g * HP + H1] = wih1[g * H1:(g + 1) * H1, :].T
        w1[HP:HP + H1, g * HP:g * HP + H1] = whh1[g * H1:(g + 1) * H1, :].T
        b01[1, g * HP:g * HP + H1] = b1[g * H1:(g + 1) * H1]

    head_w[0, :H1, :H2] = np.asarray(raw["wfc0"]).T
    head_w[1, :H2, :H3] = np.asarray(raw["wfc1"]).T
    head_w[2, :H3, :OUT] = np.asarray(raw["wout"]).T
    head_b[0, :H2] = np.asarray(raw["bfc0"])
    head_b[1, :H3] = np.asarray(raw["bfc1"])
    head_b[2, :OUT] = np.asarray(raw["bout"])

    return {"w0": jnp.asarray(w0, dtype=jnp.bfloat16),
            "w1": jnp.asarray(w1, dtype=jnp.bfloat16),
            "b01": jnp.asarray(b01),
            "head_w": jnp.asarray(head_w, dtype=jnp.bfloat16),
            "head_b": jnp.asarray(head_b)}


# ---------------------------------------------------------------------------
# Pure-JAX reference mirroring the kernel's numerics (bf16 weights & matmul
# inputs, f32 accumulation, eval-mode dropout), one word at a time.
# ---------------------------------------------------------------------------
def reference_forward(x, raw):
    bf = lambda v: v.astype(jnp.bfloat16).astype(jnp.float32)

    def cell(xt, h, c, wih, whh, bih, bhh, hsz):
        gates = bf(xt) @ bf(wih).T + bf(h) @ bf(whh).T + bih + bhh
        i = jax.nn.sigmoid(gates[:, 0 * hsz:1 * hsz])
        f = jax.nn.sigmoid(gates[:, 1 * hsz:2 * hsz])
        g = jnp.tanh(gates[:, 2 * hsz:3 * hsz])
        o = jax.nn.sigmoid(gates[:, 3 * hsz:4 * hsz])
        c2 = f * c + i * g
        h2 = o * jnp.tanh(c2)
        return h2, c2

    h0 = jnp.zeros((1, H0), jnp.float32); c0 = jnp.zeros((1, H0), jnp.float32)
    h1 = jnp.zeros((1, H1), jnp.float32); c1 = jnp.zeros((1, H1), jnp.float32)
    T = x.shape[0]
    out = None
    for t in range(T):
        xt = x[t]                                           # (1, 27)
        h0, c0 = cell(xt, h0, c0, raw["wih0"], raw["whh0"],
                      raw["bih0"], raw["bhh0"], H0)
        h0, c0 = jnp.maximum(h0, 0.0), jnp.maximum(c0, 0.0)
        h1, c1 = cell(h0, h1, c1, raw["wih1"], raw["whh1"],
                      raw["bih1"], raw["bhh1"], H1)
        h1, c1 = jnp.maximum(h1, 0.0), jnp.maximum(c1, 0.0)
        if t == T - 1:
            z = jnp.maximum(bf(h1) @ bf(raw["wfc0"]).T + raw["bfc0"], 0.0)
            z = jnp.maximum(bf(z) @ bf(raw["wfc1"]).T + raw["bfc1"], 0.0)
            out = jax.nn.sigmoid(bf(z) @ bf(raw["wout"]).T + raw["bout"])
    return out


if __name__ == "__main__":
    key = jax.random.PRNGKey(0)
    pkey, xkey = jax.random.split(key)
    raw = init_params(pkey)
    packed = pack_params(raw)

    # A small batch of words of varying length (characters = 27-dim one-hots).
    B = 5
    T_MAX = 10
    lengths = np.array([3, 7, 10, 5, 8], dtype=np.int32)
    char_ids = jax.random.randint(xkey, (B, T_MAX), 0, IN)

    preds = jax.block_until_ready(
        subject_generator_forward_batch(char_ids, lengths, packed))
    assert preds.shape == (B, OUT)

    # Per-word pure-JAX reference with identical (bf16-weight) numerics.
    ids_np = np.asarray(char_ids)
    for b in range(B):
        T = int(lengths[b])
        x = jax.nn.one_hot(ids_np[b, :T], IN, dtype=jnp.float32)[:, None, :]
        ref = jax.block_until_ready(reference_forward(x, raw))
        assert np.allclose(np.asarray(preds[b]), np.asarray(ref[0]),
                           rtol=1e-3, atol=1e-3), (b, preds[b], ref)

    print("KERNEL_OK")
</pallas_src>

<mosaic_0001>
module attributes {stable_mosaic.version = 11 : i64} {
  func.func @kernel(%arg0: i32, %arg1: memref<1x80x128xf32, #tpu.memory_space<vmem>>, %arg2: memref<1x10x8x128xf32, #tpu.memory_space<vmem>>, %arg3: memref<256x512xbf16, #tpu.memory_space<vmem>>, %arg4: memref<256x512xbf16, #tpu.memory_space<vmem>>, %arg5: memref<8x512xf32, #tpu.memory_space<vmem>>, %arg6: memref<3x128x128xbf16, #tpu.memory_space<vmem>>, %arg7: memref<8x128xf32, #tpu.memory_space<vmem>>, %arg8: memref<1x8x128xf32, #tpu.memory_space<vmem>>, %arg9: memref<80x512xf32, #tpu.memory_space<vmem>>) attributes {dimension_semantics = [#tpu.dimension_semantics<parallel>], iteration_bounds = array<i64: 1>, scalar_prefetch = 0 : i64, scratch_operands = 1 : i64, tpu.core_type = #tpu.core_type<tc>, window_params = [{transform_indices = @transform_0, window_bounds = array<i64: 1, 80, 128>}, {transform_indices = @transform_1, window_bounds = array<i64: 1, 10, 8, 128>}, {pipeline_mode = #tpu.pipeline_mode<synchronous>, transform_indices = @transform_2, window_bounds = array<i64: 256, 512>}, {pipeline_mode = #tpu.pipeline_mode<synchronous>, transform_indices = @transform_3, window_bounds = array<i64: 256, 512>}, {pipeline_mode = #tpu.pipeline_mode<synchronous>, transform_indices = @transform_4, window_bounds = array<i64: 8, 512>}, {pipeline_mode = #tpu.pipeline_mode<synchronous>, transform_indices = @transform_5, window_bounds = array<i64: 3, 128, 128>}, {pipeline_mode = #tpu.pipeline_mode<synchronous>, transform_indices = @transform_6, window_bounds = array<i64: 8, 128>}, {transform_indices = @transform_7, window_bounds = array<i64: 1, 8, 128>}]} {
    %c0 = arith.constant 0 : index
    %c0_0 = arith.constant 0 : index
    %0 = vector.load %arg5[%c0, %c0_0] : memref<8x512xf32, #tpu.memory_space<vmem>>, vector<1x512xf32>
    %c1 = arith.constant 1 : index
    %c0_1 = arith.constant 0 : index
    %1 = vector.load %arg5[%c1, %c0_1] : memref<8x512xf32, #tpu.memory_space<vmem>>, vector<1x512xf32>
    %c0_2 = arith.constant 0 : index
    %c0_3 = arith.constant 0 : index
    %c0_4 = arith.constant 0 : index
    %2 = vector.load %arg1[%c0_2, %c0_3, %c0_4] : memref<1x80x128xf32, #tpu.memory_space<vmem>>, vector<1x80x128xf32>
    %3 = vector.shape_cast %2 : vector<1x80x128xf32> to vector<80x128xf32>
    %4 = arith.truncf %3 : vector<80x128xf32> to vector<80x128xbf16>
    %c0_5 = arith.constant 0 : index
    %c0_6 = arith.constant 0 : index
    %5 = vector.load %arg3[%c0_5, %c0_6] : memref<256x512xbf16, #tpu.memory_space<vmem>>, vector<128x512xbf16>
    %cst = arith.constant dense<0.000000e+00> : vector<80x512xf32>
    %6 = tpu.matmul %4, %5, %cst {dimension_numbers = #tpu.dot_dimension_numbers<[1], [0], [0], [1], [0, 0, 1, 1], [], []>} : vector<80x128xbf16>, vector<128x512xbf16>, vector<80x512xf32> -> vector<80x512xf32>
    %7 = vector.broadcast %0 : vector<1x512xf32> to vector<80x512xf32>
    %8 = arith.addf %6, %7 : vector<80x512xf32>
    %c0_7 = arith.constant 0 : index
    %c0_8 = arith.constant 0 : index
    %9 = vector.load %arg9[%c0_7, %c0_8] : memref<80x512xf32, #tpu.memory_space<vmem>>, vector<80x512xf32>
    tpu.vector_store %arg9[%c0_7, %c0_8], %8 {strides = array<i32>} : memref<80x512xf32, #tpu.memory_space<vmem>>, vector<80x512xf32>,
    %c128 = arith.constant 128 : index
    %c0_9 = arith.constant 0 : index
    %10 = vector.load %arg3[%c128, %c0_9] : memref<256x512xbf16, #tpu.memory_space<vmem>>, vector<128x512xbf16>
    %c0_10 = arith.constant 0 : index
    %c0_11 = arith.constant 0 : index
    %11 = vector.load %arg4[%c0_10, %c0_11] : memref<256x512xbf16, #tpu.memory_space<vmem>>, vector<128x512xbf16>
    %c128_12 = arith.constant 128 : index
    %c0_13 = arith.constant 0 : index
    %12 = vector.load %arg4[%c128_12, %c0_13] : memref<256x512xbf16, #tpu.memory_space<vmem>>, vector<128x512xbf16>
    %cst_14 = arith.constant 0.000000e+00 : f32
    %13 = vector.broadcast %cst_14 : f32 to vector<8x128xf32>
    %c0_15 = arith.constant 0 : index
    %c0_16 = arith.constant 0 : index
    %c0_17 = arith.constant 0 : index
    %c0_18 = arith.constant 0 : index
    %14 = vector.load %arg2[%c0_15, %c0_16, %c0_17, %c0_18] : memref<1x10x8x128xf32, #tpu.memory_space<vmem>>, vector<1x1x8x128xf32>
    %15 = vector.shape_cast %14 : vector<1x1x8x128xf32> to vector<8x128xf32>
    %cst_19 = arith.constant 5.000000e-01 : f32
    %16 = vector.broadcast %cst_19 : f32 to vector<8x128xf32>
    %17 = arith.cmpf ogt, %15, %16 : vector<8x128xf32>
    %c0_20 = arith.constant 0 : index
    %c0_21 = arith.constant 0 : index
    %18 = vector.load %arg9[%c0_20, %c0_21] : memref<80x512xf32, #tpu.memory_space<vmem>>, vector<8x512xf32>
    %19 = arith.truncf %13 : vector<8x128xf32> to vector<8x128xbf16>
    %cst_22 = arith.constant dense<0.000000e+00> : vector<8x512xf32>
    %20 = tpu.matmul %19, %10, %cst_22 {dimension_numbers = #tpu.dot_dimension_numbers<[1], [0], [0], [1], [0, 0, 1, 1], [], []>} : vector<8x128xbf16>, vector<128x512xbf16>, vector<8x512xf32> -> vector<8x512xf32>
    %21 = arith.addf %18, %20 : vector<8x512xf32>
    %22 = vector.extract_strided_slice %21 {offsets = [0, 0], sizes = [8, 128], strides = [1, 1]} : vector<8x512xf32> to vector<8x128xf32>
    %23 = arith.negf %22 : vector<8x128xf32>
    %24 = math.exp %23 : vector<8x128xf32>
    %cst_23 = arith.constant 1.000000e+00 : f32
    %25 = vector.broadcast %cst_23 : f32 to vector<8x128xf32>
    %26 = arith.addf %25, %24 : vector<8x128xf32>
    %27 = arith.divf %25, %26 : vector<8x128xf32>
    %28 = vector.extract_strided_slice %21 {offsets = [0, 128], sizes = [8, 128], strides = [1, 1]} : vector<8x512xf32> to vector<8x128xf32>
    %29 = arith.negf %28 : vector<8x128xf32>
    %30 = math.exp %29 : vector<8x128xf32>
    %cst_24 = arith.constant 1.000000e+00 : f32
    %31 = vector.broadcast %cst_24 : f32 to vector<8x128xf32>
    %32 = arith.addf %31, %30 : vector<8x128xf32>
    %33 = arith.divf %31, %32 : vector<8x128xf32>
    %34 = vector.extract_strided_slice %21 {offsets = [0, 256], sizes = [8, 128], strides = [1, 1]} : vector<8x512xf32> to vector<8x128xf32>
    %35 = math.tanh %34 : vector<8x128xf32>
    %36 = vector.extract_strided_slice %21 {offsets = [0, 384], sizes = [8, 128], strides = [1, 1]} : vector<8x512xf32> to vector<8x128xf32>
    %37 = arith.negf %36 : vector<8x128xf32>
    %38 = math.exp %37 : vector<8x128xf32>
    %cst_25 = arith.constant 1.000000e+00 : f32
    %39 = vector.broadcast %cst_25 : f32 to vector<8x128xf32>
    %40 = arith.addf %39, %38 : vector<8x128xf32>
    %41 = arith.divf %39, %40 : vector<8x128xf32>
    %42 = arith.mulf %33, %13 : vector<8x128xf32>
    %43 = arith.mulf %27, %35 : vector<8x128xf32>
    %44 = arith.addf %42, %43 : vector<8x128xf32>
    %45 = math.tanh %44 : vector<8x128xf32>
    %46 = arith.mulf %41, %45 : vector<8x128xf32>
    %cst_26 = arith.constant 0.000000e+00 : f32
    %47 = vector.broadcast %cst_26 : f32 to vector<8x128xf32>
    %48 = arith.maximumf %46, %47 : vector<8x128xf32>
    %cst_27 = arith.constant 0.000000e+00 : f32
    %49 = vector.broadcast %cst_27 : f32 to vector<8x128xf32>
    %50 = arith.maximumf %44, %49 : vector<8x128xf32>
    %51 = arith.select %17, %48, %13 : vector<8x128xi1>, vector<8x128xf32>
    %52 = arith.select %17, %50, %13 : vector<8x128xi1>, vector<8x128xf32>
    %53 = arith.truncf %51 : vector<8x128xf32> to vector<8x128xbf16>
    %cst_28 = arith.constant dense<0.000000e+00> : vector<8x512xf32>
    %54 = tpu.matmul %53, %11, %cst_28 {dimension_numbers = #tpu.dot_dimension_numbers<[1], [0], [0], [1], [0, 0, 1, 1], [], []>} : vector<8x128xbf16>, vector<128x512xbf16>, vector<8x512xf32> -> vector<8x512xf32>
    %55 = arith.truncf %13 : vector<8x128xf32> to vector<8x128xbf16>
    %cst_29 = arith.constant dense<0.000000e+00> : vector<8x512xf32>
    %56 = tpu.matmul %55, %12, %cst_29 {dimension_numbers = #tpu.dot_dimension_numbers<[1], [0], [0], [1], [0, 0, 1, 1], [], []>} : vector<8x128xbf16>, vector<128x512xbf16>, vector<8x512xf32> -> vector<8x512xf32>
    %57 = arith.addf %54, %56 : vector<8x512xf32>
    %58 = vector.broadcast %1 : vector<1x512xf32> to vector<8x512xf32>
    %59 = arith.addf %57, %58 : vector<8x512xf32>
    %60 = vector.extract_strided_slice %59 {offsets = [0, 0], sizes = [8, 128], strides = [1, 1]} : vector<8x512xf32> to vector<8x128xf32>
    %61 = arith.negf %60 : vector<8x128xf32>
    %62 = math.exp %61 : vector<8x128xf32>
    %cst_30 = arith.constant 1.000000e+00 : f32
    %63 = vector.broadcast %cst_30 : f32 to vector<8x128xf32>
    %64 = arith.addf %63, %62 : vector<8x128xf32>
    %65 = arith.divf %63, %64 : vector<8x128xf32>
    %66 = vector.extract_strided_slice %59 {offsets = [0, 128], sizes = [8, 128], strides = [1, 1]} : vector<8x512xf32> to vector<8x128xf32>
    %67 = arith.negf %66 : vector<8x128xf32>
    %68 = math.exp %67 : vector<8x128xf32>
    %cst_31 = arith.constant 1.000000e+00 : f32
    %69 = vector.broadcast %cst_31 : f32 to vector<8x128xf32>
    %70 = arith.addf %69, %68 : vector<8x128xf32>
    %71 = arith.divf %69, %70 : vector<8x128xf32>
    %72 = vector.extract_strided_slice %59 {offsets = [0, 256], sizes = [8, 128], strides = [1, 1]} : vector<8x512xf32> to vector<8x128xf32>
    %73 = math.tanh %72 : vector<8x128xf32>
    %74 = vector.extract_strided_slice %59 {offsets = [0, 384], sizes = [8, 128], strides = [1, 1]} : vector<8x512xf32> to vector<8x128xf32>
    %75 = arith.negf %74 : vector<8x128xf32>
    %76 = math.exp %75 : vector<8x128xf32>
    %cst_32 = arith.constant 1.000000e+00 : f32
    %77 = vector.broadcast %cst_32 : f32 to vector<8x128xf32>
    %78 = arith.addf %77, %76 : vector<8x128xf32>
    %79 = arith.divf %77, %78 : vector<8x128xf32>
    %80 = arith.mulf %71, %13 : vector<8x128xf32>
    %81 = arith.mulf %65, %73 : vector<8x128xf32>
    %82 = arith.addf %80, %81 : vector<8x128xf32>
    %83 = math.tanh %82 : vector<8x128xf32>
    %84 = arith.mulf %79, %83 : vector<8x128xf32>
    %cst_33 = arith.constant 0.000000e+00 : f32
    %85 = vector.broadcast %cst_33 : f32 to vector<8x128xf32>
    %86 = arith.maximumf %84, %85 : vector<8x128xf32>
    %cst_34 = arith.constant 0.000000e+00 : f32
    %87 = vector.broadcast %cst_34 : f32 to vector<8x128xf32>
    %88 = arith.maximumf %82, %87 : vector<8x128xf32>
    %89 = arith.select %17, %86, %13 : vector<8x128xi1>, vector<8x128xf32>
    %90 = arith.select %17, %88, %13 : vector<8x128xi1>, vector<8x128xf32>
    %c0_35 = arith.constant 0 : index
    %c1_36 = arith.constant 1 : index
    %c0_37 = arith.constant 0 : index
    %c0_38 = arith.constant 0 : index
    %91 = vector.load %arg2[%c0_35, %c1_36, %c0_37, %c0_38] : memref<1x10x8x128xf32, #tpu.memory_space<vmem>>, vector<1x1x8x128xf32>
    %92 = vector.shape_cast %91 : vector<1x1x8x128xf32> to vector<8x128xf32>
    %cst_39 = arith.constant 5.000000e-01 : f32
    %93 = vector.broadcast %cst_39 : f32 to vector<8x128xf32>
    %94 = arith.cmpf ogt, %92, %93 : vector<8x128xf32>
    %c8 = arith.constant 8 : index
    %c0_40 = arith.constant 0 : index
    %95 = vector.load %arg9[%c8, %c0_40] : memref<80x512xf32, #tpu.memory_space<vmem>>, vector<8x512xf32>
    %96 = arith.truncf %51 : vector<8x128xf32> to vector<8x128xbf16>
    %cst_41 = arith.constant dense<0.000000e+00> : vector<8x512xf32>
    %97 = tpu.matmul %96, %10, %cst_41 {dimension_numbers = #tpu.dot_dimension_numbers<[1], [0], [0], [1], [0, 0, 1, 1], [], []>} : vector<8x128xbf16>, vector<128x512xbf16>, vector<8x512xf32> -> vector<8x512xf32>
    %98 = arith.addf %95, %97 : vector<8x512xf32>
    %99 = vector.extract_strided_slice %98 {offsets = [0, 0], sizes = [8, 128], strides = [1, 1]} : vector<8x512xf32> to vector<8x128xf32>
    %100 = arith.negf %99 : vector<8x128xf32>
    %101 = math.exp %100 : vector<8x128xf32>
    %cst_42 = arith.constant 1.000000e+00 : f32
    %102 = vector.broadcast %cst_42 : f32 to vector<8x128xf32>
    %103 = arith.addf %102, %101 : vector<8x128xf32>
    %104 = arith.divf %102, %103 : vector<8x128xf32>
    %105 = vector.extract_strided_slice %98 {offsets = [0, 128], sizes = [8, 128], strides = [1, 1]} : vector<8x512xf32> to vector<8x128xf32>
    %106 = arith.negf %105 : vector<8x128xf32>
    %107 = math.exp %106 : vector<8x128xf32>
    %cst_43 = arith.constant 1.000000e+00 : f32
    %108 = vector.broadcast %cst_43 : f32 to vector<8x128xf32>
    %109 = arith.addf %108, %107 : vector<8x128xf32>
    %110 = arith.divf %108, %109 : vector<8x128xf32>
    %111 = vector.extract_strided_slice %98 {offsets = [0, 256], sizes = [8, 128], strides = [1, 1]} : vector<8x512xf32> to vector<8x128xf32>
    %112 = math.tanh %111 : vector<8x128xf32>
    %113 = vector.extract_strided_slice %98 {offsets = [0, 384], sizes = [8, 128], strides = [1, 1]} : vector<8x512xf32> to vector<8x128xf32>
    %114 = arith.negf %113 : vector<8x128xf32>
    %115 = math.exp %114 : vector<8x128xf32>
    %cst_44 = arith.constant 1.000000e+00 : f32
    %116 = vector.broadcast %cst_44 : f32 to vector<8x128xf32>
    %117 = arith.addf %116, %115 : vector<8x128xf32>
    %118 = arith.divf %116, %117 : vector<8x128xf32>
    %119 = arith.mulf %110, %52 : vector<8x128xf32>
    %120 = arith.mulf %104, %112 : vector<8x128xf32>
    %121 = arith.addf %119, %120 : vector<8x128xf32>
    %122 = math.tanh %121 : vector<8x128xf32>
    %123 = arith.mulf %118, %122 : vector<8x128xf32>
    %cst_45 = arith.constant 0.000000e+00 : f32
    %124 = vector.broadcast %cst_45 : f32 to vector<8x128xf32>
    %125 = arith.maximumf %123, %124 : vector<8x128xf32>
    %cst_46 = arith.constant 0.000000e+00 : f32
    %126 = vector.broadcast %cst_46 : f32 to vector<8x128xf32>
    %127 = arith.maximumf %121, %126 : vector<8x128xf32>
    %128 = arith.select %94, %125, %51 : vector<8x128xi1>, vector<8x128xf32>
    %129 = arith.select %94, %127, %52 : vector<8x128xi1>, vector<8x128xf32>
    %130 = arith.truncf %128 : vector<8x128xf32> to vector<8x128xbf16>
    %cst_47 = arith.constant dense<0.000000e+00> : vector<8x512xf32>
    %131 = tpu.matmul %130, %11, %cst_47 {dimension_numbers = #tpu.dot_dimension_numbers<[1], [0], [0], [1], [0, 0, 1, 1], [], []>} : vector<8x128xbf16>, vector<128x512xbf16>, vector<8x512xf32> -> vector<8x512xf32>
    %132 = arith.truncf %89 : vector<8x128xf32> to vector<8x128xbf16>
    %cst_48 = arith.constant dense<0.000000e+00> : vector<8x512xf32>
    %133 = tpu.matmul %132, %12, %cst_48 {dimension_numbers = #tpu.dot_dimension_numbers<[1], [0], [0], [1], [0, 0, 1, 1], [], []>} : vector<8x128xbf16>, vector<128x512xbf16>, vector<8x512xf32> -> vector<8x512xf32>
    %134 = arith.addf %131, %133 : vector<8x512xf32>
    %135 = vector.broadcast %1 : vector<1x512xf32> to vector<8x512xf32>
    %136 = arith.addf %134, %135 : vector<8x512xf32>
    %137 = vector.extract_strided_slice %136 {offsets = [0, 0], sizes = [8, 128], strides = [1, 1]} : vector<8x512xf32> to vector<8x128xf32>
    %138 = arith.negf %137 : vector<8x128xf32>
    %139 = math.exp %138 : vector<8x128xf32>
    %cst_49 = arith.constant 1.000000e+00 : f32
    %140 = vector.broadcast %cst_49 : f32 to vector<8x128xf32>
    %141 = arith.addf %140, %139 : vector<8x128xf32>
    %142 = arith.divf %140, %141 : vector<8x128xf32>
    %143 = vector.extract_strided_slice %136 {offsets = [0, 128], sizes = [8, 128], strides = [1, 1]} : vector<8x512xf32> to vector<8x128xf32>
    %144 = arith.negf %143 : vector<8x128xf32>
    %145 = math.exp %144 : vector<8x128xf32>
    %cst_50 = arith.constant 1.000000e+00 : f32
    %146 = vector.broadcast %cst_50 : f32 to vector<8x128xf32>
    %147 = arith.addf %146, %145 : vector<8x128xf32>
    %148 = arith.divf %146, %147 : vector<8x128xf32>
    %149 = vector.extract_strided_slice %136 {offsets = [0, 256], sizes = [8, 128], strides = [1, 1]} : vector<8x512xf32> to vector<8x128xf32>
    %150 = math.tanh %149 : vector<8x128xf32>
    %151 = vector.extract_strided_slice %136 {offsets = [0, 384], sizes = [8, 128], strides = [1, 1]} : vector<8x512xf32> to vector<8x128xf32>
    %152 = arith.negf %151 : vector<8x128xf32>
    %153 = math.exp %152 : vector<8x128xf32>
    %cst_51 = arith.constant 1.000000e+00 : f32
    %154 = vector.broadcast %cst_51 : f32 to vector<8x128xf32>
    %155 = arith.addf %154, %153 : vector<8x128xf32>
    %156 = arith.divf %154, %155 : vector<8x128xf32>
    %157 = arith.mulf %148, %90 : vector<8x128xf32>
    %158 = arith.mulf %142, %150 : vector<8x128xf32>
    %159 = arith.addf %157, %158 : vector<8x128xf32>
    %160 = math.tanh %159 : vector<8x128xf32>
    %161 = arith.mulf %156, %160 : vector<8x128xf32>
    %cst_52 = arith.constant 0.000000e+00 : f32
    %162 = vector.broadcast %cst_52 : f32 to vector<8x128xf32>
    %163 = arith.maximumf %161, %162 : vector<8x128xf32>
    %cst_53 = arith.constant 0.000000e+00 : f32
    %164 = vector.broadcast %cst_53 : f32 to vector<8x128xf32>
    %165 = arith.maximumf %159, %164 : vector<8x128xf32>
    %166 = arith.select %94, %163, %89 : vector<8x128xi1>, vector<8x128xf32>
    %167 = arith.select %94, %165, %90 : vector<8x128xi1>, vector<8x128xf32>
    %c0_54 = arith.constant 0 : index
    %c2 = arith.constant 2 : index
    %c0_55 = arith.constant 0 : index
    %c0_56 = arith.constant 0 : index
    %168 = vector.load %arg2[%c0_54, %c2, %c0_55, %c0_56] : memref<1x10x8x128xf32, #tpu.memory_space<vmem>>, vector<1x1x8x128xf32>
    %169 = vector.shape_cast %168 : vector<1x1x8x128xf32> to vector<8x128xf32>
    %cst_57 = arith.constant 5.000000e-01 : f32
    %170 = vector.broadcast %cst_57 : f32 to vector<8x128xf32>
    %171 = arith.cmpf ogt, %169, %170 : vector<8x128xf32>
    %c16 = arith.constant 16 : index
    %c0_58 = arith.constant 0 : index
    %172 = vector.load %arg9[%c16, %c0_58] : memref<80x512xf32, #tpu.memory_space<vmem>>, vector<8x512xf32>
    %173 = arith.truncf %128 : vector<8x128xf32> to vector<8x128xbf16>
    %cst_59 = arith.constant dense<0.000000e+00> : vector<8x512xf32>
    %174 = tpu.matmul %173, %10, %cst_59 {dimension_numbers = #tpu.dot_dimension_numbers<[1], [0], [0], [1], [0, 0, 1, 1], [], []>} : vector<8x128xbf16>, vector<128x512xbf16>, vector<8x512xf32> -> vector<8x512xf32>
    %175 = arith.addf %172, %174 : vector<8x512xf32>
    %176 = vector.extract_strided_slice %175 {offsets = [0, 0], sizes = [8, 128], strides = [1, 1]} : vector<8x512xf32> to vector<8x128xf32>
    %177 = arith.negf %176 : vector<8x128xf32>
    %178 = math.exp %177 : vector<8x128xf32>
    %cst_60 = arith.constant 1.000000e+00 : f32
    %179 = vector.broadcast %cst_60 : f32 to vector<8x128xf32>
    %180 = arith.addf %179, %178 : vector<8x128xf32>
    %181 = arith.divf %179, %180 : vector<8x128xf32>
    %182 = vector.extract_strided_slice %175 {offsets = [0, 128], sizes = [8, 128], strides = [1, 1]} : vector<8x512xf32> to vector<8x128xf32>
    %183 = arith.negf %182 : vector<8x128xf32>
    %184 = math.exp %183 : vector<8x128xf32>
    %cst_61 = arith.constant 1.000000e+00 : f32
    %185 = vector.broadcast %cst_61 : f32 to vector<8x128xf32>
    %186 = arith.addf %185, %184 : vector<8x128xf32>
    %187 = arith.divf %185, %186 : vector<8x128xf32>
    %188 = vector.extract_strided_slice %175 {offsets = [0, 256], sizes = [8, 128], strides = [1, 1]} : vector<8x512xf32> to vector<8x128xf32>
    %189 = math.tanh %188 : vector<8x128xf32>
    %190 = vector.extract_strided_slice %175 {offsets = [0, 384], sizes = [8, 128], strides = [1, 1]} : vector<8x512xf32> to vector<8x128xf32>
    %191 = arith.negf %190 : vector<8x128xf32>
    %192 = math.exp %191 : vector<8x128xf32>
    %cst_62 = arith.constant 1.000000e+00 : f32
    %193 = vector.broadcast %cst_62 : f32 to vector<8x128xf32>
    %194 = arith.addf %193, %192 : vector<8x128xf32>
    %195 = arith.divf %193, %194 : vector<8x128xf32>
    %196 = arith.mulf %187, %129 : vector<8x128xf32>
    %197 = arith.mulf %181, %189 : vector<8x128xf32>
    %198 = arith.addf %196, %197 : vector<8x128xf32>
    %199 = math.tanh %198 : vector<8x128xf32>
    %200 = arith.mulf %195, %199 : vector<8x128xf32>
    %cst_63 = arith.constant 0.000000e+00 : f32
    %201 = vector.broadcast %cst_63 : f32 to vector<8x128xf32>
    %202 = arith.maximumf %200, %201 : vector<8x128xf32>
    %cst_64 = arith.constant 0.000000e+00 : f32
    %203 = vector.broadcast %cst_64 : f32 to vector<8x128xf32>
    %204 = arith.maximumf %198, %203 : vector<8x128xf32>
    %205 = arith.select %171, %202, %128 : vector<8x128xi1>, vector<8x128xf32>
    %206 = arith.select %171, %204, %129 : vector<8x128xi1>, vector<8x128xf32>
    %207 = arith.truncf %205 : vector<8x128xf32> to vector<8x128xbf16>
    %cst_65 = arith.constant dense<0.000000e+00> : vector<8x512xf32>
    %208 = tpu.matmul %207, %11, %cst_65 {dimension_numbers = #tpu.dot_dimension_numbers<[1], [0], [0], [1], [0, 0, 1, 1], [], []>} : vector<8x128xbf16>, vector<128x512xbf16>, vector<8x512xf32> -> vector<8x512xf32>
    %209 = arith.truncf %166 : vector<8x128xf32> to vector<8x128xbf16>
    %cst_66 = arith.constant dense<0.000000e+00> : vector<8x512xf32>
    %210 = tpu.matmul %209, %12, %cst_66 {dimension_numbers = #tpu.dot_dimension_numbers<[1], [0], [0], [1], [0, 0, 1, 1], [], []>} : vector<8x128xbf16>, vector<128x512xbf16>, vector<8x512xf32> -> vector<8x512xf32>
    %211 = arith.addf %208, %210 : vector<8x512xf32>
    %212 = vector.broadcast %1 : vector<1x512xf32> to vector<8x512xf32>
    %213 = arith.addf %211, %212 : vector<8x512xf32>
    %214 = vector.extract_strided_slice %213 {offsets = [0, 0], sizes = [8, 128], strides = [1, 1]} : vector<8x512xf32> to vector<8x128xf32>
    %215 = arith.negf %214 : vector<8x128xf32>
    %216 = math.exp %215 : vector<8x128xf32>
    %cst_67 = arith.constant 1.000000e+00 : f32
    %217 = vector.broadcast %cst_67 : f32 to vector<8x128xf32>
    %218 = arith.addf %217, %216 : vector<8x128xf32>
    %219 = arith.divf %217, %218 : vector<8x128xf32>
    %220 = vector.extract_strided_slice %213 {offsets = [0, 128], sizes = [8, 128], strides = [1, 1]} : vector<8x512xf32> to vector<8x128xf32>
    %221 = arith.negf %220 : vector<8x128xf32>
    %222 = math.exp %221 : vector<8x128xf32>
    %cst_68 = arith.constant 1.000000e+00 : f32
    %223 = vector.broadcast %cst_68 : f32 to vector<8x128xf32>
    %224 = arith.addf %223, %222 : vector<8x128xf32>
    %225 = arith.divf %223, %224 : vector<8x128xf32>
    %226 = vector.extract_strided_slice %213 {offsets = [0, 256], sizes = [8, 128], strides = [1, 1]} : vector<8x512xf32> to vector<8x128xf32>
    %227 = math.tanh %226 : vector<8x128xf32>
    %228 = vector.extract_strided_slice %213 {offsets = [0, 384], sizes = [8, 128], strides = [1, 1]} : vector<8x512xf32> to vector<8x128xf32>
    %229 = arith.negf %228 : vector<8x128xf32>
    %230 = math.exp %229 : vector<8x128xf32>
    %cst_69 = arith.constant 1.000000e+00 : f32
    %231 = vector.broadcast %cst_69 : f32 to vector<8x128xf32>
    %232 = arith.addf %231, %230 : vector<8x128xf32>
    %233 = arith.divf %231, %232 : vector<8x128xf32>
    %234 = arith.mulf %225, %167 : vector<8x128xf32>
    %235 = arith.mulf %219, %227 : vector<8x128xf32>
    %236 = arith.addf %234, %235 : vector<8x128xf32>
    %237 = math.tanh %236 : vector<8x128xf32>
    %238 = arith.mulf %233, %237 : vector<8x128xf32>
    %cst_70 = arith.constant 0.000000e+00 : f32
    %239 = vector.broadcast %cst_70 : f32 to vector<8x128xf32>
    %240 = arith.maximumf %238, %239 : vector<8x128xf32>
    %cst_71 = arith.constant 0.000000e+00 : f32
    %241 = vector.broadcast %cst_71 : f32 to vector<8x128xf32>
    %242 = arith.maximumf %236, %241 : vector<8x128xf32>
    %243 = arith.select %171, %240, %166 : vector<8x128xi1>, vector<8x128xf32>
    %244 = arith.select %171, %242, %167 : vector<8x128xi1>, vector<8x128xf32>
    %c0_72 = arith.constant 0 : index
    %c3 = arith.constant 3 : index
    %c0_73 = arith.constant 0 : index
    %c0_74 = arith.constant 0 : index
    %245 = vector.load %arg2[%c0_72, %c3, %c0_73, %c0_74] : memref<1x10x8x128xf32, #tpu.memory_space<vmem>>, vector<1x1x8x128xf32>
    %246 = vector.shape_cast %245 : vector<1x1x8x128xf32> to vector<8x128xf32>
    %cst_75 = arith.constant 5.000000e-01 : f32
    %247 = vector.broadcast %cst_75 : f32 to vector<8x128xf32>
    %248 = arith.cmpf ogt, %246, %247 : vector<8x128xf32>
    %c24 = arith.constant 24 : index
    %c0_76 = arith.constant 0 : index
    %249 = vector.load %arg9[%c24, %c0_76] : memref<80x512xf32, #tpu.memory_space<vmem>>, vector<8x512xf32>
    %250 = arith.truncf %205 : vector<8x128xf32> to vector<8x128xbf16>
    %cst_77 = arith.constant dense<0.000000e+00> : vector<8x512xf32>
    %251 = tpu.matmul %250, %10, %cst_77 {dimension_numbers = #tpu.dot_dimension_numbers<[1], [0], [0], [1], [0, 0, 1, 1], [], []>} : vector<8x128xbf16>, vector<128x512xbf16>, vector<8x512xf32> -> vector<8x512xf32>
    %252 = arith.addf %249, %251 : vector<8x512xf32>
    %253 = vector.extract_strided_slice %252 {offsets = [0, 0], sizes = [8, 128], strides = [1, 1]} : vector<8x512xf32> to vector<8x128xf32>
    %254 = arith.negf %253 : vector<8x128xf32>
    %255 = math.exp %254 : vector<8x128xf32>
    %cst_78 = arith.constant 1.000000e+00 : f32
    %256 = vector.broadcast %cst_78 : f32 to vector<8x128xf32>
    %257 = arith.addf %256, %255 : vector<8x128xf32>
    %258 = arith.divf %256, %257 : vector<8x128xf32>
    %259 = vector.extract_strided_slice %252 {offsets = [0, 128], sizes = [8, 128], strides = [1, 1]} : vector<8x512xf32> to vector<8x128xf32>
    %260 = arith.negf %259 : vector<8x128xf32>
    %261 = math.exp %260 : vector<8x128xf32>
    %cst_79 = arith.constant 1.000000e+00 : f32
    %262 = vector.broadcast %cst_79 : f32 to vector<8x128xf32>
    %263 = arith.addf %262, %261 : vector<8x128xf32>
    %264 = arith.divf %262, %263 : vector<8x128xf32>
    %265 = vector.extract_strided_slice %252 {offsets = [0, 256], sizes = [8, 128], strides = [1, 1]} : vector<8x512xf32> to vector<8x128xf32>
    %266 = math.tanh %265 : vector<8x128xf32>
    %267 = vector.extract_strided_slice %252 {offsets = [0, 384], sizes = [8, 128], strides = [1, 1]} : vector<8x512xf32> to vector<8x128xf32>
    %268 = arith.negf %267 : vector<8x128xf32>
    %269 = math.exp %268 : vector<8x128xf32>
    %cst_80 = arith.constant 1.000000e+00 : f32
    %270 = vector.broadcast %cst_80 : f32 to vector<8x128xf32>
    %271 = arith.addf %270, %269 : vector<8x128xf32>
    %272 = arith.divf %270, %271 : vector<8x128xf32>
    %273 = arith.mulf %264, %206 : vector<8x128xf32>
    %274 = arith.mulf %258, %266 : vector<8x128xf32>
    %275 = arith.addf %273, %274 : vector<8x128xf32>
    %276 = math.tanh %275 : vector<8x128xf32>
    %277 = arith.mulf %272, %276 : vector<8x128xf32>
    %cst_81 = arith.constant 0.000000e+00 : f32
    %278 = vector.broadcast %cst_81 : f32 to vector<8x128xf32>
    %279 = arith.maximumf %277, %278 : vector<8x128xf32>
    %cst_82 = arith.constant 0.000000e+00 : f32
    %280 = vector.broadcast %cst_82 : f32 to vector<8x128xf32>
    %281 = arith.maximumf %275, %280 : vector<8x128xf32>
    %282 = arith.select %248, %279, %205 : vector<8x128xi1>, vector<8x128xf32>
    %283 = arith.select %248, %281, %206 : vector<8x128xi1>, vector<8x128xf32>
    %284 = arith.truncf %282 : vector<8x128xf32> to vector<8x128xbf16>
    %cst_83 = arith.constant dense<0.000000e+00> : vector<8x512xf32>
    %285 = tpu.matmul %284, %11, %cst_83 {dimension_numbers = #tpu.dot_dimension_numbers<[1], [0], [0], [1], [0, 0, 1, 1], [], []>} : vector<8x128xbf16>, vector<128x512xbf16>, vector<8x512xf32> -> vector<8x512xf32>
    %286 = arith.truncf %243 : vector<8x128xf32> to vector<8x128xbf16>
    %cst_84 = arith.constant dense<0.000000e+00> : vector<8x512xf32>
    %287 = tpu.matmul %286, %12, %cst_84 {dimension_numbers = #tpu.dot_dimension_numbers<[1], [0], [0], [1], [0, 0, 1, 1], [], []>} : vector<8x128xbf16>, vector<128x512xbf16>, vector<8x512xf32> -> vector<8x512xf32>
    %288 = arith.addf %285, %287 : vector<8x512xf32>
    %289 = vector.broadcast %1 : vector<1x512xf32> to vector<8x512xf32>
    %290 = arith.addf %288, %289 : vector<8x512xf32>
    %291 = vector.extract_strided_slice %290 {offsets = [0, 0], sizes = [8, 128], strides = [1, 1]} : vector<8x512xf32> to vector<8x128xf32>
    %292 = arith.negf %291 : vector<8x128xf32>
    %293 = math.exp %292 : vector<8x128xf32>
    %cst_85 = arith.constant 1.000000e+00 : f32
    %294 = vector.broadcast %cst_85 : f32 to vector<8x128xf32>
    %295 = arith.addf %294, %293 : vector<8x128xf32>
    %296 = arith.divf %294, %295 : vector<8x128xf32>
    %297 = vector.extract_strided_slice %290 {offsets = [0, 128], sizes = [8, 128], strides = [1, 1]} : vector<8x512xf32> to vector<8x128xf32>
    %298 = arith.negf %297 : vector<8x128xf32>
    %299 = math.exp %298 : vector<8x128xf32>
    %cst_86 = arith.constant 1.000000e+00 : f32
    %300 = vector.broadcast %cst_86 : f32 to vector<8x128xf32>
    %301 = arith.addf %300, %299 : vector<8x128xf32>
    %302 = arith.divf %300, %301 : vector<8x128xf32>
    %303 = vector.extract_strided_slice %290 {offsets = [0, 256], sizes = [8, 128], strides = [1, 1]} : vector<8x512xf32> to vector<8x128xf32>
    %304 = math.tanh %303 : vector<8x128xf32>
    %305 = vector.extract_strided_slice %290 {offsets = [0, 384], sizes = [8, 128], strides = [1, 1]} : vector<8x512xf32> to vector<8x128xf32>
    %306 = arith.negf %305 : vector<8x128xf32>
    %307 = math.exp %306 : vector<8x128xf32>
    %cst_87 = arith.constant 1.000000e+00 : f32
    %308 = vector.broadcast %cst_87 : f32 to vector<8x128xf32>
    %309 = arith.addf %308, %307 : vector<8x128xf32>
    %310 = arith.divf %308, %309 : vector<8x128xf32>
    %311 = arith.mulf %302, %244 : vector<8x128xf32>
    %312 = arith.mulf %296, %304 : vector<8x128xf32>
    %313 = arith.addf %311, %312 : vector<8x128xf32>
    %314 = math.tanh %313 : vector<8x128xf32>
    %315 = arith.mulf %310, %314 : vector<8x128xf32>
    %cst_88 = arith.constant 0.000000e+00 : f32
    %316 = vector.broadcast %cst_88 : f32 to vector<8x128xf32>
    %317 = arith.maximumf %315, %316 : vector<8x128xf32>
    %cst_89 = arith.constant 0.000000e+00 : f32
    %318 = vector.broadcast %cst_89 : f32 to vector<8x128xf32>
    %319 = arith.maximumf %313, %318 : vector<8x128xf32>
    %320 = arith.select %248, %317, %243 : vector<8x128xi1>, vector<8x128xf32>
    %321 = arith.select %248, %319, %244 : vector<8x128xi1>, vector<8x128xf32>
    %c0_90 = arith.constant 0 : index
    %c4 = arith.constant 4 : index
    %c0_91 = arith.constant 0 : index
    %c0_92 = arith.constant 0 : index
    %322 = vector.load %arg2[%c0_90, %c4, %c0_91, %c0_92] : memref<1x10x8x128xf32, #tpu.memory_space<vmem>>, vector<1x1x8x128xf32>
    %323 = vector.shape_cast %322 : vector<1x1x8x128xf32> to vector<8x128xf32>
    %cst_93 = arith.constant 5.000000e-01 : f32
    %324 = vector.broadcast %cst_93 : f32 to vector<8x128xf32>
    %325 = arith.cmpf ogt, %323, %324 : vector<8x128xf32>
    %c32 = arith.constant 32 : index
    %c0_94 = arith.constant 0 : index
    %326 = vector.load %arg9[%c32, %c0_94] : memref<80x512xf32, #tpu.memory_space<vmem>>, vector<8x512xf32>
    %327 = arith.truncf %282 : vector<8x128xf32> to vector<8x128xbf16>
    %cst_95 = arith.constant dense<0.000000e+00> : vector<8x512xf32>
    %328 = tpu.matmul %327, %10, %cst_95 {dimension_numbers = #tpu.dot_dimension_numbers<[1], [0], [0], [1], [0, 0, 1, 1], [], []>} : vector<8x128xbf16>, vector<128x512xbf16>, vector<8x512xf32> -> vector<8x512xf32>
    %329 = arith.addf %326, %328 : vector<8x512xf32>
    %330 = vector.extract_strided_slice %329 {offsets = [0, 0], sizes = [8, 128], strides = [1, 1]} : vector<8x512xf32> to vector<8x128xf32>
    %331 = arith.negf %330 : vector<8x128xf32>
    %332 = math.exp %331 : vector<8x128xf32>
    %cst_96 = arith.constant 1.000000e+00 : f32
    %333 = vector.broadcast %cst_96 : f32 to vector<8x128xf32>
    %334 = arith.addf %333, %332 : vector<8x128xf32>
    %335 = arith.divf %333, %334 : vector<8x128xf32>
    %336 = vector.extract_strided_slice %329 {offsets = [0, 128], sizes = [8, 128], strides = [1, 1]} : vector<8x512xf32> to vector<8x128xf32>
    %337 = arith.negf %336 : vector<8x128xf32>
    %338 = math.exp %337 : vector<8x128xf32>
    %cst_97 = arith.constant 1.000000e+00 : f32
    %339 = vector.broadcast %cst_97 : f32 to vector<8x128xf32>
    %340 = arith.addf %339, %338 : vector<8x128xf32>
    %341 = arith.divf %339, %340 : vector<8x128xf32>
    %342 = vector.extract_strided_slice %329 {offsets = [0, 256], sizes = [8, 128], strides = [1, 1]} : vector<8x512xf32> to vector<8x128xf32>
    %343 = math.tanh %342 : vector<8x128xf32>
    %344 = vector.extract_strided_slice %329 {offsets = [0, 384], sizes = [8, 128], strides = [1, 1]} : vector<8x512xf32> to vector<8x128xf32>
    %345 = arith.negf %344 : vector<8x128xf32>
    %346 = math.exp %345 : vector<8x128xf32>
    %cst_98 = arith.constant 1.000000e+00 : f32
    %347 = vector.broadcast %cst_98 : f32 to vector<8x128xf32>
    %348 = arith.addf %347, %346 : vector<8x128xf32>
    %349 = arith.divf %347, %348 : vector<8x128xf32>
    %350 = arith.mulf %341, %283 : vector<8x128xf32>
    %351 = arith.mulf %335, %343 : vector<8x128xf32>
    %352 = arith.addf %350, %351 : vector<8x128xf32>
    %353 = math.tanh %352 : vector<8x128xf32>
    %354 = arith.mulf %349, %353 : vector<8x128xf32>
    %cst_99 = arith.constant 0.000000e+00 : f32
    %355 = vector.broadcast %cst_99 : f32 to vector<8x128xf32>
    %356 = arith.maximumf %354, %355 : vector<8x128xf32>
    %cst_100 = arith.constant 0.000000e+00 : f32
    %357 = vector.broadcast %cst_100 : f32 to vector<8x128xf32>
    %358 = arith.maximumf %352, %357 : vector<8x128xf32>
    %359 = arith.select %325, %356, %282 : vector<8x128xi1>, vector<8x128xf32>
    %360 = arith.select %325, %358, %283 : vector<8x128xi1>, vector<8x128xf32>
    %361 = arith.truncf %359 : vector<8x128xf32> to vector<8x128xbf16>
    %cst_101 = arith.constant dense<0.000000e+00> : vector<8x512xf32>
    %362 = tpu.matmul %361, %11, %cst_101 {dimension_numbers = #tpu.dot_dimension_numbers<[1], [0], [0], [1], [0, 0, 1, 1], [], []>} : vector<8x128xbf16>, vector<128x512xbf16>, vector<8x512xf32> -> vector<8x512xf32>
    %363 = arith.truncf %320 : vector<8x128xf32> to vector<8x128xbf16>
    %cst_102 = arith.constant dense<0.000000e+00> : vector<8x512xf32>
    %364 = tpu.matmul %363, %12, %cst_102 {dimension_numbers = #tpu.dot_dimension_numbers<[1], [0], [0], [1], [0, 0, 1, 1], [], []>} : vector<8x128xbf16>, vector<128x512xbf16>, vector<8x512xf32> -> vector<8x512xf32>
    %365 = arith.addf %362, %364 : vector<8x512xf32>
    %366 = vector.broadcast %1 : vector<1x512xf32> to vector<8x512xf32>
    %367 = arith.addf %365, %366 : vector<8x512xf32>
    %368 = vector.extract_strided_slice %367 {offsets = [0, 0], sizes = [8, 128], strides = [1, 1]} : vector<8x512xf32> to vector<8x128xf32>
    %369 = arith.negf %368 : vector<8x128xf32>
    %370 = math.exp %369 : vector<8x128xf32>
    %cst_103 = arith.constant 1.000000e+00 : f32
    %371 = vector.broadcast %cst_103 : f32 to vector<8x128xf32>
    %372 = arith.addf %371, %370 : vector<8x128xf32>
    %373 = arith.divf %371, %372 : vector<8x128xf32>
    %374 = vector.extract_strided_slice %367 {offsets = [0, 128], sizes = [8, 128], strides = [1, 1]} : vector<8x512xf32> to vector<8x128xf32>
    %375 = arith.negf %374 : vector<8x128xf32>
    %376 = math.exp %375 : vector<8x128xf32>
    %cst_104 = arith.constant 1.000000e+00 : f32
    %377 = vector.broadcast %cst_104 : f32 to vector<8x128xf32>
    %378 = arith.addf %377, %376 : vector<8x128xf32>
    %379 = arith.divf %377, %378 : vector<8x128xf32>
    %380 = vector.extract_strided_slice %367 {offsets = [0, 256], sizes = [8, 128], strides = [1, 1]} : vector<8x512xf32> to vector<8x128xf32>
    %381 = math.tanh %380 : vector<8x128xf32>
    %382 = vector.extract_strided_slice %367 {offsets = [0, 384], sizes = [8, 128], strides = [1, 1]} : vector<8x512xf32> to vector<8x128xf32>
    %383 = arith.negf %382 : vector<8x128xf32>
    %384 = math.exp %383 : vector<8x128xf32>
    %cst_105 = arith.constant 1.000000e+00 : f32
    %385 = vector.broadcast %cst_105 : f32 to vector<8x128xf32>
    %386 = arith.addf %385, %384 : vector<8x128xf32>
    %387 = arith.divf %385, %386 : vector<8x128xf32>
    %388 = arith.mulf %379, %321 : vector<8x128xf32>
    %389 = arith.mulf %373, %381 : vector<8x128xf32>
    %390 = arith.addf %388, %389 : vector<8x128xf32>
    %391 = math.tanh %390 : vector<8x128xf32>
    %392 = arith.mulf %387, %391 : vector<8x128xf32>
    %cst_106 = arith.constant 0.000000e+00 : f32
    %393 = vector.broadcast %cst_106 : f32 to vector<8x128xf32>
    %394 = arith.maximumf %392, %393 : vector<8x128xf32>
    %cst_107 = arith.constant 0.000000e+00 : f32
    %395 = vector.broadcast %cst_107 : f32 to vector<8x128xf32>
    %396 = arith.maximumf %390, %395 : vector<8x128xf32>
    %397 = arith.select %325, %394, %320 : vector<8x128xi1>, vector<8x128xf32>
    %398 = arith.select %325, %396, %321 : vector<8x128xi1>, vector<8x128xf32>
    %c0_108 = arith.constant 0 : index
    %c5 = arith.constant 5 : index
    %c0_109 = arith.constant 0 : index
    %c0_110 = arith.constant 0 : index
    %399 = vector.load %arg2[%c0_108, %c5, %c0_109, %c0_110] : memref<1x10x8x128xf32, #tpu.memory_space<vmem>>, vector<1x1x8x128xf32>
    %400 = vector.shape_cast %399 : vector<1x1x8x128xf32> to vector<8x128xf32>
    %cst_111 = arith.constant 5.000000e-01 : f32
    %401 = vector.broadcast %cst_111 : f32 to vector<8x128xf32>
    %402 = arith.cmpf ogt, %400, %401 : vector<8x128xf32>
    %c40 = arith.constant 40 : index
    %c0_112 = arith.constant 0 : index
    %403 = vector.load %arg9[%c40, %c0_112] : memref<80x512xf32, #tpu.memory_space<vmem>>, vector<8x512xf32>
    %404 = arith.truncf %359 : vector<8x128xf32> to vector<8x128xbf16>
    %cst_113 = arith.constant dense<0.000000e+00> : vector<8x512xf32>
    %405 = tpu.matmul %404, %10, %cst_113 {dimension_numbers = #tpu.dot_dimension_numbers<[1], [0], [0], [1], [0, 0, 1, 1], [], []>} : vector<8x128xbf16>, vector<128x512xbf16>, vector<8x512xf32> -> vector<8x512xf32>
    %406 = arith.addf %403, %405 : vector<8x512xf32>
    %407 = vector.extract_strided_slice %406 {offsets = [0, 0], sizes = [8, 128], strides = [1, 1]} : vector<8x512xf32> to vector<8x128xf32>
    %408 = arith.negf %407 : vector<8x128xf32>
    %409 = math.exp %408 : vector<8x128xf32>
    %cst_114 = arith.constant 1.000000e+00 : f32
    %410 = vector.broadcast %cst_114 : f32 to vector<8x128xf32>
    %411 = arith.addf %410, %409 : vector<8x128xf32>
    %412 = arith.divf %410, %411 : vector<8x128xf32>
    %413 = vector.extract_strided_slice %406 {offsets = [0, 128], sizes = [8, 128], strides = [1, 1]} : vector<8x512xf32> to vector<8x128xf32>
    %414 = arith.negf %413 : vector<8x128xf32>
    %415 = math.exp %414 : vector<8x128xf32>
    %cst_115 = arith.constant 1.000000e+00 : f32
    %416 = vector.broadcast %cst_115 : f32 to vector<8x128xf32>
    %417 = arith.addf %416, %415 : vector<8x128xf32>
    %418 = arith.divf %416, %417 : vector<8x128xf32>
    %419 = vector.extract_strided_slice %406 {offsets = [0, 256], sizes = [8, 128], strides = [1, 1]} : vector<8x512xf32> to vector<8x128xf32>
    %420 = math.tanh %419 : vector<8x128xf32>
    %421 = vector.extract_strided_slice %406 {offsets = [0, 384], sizes = [8, 128], strides = [1, 1]} : vector<8x512xf32> to vector<8x128xf32>
    %422 = arith.negf %421 : vector<8x128xf32>
    %423 = math.exp %422 : vector<8x128xf32>
    %cst_116 = arith.constant 1.000000e+00 : f32
    %424 = vector.broadcast %cst_116 : f32 to vector<8x128xf32>
    %425 = arith.addf %424, %423 : vector<8x128xf32>
    %426 = arith.divf %424, %425 : vector<8x128xf32>
    %427 = arith.mulf %418, %360 : vector<8x128xf32>
    %428 = arith.mulf %412, %420 : vector<8x128xf32>
    %429 = arith.addf %427, %428 : vector<8x128xf32>
    %430 = math.tanh %429 : vector<8x128xf32>
    %431 = arith.mulf %426, %430 : vector<8x128xf32>
    %cst_117 = arith.constant 0.000000e+00 : f32
    %432 = vector.broadcast %cst_117 : f32 to vector<8x128xf32>
    %433 = arith.maximumf %431, %432 : vector<8x128xf32>
    %cst_118 = arith.constant 0.000000e+00 : f32
    %434 = vector.broadcast %cst_118 : f32 to vector<8x128xf32>
    %435 = arith.maximumf %429, %434 : vector<8x128xf32>
    %436 = arith.select %402, %433, %359 : vector<8x128xi1>, vector<8x128xf32>
    %437 = arith.select %402, %435, %360 : vector<8x128xi1>, vector<8x128xf32>
    %438 = arith.truncf %436 : vector<8x128xf32> to vector<8x128xbf16>
    %cst_119 = arith.constant dense<0.000000e+00> : vector<8x512xf32>
    %439 = tpu.matmul %438, %11, %cst_119 {dimension_numbers = #tpu.dot_dimension_numbers<[1], [0], [0], [1], [0, 0, 1, 1], [], []>} : vector<8x128xbf16>, vector<128x512xbf16>, vector<8x512xf32> -> vector<8x512xf32>
    %440 = arith.truncf %397 : vector<8x128xf32> to vector<8x128xbf16>
    %cst_120 = arith.constant dense<0.000000e+00> : vector<8x512xf32>
    %441 = tpu.matmul %440, %12, %cst_120 {dimension_numbers = #tpu.dot_dimension_numbers<[1], [0], [0], [1], [0, 0, 1, 1], [], []>} : vector<8x128xbf16>, vector<128x512xbf16>, vector<8x512xf32> -> vector<8x512xf32>
    %442 = arith.addf %439, %441 : vector<8x512xf32>
    %443 = vector.broadcast %1 : vector<1x512xf32> to vector<8x512xf32>
    %444 = arith.addf %442, %443 : vector<8x512xf32>
    %445 = vector.extract_strided_slice %444 {offsets = [0, 0], sizes = [8, 128], strides = [1, 1]} : vector<8x512xf32> to vector<8x128xf32>
    %446 = arith.negf %445 : vector<8x128xf32>
    %447 = math.exp %446 : vector<8x128xf32>
    %cst_121 = arith.constant 1.000000e+00 : f32
    %448 = vector.broadcast %cst_121 : f32 to vector<8x128xf32>
    %449 = arith.addf %448, %447 : vector<8x128xf32>
    %450 = arith.divf %448, %449 : vector<8x128xf32>
    %451 = vector.extract_strided_slice %444 {offsets = [0, 128], sizes = [8, 128], strides = [1, 1]} : vector<8x512xf32> to vector<8x128xf32>
    %452 = arith.negf %451 : vector<8x128xf32>
    %453 = math.exp %452 : vector<8x128xf32>
    %cst_122 = arith.constant 1.000000e+00 : f32
    %454 = vector.broadcast %cst_122 : f32 to vector<8x128xf32>
    %455 = arith.addf %454, %453 : vector<8x128xf32>
    %456 = arith.divf %454, %455 : vector<8x128xf32>
    %457 = vector.extract_strided_slice %444 {offsets = [0, 256], sizes = [8, 128], strides = [1, 1]} : vector<8x512xf32> to vector<8x128xf32>
    %458 = math.tanh %457 : vector<8x128xf32>
    %459 = vector.extract_strided_slice %444 {offsets = [0, 384], sizes = [8, 128], strides = [1, 1]} : vector<8x512xf32> to vector<8x128xf32>
    %460 = arith.negf %459 : vector<8x128xf32>
    %461 = math.exp %460 : vector<8x128xf32>
    %cst_123 = arith.constant 1.000000e+00 : f32
    %462 = vector.broadcast %cst_123 : f32 to vector<8x128xf32>
    %463 = arith.addf %462, %461 : vector<8x128xf32>
    %464 = arith.divf %462, %463 : vector<8x128xf32>
    %465 = arith.mulf %456, %398 : vector<8x128xf32>
    %466 = arith.mulf %450, %458 : vector<8x128xf32>
    %467 = arith.addf %465, %466 : vector<8x128xf32>
    %468 = math.tanh %467 : vector<8x128xf32>
    %469 = arith.mulf %464, %468 : vector<8x128xf32>
    %cst_124 = arith.constant 0.000000e+00 : f32
    %470 = vector.broadcast %cst_124 : f32 to vector<8x128xf32>
    %471 = arith.maximumf %469, %470 : vector<8x128xf32>
    %cst_125 = arith.constant 0.000000e+00 : f32
    %472 = vector.broadcast %cst_125 : f32 to vector<8x128xf32>
    %473 = arith.maximumf %467, %472 : vector<8x128xf32>
    %474 = arith.select %402, %471, %397 : vector<8x128xi1>, vector<8x128xf32>
    %475 = arith.select %402, %473, %398 : vector<8x128xi1>, vector<8x128xf32>
    %c0_126 = arith.constant 0 : index
    %c6 = arith.constant 6 : index
    %c0_127 = arith.constant 0 : index
    %c0_128 = arith.constant 0 : index
    %476 = vector.load %arg2[%c0_126, %c6, %c0_127, %c0_128] : memref<1x10x8x128xf32, #tpu.memory_space<vmem>>, vector<1x1x8x128xf32>
    %477 = vector.shape_cast %476 : vector<1x1x8x128xf32> to vector<8x128xf32>
    %cst_129 = arith.constant 5.000000e-01 : f32
    %478 = vector.broadcast %cst_129 : f32 to vector<8x128xf32>
    %479 = arith.cmpf ogt, %477, %478 : vector<8x128xf32>
    %c48 = arith.constant 48 : index
    %c0_130 = arith.constant 0 : index
    %480 = vector.load %arg9[%c48, %c0_130] : memref<80x512xf32, #tpu.memory_space<vmem>>, vector<8x512xf32>
    %481 = arith.truncf %436 : vector<8x128xf32> to vector<8x128xbf16>
    %cst_131 = arith.constant dense<0.000000e+00> : vector<8x512xf32>
    %482 = tpu.matmul %481, %10, %cst_131 {dimension_numbers = #tpu.dot_dimension_numbers<[1], [0], [0], [1], [0, 0, 1, 1], [], []>} : vector<8x128xbf16>, vector<128x512xbf16>, vector<8x512xf32> -> vector<8x512xf32>
    %483 = arith.addf %480, %482 : vector<8x512xf32>
    %484 = vector.extract_strided_slice %483 {offsets = [0, 0], sizes = [8, 128], strides = [1, 1]} : vector<8x512xf32> to vector<8x128xf32>
    %485 = arith.negf %484 : vector<8x128xf32>
    %486 = math.exp %485 : vector<8x128xf32>
    %cst_132 = arith.constant 1.000000e+00 : f32
    %487 = vector.broadcast %cst_132 : f32 to vector<8x128xf32>
    %488 = arith.addf %487, %486 : vector<8x128xf32>
    %489 = arith.divf %487, %488 : vector<8x128xf32>
    %490 = vector.extract_strided_slice %483 {offsets = [0, 128], sizes = [8, 128], strides = [1, 1]} : vector<8x512xf32> to vector<8x128xf32>
    %491 = arith.negf %490 : vector<8x128xf32>
    %492 = math.exp %491 : vector<8x128xf32>
    %cst_133 = arith.constant 1.000000e+00 : f32
    %493 = vector.broadcast %cst_133 : f32 to vector<8x128xf32>
    %494 = arith.addf %493, %492 : vector<8x128xf32>
    %495 = arith.divf %493, %494 : vector<8x128xf32>
    %496 = vector.extract_strided_slice %483 {offsets = [0, 256], sizes = [8, 128], strides = [1, 1]} : vector<8x512xf32> to vector<8x128xf32>
    %497 = math.tanh %496 : vector<8x128xf32>
    %498 = vector.extract_strided_slice %483 {offsets = [0, 384], sizes = [8, 128], strides = [1, 1]} : vector<8x512xf32> to vector<8x128xf32>
    %499 = arith.negf %498 : vector<8x128xf32>
    %500 = math.exp %499 : vector<8x128xf32>
    %cst_134 = arith.constant 1.000000e+00 : f32
    %501 = vector.broadcast %cst_134 : f32 to vector<8x128xf32>
    %502 = arith.addf %501, %500 : vector<8x128xf32>
    %503 = arith.divf %501, %502 : vector<8x128xf32>
    %504 = arith.mulf %495, %437 : vector<8x128xf32>
    %505 = arith.mulf %489, %497 : vector<8x128xf32>
    %506 = arith.addf %504, %505 : vector<8x128xf32>
    %507 = math.tanh %506 : vector<8x128xf32>
    %508 = arith.mulf %503, %507 : vector<8x128xf32>
    %cst_135 = arith.constant 0.000000e+00 : f32
    %509 = vector.broadcast %cst_135 : f32 to vector<8x128xf32>
    %510 = arith.maximumf %508, %509 : vector<8x128xf32>
    %cst_136 = arith.constant 0.000000e+00 : f32
    %511 = vector.broadcast %cst_136 : f32 to vector<8x128xf32>
    %512 = arith.maximumf %506, %511 : vector<8x128xf32>
    %513 = arith.select %479, %510, %436 : vector<8x128xi1>, vector<8x128xf32>
    %514 = arith.select %479, %512, %437 : vector<8x128xi1>, vector<8x128xf32>
    %515 = arith.truncf %513 : vector<8x128xf32> to vector<8x128xbf16>
    %cst_137 = arith.constant dense<0.000000e+00> : vector<8x512xf32>
    %516 = tpu.matmul %515, %11, %cst_137 {dimension_numbers = #tpu.dot_dimension_numbers<[1], [0], [0], [1], [0, 0, 1, 1], [], []>} : vector<8x128xbf16>, vector<128x512xbf16>, vector<8x512xf32> -> vector<8x512xf32>
    %517 = arith.truncf %474 : vector<8x128xf32> to vector<8x128xbf16>
    %cst_138 = arith.constant dense<0.000000e+00> : vector<8x512xf32>
    %518 = tpu.matmul %517, %12, %cst_138 {dimension_numbers = #tpu.dot_dimension_numbers<[1], [0], [0], [1], [0, 0, 1, 1], [], []>} : vector<8x128xbf16>, vector<128x512xbf16>, vector<8x512xf32> -> vector<8x512xf32>
    %519 = arith.addf %516, %518 : vector<8x512xf32>
    %520 = vector.broadcast %1 : vector<1x512xf32> to vector<8x512xf32>
    %521 = arith.addf %519, %520 : vector<8x512xf32>
    %522 = vector.extract_strided_slice %521 {offsets = [0, 0], sizes = [8, 128], strides = [1, 1]} : vector<8x512xf32> to vector<8x128xf32>
    %523 = arith.negf %522 : vector<8x128xf32>
    %524 = math.exp %523 : vector<8x128xf32>
    %cst_139 = arith.constant 1.000000e+00 : f32
    %525 = vector.broadcast %cst_139 : f32 to vector<8x128xf32>
    %526 = arith.addf %525, %524 : vector<8x128xf32>
    %527 = arith.divf %525, %526 : vector<8x128xf32>
    %528 = vector.extract_strided_slice %521 {offsets = [0, 128], sizes = [8, 128], strides = [1, 1]} : vector<8x512xf32> to vector<8x128xf32>
    %529 = arith.negf %528 : vector<8x128xf32>
    %530 = math.exp %529 : vector<8x128xf32>
    %cst_140 = arith.constant 1.000000e+00 : f32
    %531 = vector.broadcast %cst_140 : f32 to vector<8x128xf32>
    %532 = arith.addf %531, %530 : vector<8x128xf32>
    %533 = arith.divf %531, %532 : vector<8x128xf32>
    %534 = vector.extract_strided_slice %521 {offsets = [0, 256], sizes = [8, 128], strides = [1, 1]} : vector<8x512xf32> to vector<8x128xf32>
    %535 = math.tanh %534 : vector<8x128xf32>
    %536 = vector.extract_strided_slice %521 {offsets = [0, 384], sizes = [8, 128], strides = [1, 1]} : vector<8x512xf32> to vector<8x128xf32>
    %537 = arith.negf %536 : vector<8x128xf32>
    %538 = math.exp %537 : vector<8x128xf32>
    %cst_141 = arith.constant 1.000000e+00 : f32
    %539 = vector.broadcast %cst_141 : f32 to vector<8x128xf32>
    %540 = arith.addf %539, %538 : vector<8x128xf32>
    %541 = arith.divf %539, %540 : vector<8x128xf32>
    %542 = arith.mulf %533, %475 : vector<8x128xf32>
    %543 = arith.mulf %527, %535 : vector<8x128xf32>
    %544 = arith.addf %542, %543 : vector<8x128xf32>
    %545 = math.tanh %544 : vector<8x128xf32>
    %546 = arith.mulf %541, %545 : vector<8x128xf32>
    %cst_142 = arith.constant 0.000000e+00 : f32
    %547 = vector.broadcast %cst_142 : f32 to vector<8x128xf32>
    %548 = arith.maximumf %546, %547 : vector<8x128xf32>
    %cst_143 = arith.constant 0.000000e+00 : f32
    %549 = vector.broadcast %cst_143 : f32 to vector<8x128xf32>
    %550 = arith.maximumf %544, %549 : vector<8x128xf32>
    %551 = arith.select %479, %548, %474 : vector<8x128xi1>, vector<8x128xf32>
    %552 = arith.select %479, %550, %475 : vector<8x128xi1>, vector<8x128xf32>
    %c0_144 = arith.constant 0 : index
    %c7 = arith.constant 7 : index
    %c0_145 = arith.constant 0 : index
    %c0_146 = arith.constant 0 : index
    %553 = vector.load %arg2[%c0_144, %c7, %c0_145, %c0_146] : memref<1x10x8x128xf32, #tpu.memory_space<vmem>>, vector<1x1x8x128xf32>
    %554 = vector.shape_cast %553 : vector<1x1x8x128xf32> to vector<8x128xf32>
    %cst_147 = arith.constant 5.000000e-01 : f32
    %555 = vector.broadcast %cst_147 : f32 to vector<8x128xf32>
    %556 = arith.cmpf ogt, %554, %555 : vector<8x128xf32>
    %c56 = arith.constant 56 : index
    %c0_148 = arith.constant 0 : index
    %557 = vector.load %arg9[%c56, %c0_148] : memref<80x512xf32, #tpu.memory_space<vmem>>, vector<8x512xf32>
    %558 = arith.truncf %513 : vector<8x128xf32> to vector<8x128xbf16>
    %cst_149 = arith.constant dense<0.000000e+00> : vector<8x512xf32>
    %559 = tpu.matmul %558, %10, %cst_149 {dimension_numbers = #tpu.dot_dimension_numbers<[1], [0], [0], [1], [0, 0, 1, 1], [], []>} : vector<8x128xbf16>, vector<128x512xbf16>, vector<8x512xf32> -> vector<8x512xf32>
    %560 = arith.addf %557, %559 : vector<8x512xf32>
    %561 = vector.extract_strided_slice %560 {offsets = [0, 0], sizes = [8, 128], strides = [1, 1]} : vector<8x512xf32> to vector<8x128xf32>
    %562 = arith.negf %561 : vector<8x128xf32>
    %563 = math.exp %562 : vector<8x128xf32>
    %cst_150 = arith.constant 1.000000e+00 : f32
    %564 = vector.broadcast %cst_150 : f32 to vector<8x128xf32>
    %565 = arith.addf %564, %563 : vector<8x128xf32>
    %566 = arith.divf %564, %565 : vector<8x128xf32>
    %567 = vector.extract_strided_slice %560 {offsets = [0, 128], sizes = [8, 128], strides = [1, 1]} : vector<8x512xf32> to vector<8x128xf32>
    %568 = arith.negf %567 : vector<8x128xf32>
    %569 = math.exp %568 : vector<8x128xf32>
    %cst_151 = arith.constant 1.000000e+00 : f32
    %570 = vector.broadcast %cst_151 : f32 to vector<8x128xf32>
    %571 = arith.addf %570, %569 : vector<8x128xf32>
    %572 = arith.divf %570, %571 : vector<8x128xf32>
    %573 = vector.extract_strided_slice %560 {offsets = [0, 256], sizes = [8, 128], strides = [1, 1]} : vector<8x512xf32> to vector<8x128xf32>
    %574 = math.tanh %573 : vector<8x128xf32>
    %575 = vector.extract_strided_slice %560 {offsets = [0, 384], sizes = [8, 128], strides = [1, 1]} : vector<8x512xf32> to vector<8x128xf32>
    %576 = arith.negf %575 : vector<8x128xf32>
    %577 = math.exp %576 : vector<8x128xf32>
    %cst_152 = arith.constant 1.000000e+00 : f32
    %578 = vector.broadcast %cst_152 : f32 to vector<8x128xf32>
    %579 = arith.addf %578, %577 : vector<8x128xf32>
    %580 = arith.divf %578, %579 : vector<8x128xf32>
    %581 = arith.mulf %572, %514 : vector<8x128xf32>
    %582 = arith.mulf %566, %574 : vector<8x128xf32>
    %583 = arith.addf %581, %582 : vector<8x128xf32>
    %584 = math.tanh %583 : vector<8x128xf32>
    %585 = arith.mulf %580, %584 : vector<8x128xf32>
    %cst_153 = arith.constant 0.000000e+00 : f32
    %586 = vector.broadcast %cst_153 : f32 to vector<8x128xf32>
    %587 = arith.maximumf %585, %586 : vector<8x128xf32>
    %cst_154 = arith.constant 0.000000e+00 : f32
    %588 = vector.broadcast %cst_154 : f32 to vector<8x128xf32>
    %589 = arith.maximumf %583, %588 : vector<8x128xf32>
    %590 = arith.select %556, %587, %513 : vector<8x128xi1>, vector<8x128xf32>
    %591 = arith.select %556, %589, %514 : vector<8x128xi1>, vector<8x128xf32>
    %592 = arith.truncf %590 : vector<8x128xf32> to vector<8x128xbf16>
    %cst_155 = arith.constant dense<0.000000e+00> : vector<8x512xf32>
    %593 = tpu.matmul %592, %11, %cst_155 {dimension_numbers = #tpu.dot_dimension_numbers<[1], [0], [0], [1], [0, 0, 1, 1], [], []>} : vector<8x128xbf16>, vector<128x512xbf16>, vector<8x512xf32> -> vector<8x512xf32>
    %594 = arith.truncf %551 : vector<8x128xf32> to vector<8x128xbf16>
    %cst_156 = arith.constant dense<0.000000e+00> : vector<8x512xf32>
    %595 = tpu.matmul %594, %12, %cst_156 {dimension_numbers = #tpu.dot_dimension_numbers<[1], [0], [0], [1], [0, 0, 1, 1], [], []>} : vector<8x128xbf16>, vector<128x512xbf16>, vector<8x512xf32> -> vector<8x512xf32>
    %596 = arith.addf %593, %595 : vector<8x512xf32>
    %597 = vector.broadcast %1 : vector<1x512xf32> to vector<8x512xf32>
    %598 = arith.addf %596, %597 : vector<8x512xf32>
    %599 = vector.extract_strided_slice %598 {offsets = [0, 0], sizes = [8, 128], strides = [1, 1]} : vector<8x512xf32> to vector<8x128xf32>
    %600 = arith.negf %599 : vector<8x128xf32>
    %601 = math.exp %600 : vector<8x128xf32>
    %cst_157 = arith.constant 1.000000e+00 : f32
    %602 = vector.broadcast %cst_157 : f32 to vector<8x128xf32>
    %603 = arith.addf %602, %601 : vector<8x128xf32>
    %604 = arith.divf %602, %603 : vector<8x128xf32>
    %605 = vector.extract_strided_slice %598 {offsets = [0, 128], sizes = [8, 128], strides = [1, 1]} : vector<8x512xf32> to vector<8x128xf32>
    %606 = arith.negf %605 : vector<8x128xf32>
    %607 = math.exp %606 : vector<8x128xf32>
    %cst_158 = arith.constant 1.000000e+00 : f32
    %608 = vector.broadcast %cst_158 : f32 to vector<8x128xf32>
    %609 = arith.addf %608, %607 : vector<8x128xf32>
    %610 = arith.divf %608, %609 : vector<8x128xf32>
    %611 = vector.extract_strided_slice %598 {offsets = [0, 256], sizes = [8, 128], strides = [1, 1]} : vector<8x512xf32> to vector<8x128xf32>
    %612 = math.tanh %611 : vector<8x128xf32>
    %613 = vector.extract_strided_slice %598 {offsets = [0, 384], sizes = [8, 128], strides = [1, 1]} : vector<8x512xf32> to vector<8x128xf32>
    %614 = arith.negf %613 : vector<8x128xf32>
    %615 = math.exp %614 : vector<8x128xf32>
    %cst_159 = arith.constant 1.000000e+00 : f32
    %616 = vector.broadcast %cst_159 : f32 to vector<8x128xf32>
    %617 = arith.addf %616, %615 : vector<8x128xf32>
    %618 = arith.divf %616, %617 : vector<8x128xf32>
    %619 = arith.mulf %610, %552 : vector<8x128xf32>
    %620 = arith.mulf %604, %612 : vector<8x128xf32>
    %621 = arith.addf %619, %620 : vector<8x128xf32>
    %622 = math.tanh %621 : vector<8x128xf32>
    %623 = arith.mulf %618, %622 : vector<8x128xf32>
    %cst_160 = arith.constant 0.000000e+00 : f32
    %624 = vector.broadcast %cst_160 : f32 to vector<8x128xf32>
    %625 = arith.maximumf %623, %624 : vector<8x128xf32>
    %cst_161 = arith.constant 0.000000e+00 : f32
    %626 = vector.broadcast %cst_161 : f32 to vector<8x128xf32>
    %627 = arith.maximumf %621, %626 : vector<8x128xf32>
    %628 = arith.select %556, %625, %551 : vector<8x128xi1>, vector<8x128xf32>
    %629 = arith.select %556, %627, %552 : vector<8x128xi1>, vector<8x128xf32>
    %c0_162 = arith.constant 0 : index
    %c8_163 = arith.constant 8 : index
    %c0_164 = arith.constant 0 : index
    %c0_165 = arith.constant 0 : index
    %630 = vector.load %arg2[%c0_162, %c8_163, %c0_164, %c0_165] : memref<1x10x8x128xf32, #tpu.memory_space<vmem>>, vector<1x1x8x128xf32>
    %631 = vector.shape_cast %630 : vector<1x1x8x128xf32> to vector<8x128xf32>
    %cst_166 = arith.constant 5.000000e-01 : f32
    %632 = vector.broadcast %cst_166 : f32 to vector<8x128xf32>
    %633 = arith.cmpf ogt, %631, %632 : vector<8x128xf32>
    %c64 = arith.constant 64 : index
    %c0_167 = arith.constant 0 : index
    %634 = vector.load %arg9[%c64, %c0_167] : memref<80x512xf32, #tpu.memory_space<vmem>>, vector<8x512xf32>
    %635 = arith.truncf %590 : vector<8x128xf32> to vector<8x128xbf16>
    %cst_168 = arith.constant dense<0.000000e+00> : vector<8x512xf32>
    %636 = tpu.matmul %635, %10, %cst_168 {dimension_numbers = #tpu.dot_dimension_numbers<[1], [0], [0], [1], [0, 0, 1, 1], [], []>} : vector<8x128xbf16>, vector<128x512xbf16>, vector<8x512xf32> -> vector<8x512xf32>
    %637 = arith.addf %634, %636 : vector<8x512xf32>
    %638 = vector.extract_strided_slice %637 {offsets = [0, 0], sizes = [8, 128], strides = [1, 1]} : vector<8x512xf32> to vector<8x128xf32>
    %639 = arith.negf %638 : vector<8x128xf32>
    %640 = math.exp %639 : vector<8x128xf32>
    %cst_169 = arith.constant 1.000000e+00 : f32
    %641 = vector.broadcast %cst_169 : f32 to vector<8x128xf32>
    %642 = arith.addf %641, %640 : vector<8x128xf32>
    %643 = arith.divf %641, %642 : vector<8x128xf32>
    %644 = vector.extract_strided_slice %637 {offsets = [0, 128], sizes = [8, 128], strides = [1, 1]} : vector<8x512xf32> to vector<8x128xf32>
    %645 = arith.negf %644 : vector<8x128xf32>
    %646 = math.exp %645 : vector<8x128xf32>
    %cst_170 = arith.constant 1.000000e+00 : f32
    %647 = vector.broadcast %cst_170 : f32 to vector<8x128xf32>
    %648 = arith.addf %647, %646 : vector<8x128xf32>
    %649 = arith.divf %647, %648 : vector<8x128xf32>
    %650 = vector.extract_strided_slice %637 {offsets = [0, 256], sizes = [8, 128], strides = [1, 1]} : vector<8x512xf32> to vector<8x128xf32>
    %651 = math.tanh %650 : vector<8x128xf32>
    %652 = vector.extract_strided_slice %637 {offsets = [0, 384], sizes = [8, 128], strides = [1, 1]} : vector<8x512xf32> to vector<8x128xf32>
    %653 = arith.negf %652 : vector<8x128xf32>
    %654 = math.exp %653 : vector<8x128xf32>
    %cst_171 = arith.constant 1.000000e+00 : f32
    %655 = vector.broadcast %cst_171 : f32 to vector<8x128xf32>
    %656 = arith.addf %655, %654 : vector<8x128xf32>
    %657 = arith.divf %655, %656 : vector<8x128xf32>
    %658 = arith.mulf %649, %591 : vector<8x128xf32>
    %659 = arith.mulf %643, %651 : vector<8x128xf32>
    %660 = arith.addf %658, %659 : vector<8x128xf32>
    %661 = math.tanh %660 : vector<8x128xf32>
    %662 = arith.mulf %657, %661 : vector<8x128xf32>
    %cst_172 = arith.constant 0.000000e+00 : f32
    %663 = vector.broadcast %cst_172 : f32 to vector<8x128xf32>
    %664 = arith.maximumf %662, %663 : vector<8x128xf32>
    %cst_173 = arith.constant 0.000000e+00 : f32
    %665 = vector.broadcast %cst_173 : f32 to vector<8x128xf32>
    %666 = arith.maximumf %660, %665 : vector<8x128xf32>
    %667 = arith.select %633, %664, %590 : vector<8x128xi1>, vector<8x128xf32>
    %668 = arith.select %633, %666, %591 : vector<8x128xi1>, vector<8x128xf32>
    %669 = arith.truncf %667 : vector<8x128xf32> to vector<8x128xbf16>
    %cst_174 = arith.constant dense<0.000000e+00> : vector<8x512xf32>
    %670 = tpu.matmul %669, %11, %cst_174 {dimension_numbers = #tpu.dot_dimension_numbers<[1], [0], [0], [1], [0, 0, 1, 1], [], []>} : vector<8x128xbf16>, vector<128x512xbf16>, vector<8x512xf32> -> vector<8x512xf32>
    %671 = arith.truncf %628 : vector<8x128xf32> to vector<8x128xbf16>
    %cst_175 = arith.constant dense<0.000000e+00> : vector<8x512xf32>
    %672 = tpu.matmul %671, %12, %cst_175 {dimension_numbers = #tpu.dot_dimension_numbers<[1], [0], [0], [1], [0, 0, 1, 1], [], []>} : vector<8x128xbf16>, vector<128x512xbf16>, vector<8x512xf32> -> vector<8x512xf32>
    %673 = arith.addf %670, %672 : vector<8x512xf32>
    %674 = vector.broadcast %1 : vector<1x512xf32> to vector<8x512xf32>
    %675 = arith.addf %673, %674 : vector<8x512xf32>
    %676 = vector.extract_strided_slice %675 {offsets = [0, 0], sizes = [8, 128], strides = [1, 1]} : vector<8x512xf32> to vector<8x128xf32>
    %677 = arith.negf %676 : vector<8x128xf32>
    %678 = math.exp %677 : vector<8x128xf32>
    %cst_176 = arith.constant 1.000000e+00 : f32
    %679 = vector.broadcast %cst_176 : f32 to vector<8x128xf32>
    %680 = arith.addf %679, %678 : vector<8x128xf32>
    %681 = arith.divf %679, %680 : vector<8x128xf32>
    %682 = vector.extract_strided_slice %675 {offsets = [0, 128], sizes = [8, 128], strides = [1, 1]} : vector<8x512xf32> to vector<8x128xf32>
    %683 = arith.negf %682 : vector<8x128xf32>
    %684 = math.exp %683 : vector<8x128xf32>
    %cst_177 = arith.constant 1.000000e+00 : f32
    %685 = vector.broadcast %cst_177 : f32 to vector<8x128xf32>
    %686 = arith.addf %685, %684 : vector<8x128xf32>
    %687 = arith.divf %685, %686 : vector<8x128xf32>
    %688 = vector.extract_strided_slice %675 {offsets = [0, 256], sizes = [8, 128], strides = [1, 1]} : vector<8x512xf32> to vector<8x128xf32>
    %689 = math.tanh %688 : vector<8x128xf32>
    %690 = vector.extract_strided_slice %675 {offsets = [0, 384], sizes = [8, 128], strides = [1, 1]} : vector<8x512xf32> to vector<8x128xf32>
    %691 = arith.negf %690 : vector<8x128xf32>
    %692 = math.exp %691 : vector<8x128xf32>
    %cst_178 = arith.constant 1.000000e+00 : f32
    %693 = vector.broadcast %cst_178 : f32 to vector<8x128xf32>
    %694 = arith.addf %693, %692 : vector<8x128xf32>
    %695 = arith.divf %693, %694 : vector<8x128xf32>
    %696 = arith.mulf %687, %629 : vector<8x128xf32>
    %697 = arith.mulf %681, %689 : vector<8x128xf32>
    %698 = arith.addf %696, %697 : vector<8x128xf32>
    %699 = math.tanh %698 : vector<8x128xf32>
    %700 = arith.mulf %695, %699 : vector<8x128xf32>
    %cst_179 = arith.constant 0.000000e+00 : f32
    %701 = vector.broadcast %cst_179 : f32 to vector<8x128xf32>
    %702 = arith.maximumf %700, %701 : vector<8x128xf32>
    %cst_180 = arith.constant 0.000000e+00 : f32
    %703 = vector.broadcast %cst_180 : f32 to vector<8x128xf32>
    %704 = arith.maximumf %698, %703 : vector<8x128xf32>
    %705 = arith.select %633, %702, %628 : vector<8x128xi1>, vector<8x128xf32>
    %706 = arith.select %633, %704, %629 : vector<8x128xi1>, vector<8x128xf32>
    %c0_181 = arith.constant 0 : index
    %c9 = arith.constant 9 : index
    %c0_182 = arith.constant 0 : index
    %c0_183 = arith.constant 0 : index
    %707 = vector.load %arg2[%c0_181, %c9, %c0_182, %c0_183] : memref<1x10x8x128xf32, #tpu.memory_space<vmem>>, vector<1x1x8x128xf32>
    %708 = vector.shape_cast %707 : vector<1x1x8x128xf32> to vector<8x128xf32>
    %cst_184 = arith.constant 5.000000e-01 : f32
    %709 = vector.broadcast %cst_184 : f32 to vector<8x128xf32>
    %710 = arith.cmpf ogt, %708, %709 : vector<8x128xf32>
    %c72 = arith.constant 72 : index
    %c0_185 = arith.constant 0 : index
    %711 = vector.load %arg9[%c72, %c0_185] : memref<80x512xf32, #tpu.memory_space<vmem>>, vector<8x512xf32>
    %712 = arith.truncf %667 : vector<8x128xf32> to vector<8x128xbf16>
    %cst_186 = arith.constant dense<0.000000e+00> : vector<8x512xf32>
    %713 = tpu.matmul %712, %10, %cst_186 {dimension_numbers = #tpu.dot_dimension_numbers<[1], [0], [0], [1], [0, 0, 1, 1], [], []>} : vector<8x128xbf16>, vector<128x512xbf16>, vector<8x512xf32> -> vector<8x512xf32>
    %714 = arith.addf %711, %713 : vector<8x512xf32>
    %715 = vector.extract_strided_slice %714 {offsets = [0, 0], sizes = [8, 128], strides = [1, 1]} : vector<8x512xf32> to vector<8x128xf32>
    %716 = arith.negf %715 : vector<8x128xf32>
    %717 = math.exp %716 : vector<8x128xf32>
    %cst_187 = arith.constant 1.000000e+00 : f32
    %718 = vector.broadcast %cst_187 : f32 to vector<8x128xf32>
    %719 = arith.addf %718, %717 : vector<8x128xf32>
    %720 = arith.divf %718, %719 : vector<8x128xf32>
    %721 = vector.extract_strided_slice %714 {offsets = [0, 128], sizes = [8, 128], strides = [1, 1]} : vector<8x512xf32> to vector<8x128xf32>
    %722 = arith.negf %721 : vector<8x128xf32>
    %723 = math.exp %722 : vector<8x128xf32>
    %cst_188 = arith.constant 1.000000e+00 : f32
    %724 = vector.broadcast %cst_188 : f32 to vector<8x128xf32>
    %725 = arith.addf %724, %723 : vector<8x128xf32>
    %726 = arith.divf %724, %725 : vector<8x128xf32>
    %727 = vector.extract_strided_slice %714 {offsets = [0, 256], sizes = [8, 128], strides = [1, 1]} : vector<8x512xf32> to vector<8x128xf32>
    %728 = math.tanh %727 : vector<8x128xf32>
    %729 = vector.extract_strided_slice %714 {offsets = [0, 384], sizes = [8, 128], strides = [1, 1]} : vector<8x512xf32> to vector<8x128xf32>
    %730 = arith.negf %729 : vector<8x128xf32>
    %731 = math.exp %730 : vector<8x128xf32>
    %cst_189 = arith.constant 1.000000e+00 : f32
    %732 = vector.broadcast %cst_189 : f32 to vector<8x128xf32>
    %733 = arith.addf %732, %731 : vector<8x128xf32>
    %734 = arith.divf %732, %733 : vector<8x128xf32>
    %735 = arith.mulf %726, %668 : vector<8x128xf32>
    %736 = arith.mulf %720, %728 : vector<8x128xf32>
    %737 = arith.addf %735, %736 : vector<8x128xf32>
    %738 = math.tanh %737 : vector<8x128xf32>
    %739 = arith.mulf %734, %738 : vector<8x128xf32>
    %cst_190 = arith.constant 0.000000e+00 : f32
    %740 = vector.broadcast %cst_190 : f32 to vector<8x128xf32>
    %741 = arith.maximumf %739, %740 : vector<8x128xf32>
    %742 = arith.select %710, %741, %667 : vector<8x128xi1>, vector<8x128xf32>
    %743 = arith.truncf %742 : vector<8x128xf32> to vector<8x128xbf16>
    %cst_191 = arith.constant dense<0.000000e+00> : vector<8x512xf32>
    %744 = tpu.matmul %743, %11, %cst_191 {dimension_numbers = #tpu.dot_dimension_numbers<[1], [0], [0], [1], [0, 0, 1, 1], [], []>} : vector<8x128xbf16>, vector<128x512xbf16>, vector<8x512xf32> -> vector<8x512xf32>
    %745 = arith.truncf %705 : vector<8x128xf32> to vector<8x128xbf16>
    %cst_192 = arith.constant dense<0.000000e+00> : vector<8x512xf32>
    %746 = tpu.matmul %745, %12, %cst_192 {dimension_numbers = #tpu.dot_dimension_numbers<[1], [0], [0], [1], [0, 0, 1, 1], [], []>} : vector<8x128xbf16>, vector<128x512xbf16>, vector<8x512xf32> -> vector<8x512xf32>
    %747 = arith.addf %744, %746 : vector<8x512xf32>
    %748 = vector.broadcast %1 : vector<1x512xf32> to vector<8x512xf32>
    %749 = arith.addf %747, %748 : vector<8x512xf32>
    %750 = vector.extract_strided_slice %749 {offsets = [0, 0], sizes = [8, 128], strides = [1, 1]} : vector<8x512xf32> to vector<8x128xf32>
    %751 = arith.negf %750 : vector<8x128xf32>
    %752 = math.exp %751 : vector<8x128xf32>
    %cst_193 = arith.constant 1.000000e+00 : f32
    %753 = vector.broadcast %cst_193 : f32 to vector<8x128xf32>
    %754 = arith.addf %753, %752 : vector<8x128xf32>
    %755 = arith.divf %753, %754 : vector<8x128xf32>
    %756 = vector.extract_strided_slice %749 {offsets = [0, 128], sizes = [8, 128], strides = [1, 1]} : vector<8x512xf32> to vector<8x128xf32>
    %757 = arith.negf %756 : vector<8x128xf32>
    %758 = math.exp %757 : vector<8x128xf32>
    %cst_194 = arith.constant 1.000000e+00 : f32
    %759 = vector.broadcast %cst_194 : f32 to vector<8x128xf32>
    %760 = arith.addf %759, %758 : vector<8x128xf32>
    %761 = arith.divf %759, %760 : vector<8x128xf32>
    %762 = vector.extract_strided_slice %749 {offsets = [0, 256], sizes = [8, 128], strides = [1, 1]} : vector<8x512xf32> to vector<8x128xf32>
    %763 = math.tanh %762 : vector<8x128xf32>
    %764 = vector.extract_strided_slice %749 {offsets = [0, 384], sizes = [8, 128], strides = [1, 1]} : vector<8x512xf32> to vector<8x128xf32>
    %765 = arith.negf %764 : vector<8x128xf32>
    %766 = math.exp %765 : vector<8x128xf32>
    %cst_195 = arith.constant 1.000000e+00 : f32
    %767 = vector.broadcast %cst_195 : f32 to vector<8x128xf32>
    %768 = arith.addf %767, %766 : vector<8x128xf32>
    %769 = arith.divf %767, %768 : vector<8x128xf32>
    %770 = arith.mulf %761, %706 : vector<8x128xf32>
    %771 = arith.mulf %755, %763 : vector<8x128xf32>
    %772 = arith.addf %770, %771 : vector<8x128xf32>
    %773 = math.tanh %772 : vector<8x128xf32>
    %774 = arith.mulf %769, %773 : vector<8x128xf32>
    %cst_196 = arith.constant 0.000000e+00 : f32
    %775 = vector.broadcast %cst_196 : f32 to vector<8x128xf32>
    %776 = arith.maximumf %774, %775 : vector<8x128xf32>
    %777 = arith.select %710, %776, %705 : vector<8x128xi1>, vector<8x128xf32>
    %778 = arith.truncf %777 : vector<8x128xf32> to vector<8x128xbf16>
    %c0_197 = arith.constant 0 : index
    %c0_198 = arith.constant 0 : index
    %c0_199 = arith.constant 0 : index
    %779 = vector.load %arg6[%c0_197, %c0_198, %c0_199] : memref<3x128x128xbf16, #tpu.memory_space<vmem>>, vector<1x128x128xbf16>
    %780 = vector.shape_cast %779 : vector<1x128x128xbf16> to vector<128x128xbf16>
    %cst_200 = arith.constant dense<0.000000e+00> : vector<8x128xf32>
    %781 = tpu.matmul %778, %780, %cst_200 {dimension_numbers = #tpu.dot_dimension_numbers<[1], [0], [0], [1], [0, 0, 1, 1], [], []>} : vector<8x128xbf16>, vector<128x128xbf16>, vector<8x128xf32> -> vector<8x128xf32>
    %c0_201 = arith.constant 0 : index
    %c0_202 = arith.constant 0 : index
    %782 = vector.load %arg7[%c0_201, %c0_202] : memref<8x128xf32, #tpu.memory_space<vmem>>, vector<1x128xf32>
    %783 = vector.broadcast %782 : vector<1x128xf32> to vector<8x128xf32>
    %784 = arith.addf %781, %783 : vector<8x128xf32>
    %cst_203 = arith.constant 0.000000e+00 : f32
    %785 = vector.broadcast %cst_203 : f32 to vector<8x128xf32>
    %786 = arith.maximumf %784, %785 : vector<8x128xf32>
    %787 = arith.truncf %786 : vector<8x128xf32> to vector<8x128xbf16>
    %c1_204 = arith.constant 1 : index
    %c0_205 = arith.constant 0 : index
    %c0_206 = arith.constant 0 : index
    %788 = vector.load %arg6[%c1_204, %c0_205, %c0_206] : memref<3x128x128xbf16, #tpu.memory_space<vmem>>, vector<1x128x128xbf16>
    %789 = vector.shape_cast %788 : vector<1x128x128xbf16> to vector<128x128xbf16>
    %cst_207 = arith.constant dense<0.000000e+00> : vector<8x128xf32>
    %790 = tpu.matmul %787, %789, %cst_207 {dimension_numbers = #tpu.dot_dimension_numbers<[1], [0], [0], [1], [0, 0, 1, 1], [], []>} : vector<8x128xbf16>, vector<128x128xbf16>, vector<8x128xf32> -> vector<8x128xf32>
    %c1_208 = arith.constant 1 : index
    %c0_209 = arith.constant 0 : index
    %791 = vector.load %arg7[%c1_208, %c0_209] : memref<8x128xf32, #tpu.memory_space<vmem>>, vector<1x128xf32>
    %792 = vector.broadcast %791 : vector<1x128xf32> to vector<8x128xf32>
    %793 = arith.addf %790, %792 : vector<8x128xf32>
    %cst_210 = arith.constant 0.000000e+00 : f32
    %794 = vector.broadcast %cst_210 : f32 to vector<8x128xf32>
    %795 = arith.maximumf %793, %794 : vector<8x128xf32>
    %796 = arith.truncf %795 : vector<8x128xf32> to vector<8x128xbf16>
    %c2_211 = arith.constant 2 : index
    %c0_212 = arith.constant 0 : index
    %c0_213 = arith.constant 0 : index
    %797 = vector.load %arg6[%c2_211, %c0_212, %c0_213] : memref<3x128x128xbf16, #tpu.memory_space<vmem>>, vector<1x128x128xbf16>
    %798 = vector.shape_cast %797 : vector<1x128x128xbf16> to vector<128x128xbf16>
    %cst_214 = arith.constant dense<0.000000e+00> : vector<8x128xf32>
    %799 = tpu.matmul %796, %798, %cst_214 {dimension_numbers = #tpu.dot_dimension_numbers<[1], [0], [0], [1], [0, 0, 1, 1], [], []>} : vector<8x128xbf16>, vector<128x128xbf16>, vector<8x128xf32> -> vector<8x128xf32>
    %c2_215 = arith.constant 2 : index
    %c0_216 = arith.constant 0 : index
    %800 = vector.load %arg7[%c2_215, %c0_216] : memref<8x128xf32, #tpu.memory_space<vmem>>, vector<1x128xf32>
    %801 = vector.broadcast %800 : vector<1x128xf32> to vector<8x128xf32>
    %802 = arith.addf %799, %801 : vector<8x128xf32>
    %803 = arith.negf %802 : vector<8x128xf32>
    %804 = math.exp %803 : vector<8x128xf32>
    %cst_217 = arith.constant 1.000000e+00 : f32
    %805 = vector.broadcast %cst_217 : f32 to vector<8x128xf32>
    %806 = arith.addf %805, %804 : vector<8x128xf32>
    %807 = arith.divf %805, %806 : vector<8x128xf32>
    %808 = vector.shape_cast %807 : vector<8x128xf32> to vector<1x8x128xf32>
    %c0_218 = arith.constant 0 : index
    %c0_219 = arith.constant 0 : index
    %c0_220 = arith.constant 0 : index
    %809 = vector.load %arg8[%c0_218, %c0_219, %c0_220] : memref<1x8x128xf32, #tpu.memory_space<vmem>>, vector<1x8x128xf32>
    tpu.vector_store %arg8[%c0_218, %c0_219, %c0_220], %808 {strides = array<i32>} : memref<1x8x128xf32, #tpu.memory_space<vmem>>, vector<1x8x128xf32>,
    return
  }
  func.func @transform_0(%arg0: i32) -> (i32, i32, i32) {
    %c0_i32 = arith.constant 0 : i32
    %c0_i32_0 = arith.constant 0 : i32
    %c0_i32_1 = arith.constant 0 : i32
    return %arg0, %c0_i32, %c0_i32_0 : i32, i32, i32
  }
  func.func @transform_1(%arg0: i32) -> (i32, i32, i32, i32) {
    %c0_i32 = arith.constant 0 : i32
    %c0_i32_0 = arith.constant 0 : i32
    %c0_i32_1 = arith.constant 0 : i32
    %c0_i32_2 = arith.constant 0 : i32
    return %arg0, %c0_i32, %c0_i32_0, %c0_i32_1 : i32, i32, i32, i32
  }
  func.func @transform_2(%arg0: i32) -> (i32, i32) {
    %c0_i32 = arith.constant 0 : i32
    %c0_i32_0 = arith.constant 0 : i32
    %c0_i32_1 = arith.constant 0 : i32
    return %c0_i32, %c0_i32_0 : i32, i32
  }
  func.func @transform_3(%arg0: i32) -> (i32, i32) {
    %c0_i32 = arith.constant 0 : i32
    %c0_i32_0 = arith.constant 0 : i32
    %c0_i32_1 = arith.constant 0 : i32
    return %c0_i32, %c0_i32_0 : i32, i32
  }
  func.func @transform_4(%arg0: i32) -> (i32, i32) {
    %c0_i32 = arith.constant 0 : i32
    %c0_i32_0 = arith.constant 0 : i32
    %c0_i32_1 = arith.constant 0 : i32
    return %c0_i32, %c0_i32_0 : i32, i32
  }
  func.func @transform_5(%arg0: i32) -> (i32, i32, i32) {
    %c0_i32 = arith.constant 0 : i32
    %c0_i32_0 = arith.constant 0 : i32
    %c0_i32_1 = arith.constant 0 : i32
    %c0_i32_2 = arith.constant 0 : i32
    return %c0_i32, %c0_i32_0, %c0_i32_1 : i32, i32, i32
  }
  func.func @transform_6(%arg0: i32) -> (i32, i32) {
    %c0_i32 = arith.constant 0 : i32
    %c0_i32_0 = arith.constant 0 : i32
    %c0_i32_1 = arith.constant 0 : i32
    return %c0_i32, %c0_i32_0 : i32, i32
  }
  func.func @transform_7(%arg0: i32) -> (i32, i32, i32) {
    %c0_i32 = arith.constant 0 : i32
    %c0_i32_0 = arith.constant 0 : i32
    %c0_i32_1 = arith.constant 0 : i32
    return %arg0, %c0_i32, %c0_i32_0 : i32, i32, i32
  }
}

</mosaic_0001>

<llo_original>
// kernel: tpu_custom_call.1
$region0: #{tpu_custom_call.1}
  #allocation0 [shape = 'u32[]', space=smem, size = 0x4, offset = 0x4, fixed_abs, tag = 'smem constant byte address 0x4 - core index']
  #allocation1 [shape = 'u32[72,128]{1,0:T(1,128)}', space=vmem, size = 0x9000, scoped, tag = 'internal scratch']
  #allocation2 [shape = 'f32[80,512]{1,0:T(8,128)}', space=vmem, size = 0x28000, scoped, tag = 'scratch operand']
  %s0 = inlined_call_operand.hbm [shape: f32[1,80,128], index: 0, kind: input, shape index: {}]
  %s1 = inlined_call_operand.hbm [shape: f32[1,10,8,128], index: 1, kind: input, shape index: {}]
  %s2 = inlined_call_operand.hbm [shape: bf16[256,512], index: 2, kind: input, shape index: {}]
  %s3 = inlined_call_operand.hbm [shape: bf16[256,512], index: 3, kind: input, shape index: {}]
  %s4 = inlined_call_operand.hbm [shape: f32[8,512], index: 4, kind: input, shape index: {}]
  %s5 = inlined_call_operand.hbm [shape: bf16[3,128,128], index: 5, kind: input, shape index: {}]
  %s6 = inlined_call_operand.hbm [shape: f32[8,128], index: 6, kind: input, shape index: {}]
  %s7 = inlined_call_operand.hbm [shape: f32[1,8,128], index: 7, kind: output, shape index: {}]
  %s8 = sld [smem:[#allocation0]]
  $region66: #{tpu_custom_call.1} parent=0
    _
  %s10 = ssub.s32 1, %s8
  %s11 = scalar_select 0, %s10, %s8
  $region1: #{tpu_custom_call.1} parent=0
    #allocation3 [shape = 'u8[40960]{0}', space=vmem, size = 0xa000, scoped, tag = 'input window, operand 0, single buffered']
    #allocation4 [shape = 's32[1]{0}', space=sflag, size = 0x4, scoped, tag = 'scoped memory for tpu_custom_call.1']
    #allocation5 [shape = 's32[1]{0}', space=sflag, size = 0x4, scoped, tag = 'scoped memory for tpu_custom_call.1']
    #allocation6 [shape = 'u8[40960]{0}', space=vmem, size = 0xa000, scoped, tag = 'input window, operand 1, single buffered']
    #allocation7 [shape = 's32[1]{0}', space=sflag, size = 0x4, scoped, tag = 'scoped memory for tpu_custom_call.1']
    #allocation8 [shape = 'u8[262144]{0}', space=vmem, size = 0x40000, scoped, tag = 'input window, operand 2, single buffered']
    #allocation9 [shape = 'u8[262144]{0}', space=vmem, size = 0x40000, scoped, tag = 'input window, operand 3, single buffered']
    #allocation10 [shape = 's32[1]{0}', space=sflag, size = 0x4, scoped, tag = 'scoped memory for tpu_custom_call.1']
    #allocation11 [shape = 'u8[16384]{0}', space=vmem, size = 0x4000, scoped, tag = 'input window, operand 4, single buffered']
    #allocation12 [shape = 'u8[98304]{0}', space=vmem, size = 0x18000, scoped, tag = 'input window, operand 5, single buffered']
    #allocation13 [shape = 's32[1]{0}', space=sflag, size = 0x4, scoped, tag = 'scoped memory for tpu_custom_call.1']
    #allocation14 [shape = 'u8[4096]{0}', space=vmem, size = 0x1000, scoped, tag = 'input window, operand 6, single buffered']
    #allocation15 [shape = 'u8[4096]{0}', space=vmem, size = 0x1000, scoped, tag = 'output window, operand 0, single buffered']
    %12 = vsyncpa [#allocation4], 0
    %13 = vsyncpa [#allocation7], 0
    %14 = vsyncpa [#allocation10], 0
    %15 = vsyncpa [#allocation13], 0
    %16 = vsyncpa [#allocation5], 0
    // Predicated region
    $region2: #{tpu_custom_call.1} parent=1 // pred_check
      _
    $region3: #{tpu_custom_call.1} parent=1 // pred_check_branch
      %18 = sbr.rel (0) target = $region5
    $region4: #{tpu_custom_call.1} parent=1 // pred_region
      %20 = vsyncadd [#allocation4], 0
      %s21 = sshll.u32 %s0, 4
      %s22 = int_to_ptr.hbm [resolvable:$true] %s21
      %s23 = sshll.u32 [#allocation3], 4
      %s24 = int_to_ptr.vmem [resolvable:$true] %s23
      %29 = dma.hbm_to_vmem [thread:$0]  %s22, 1280, %s24, [#allocation4], 128, 128, 8
    $region5: #{tpu_custom_call.1} parent=1 // pred_fallthru
      _
    // Predicated region
    $region6: #{tpu_custom_call.1} parent=1 // pred_check
      _
    $region7: #{tpu_custom_call.1} parent=1 // pred_check_branch
      %31 = sbr.rel (0) target = $region9
    $region8: #{tpu_custom_call.1} parent=1 // pred_region
      %33 = vsyncadd [#allocation7], 0
      %s34 = sshll.u32 %s1, 4
      %s35 = int_to_ptr.hbm [resolvable:$true] %s34
      %s36 = sshll.u32 [#allocation6], 4
      %s37 = int_to_ptr.vmem [resolvable:$true] %s36
      %42 = dma.hbm_to_vmem [thread:$0]  %s35, 1280, %s37, [#allocation7], 128, 128, 8
    $region9: #{tpu_custom_call.1} parent=1 // pred_fallthru
      _
    // Predicated region
    $region10: #{tpu_custom_call.1} parent=1 // pred_check
      _
    $region11: #{tpu_custom_call.1} parent=1 // pred_check_branch
      %44 = sbr.rel (0) target = $region13
    $region12: #{tpu_custom_call.1} parent=1 // pred_region
      %46 = vsyncadd [#allocation7], 0
      %s47 = sshll.u32 %s2, 4
      %s48 = int_to_ptr.hbm [resolvable:$true] %s47
      %s49 = sshll.u32 [#allocation8], 4
      %s50 = int_to_ptr.vmem [resolvable:$true] %s49
      %55 = dma.hbm_to_vmem [thread:$0]  %s48, 8192, %s50, [#allocation7], 256, 256, 16
    $region13: #{tpu_custom_call.1} parent=1 // pred_fallthru
      _
    // Predicated region
    $region14: #{tpu_custom_call.1} parent=1 // pred_check
      _
    $region15: #{tpu_custom_call.1} parent=1 // pred_check_branch
      %57 = sbr.rel (0) target = $region17
    $region16: #{tpu_custom_call.1} parent=1 // pred_region
      %59 = vsyncadd [#allocation10], 0
      %s60 = sshll.u32 %s3, 4
      %s61 = int_to_ptr.hbm [resolvable:$true] %s60
      %s62 = sshll.u32 [#allocation9], 4
      %s63 = int_to_ptr.vmem [resolvable:$true] %s62
      %68 = dma.hbm_to_vmem [thread:$0]  %s61, 8192, %s63, [#allocation10], 256, 256, 16
    $region17: #{tpu_custom_call.1} parent=1 // pred_fallthru
      _
    // Predicated region
    $region18: #{tpu_custom_call.1} parent=1 // pred_check
      _
    $region19: #{tpu_custom_call.1} parent=1 // pred_check_branch
      %70 = sbr.rel (0) target = $region21
    $region20: #{tpu_custom_call.1} parent=1 // pred_region
      %72 = vsyncadd [#allocation10], 0
      %s74 = sshll.u32 %s4, 4
      %s75 = int_to_ptr.hbm [resolvable:$true] %s74
      %s76 = sshll.u32 [#allocation11], 4
      %s77 = int_to_ptr.vmem [resolvable:$true] %s76
      %79 = dma.hbm_to_vmem [thread:$0]  %s75, 512, %s77, [#allocation10]
    $region21: #{tpu_custom_call.1} parent=1 // pred_fallthru
      _
    // Predicated region
    $region22: #{tpu_custom_call.1} parent=1 // pred_check
      _
    $region23: #{tpu_custom_call.1} parent=1 // pred_check_branch
      %81 = sbr.rel (0) target = $region25
    $region24: #{tpu_custom_call.1} parent=1 // pred_region
      %83 = vsyncadd [#allocation13], 0
      %s84 = sshll.u32 %s5, 4
      %s85 = int_to_ptr.hbm [resolvable:$true] %s84
      %s86 = sshll.u32 [#allocation12], 4
      %s87 = int_to_ptr.vmem [resolvable:$true] %s86
      %92 = dma.hbm_to_vmem [thread:$0]  %s85, 3072, %s87, [#allocation13], 64, 64, 4
    $region25: #{tpu_custom_call.1} parent=1 // pred_fallthru
      _
    // Predicated region
    $region26: #{tpu_custom_call.1} parent=1 // pred_check
      _
    $region27: #{tpu_custom_call.1} parent=1 // pred_check_branch
      %94 = sbr.rel (0) target = $region29
    $region28: #{tpu_custom_call.1} parent=1 // pred_region
      %96 = vsyncadd [#allocation13], 0
      %s98 = sshll.u32 %s6, 4
      %s99 = int_to_ptr.hbm [resolvable:$true] %s98
      %s100 = sshll.u32 [#allocation14], 4
      %s101 = int_to_ptr.vmem [resolvable:$true] %s100
      %103 = dma.hbm_to_vmem [thread:$0]  %s99, 128, %s101, [#allocation13]
    $region29: #{tpu_custom_call.1} parent=1 // pred_fallthru
      _
    // Predicated region
    $region30: #{tpu_custom_call.1} parent=1 // pred_check
      _
    $region31: #{tpu_custom_call.1} parent=1 // pred_check_branch
      %105 = sbr.rel (0) target = $region33
    $region32: #{tpu_custom_call.1} parent=1 // pred_region
      %107 = dma.done [#allocation4], 1280
    $region33: #{tpu_custom_call.1} parent=1 // pred_fallthru
      _
    // Predicated region
    $region34: #{tpu_custom_call.1} parent=1 // pred_check
      _
    $region35: #{tpu_custom_call.1} parent=1 // pred_check_branch
      %109 = sbr.rel (0) target = $region37
    $region36: #{tpu_custom_call.1} parent=1 // pred_region
      %111 = dma.done [#allocation7], 1280
    $region37: #{tpu_custom_call.1} parent=1 // pred_fallthru
      _
    // Predicated region
    $region38: #{tpu_custom_call.1} parent=1 // pred_check
      _
    $region39: #{tpu_custom_call.1} parent=1 // pred_check_branch
      %113 = sbr.rel (0) target = $region41
    $region40: #{tpu_custom_call.1} parent=1 // pred_region
      %115 = dma.done [#allocation7], 8192
    $region41: #{tpu_custom_call.1} parent=1 // pred_fallthru
      _
    // Predicated region
    $region42: #{tpu_custom_call.1} parent=1 // pred_check
      _
    $region43: #{tpu_custom_call.1} parent=1 // pred_check_branch
      %117 = sbr.rel (0) target = $region45
    $region44: #{tpu_custom_call.1} parent=1 // pred_region
      %119 = dma.done [#allocation10], 8192
    $region45: #{tpu_custom_call.1} parent=1 // pred_fallthru
      _
    // Predicated region
    $region46: #{tpu_custom_call.1} parent=1 // pred_check
      _
    $region47: #{tpu_custom_call.1} parent=1 // pred_check_branch
      %121 = sbr.rel (0) target = $region49
    $region48: #{tpu_custom_call.1} parent=1 // pred_region
      %123 = dma.done [#allocation10], 512
    $region49: #{tpu_custom_call.1} parent=1 // pred_fallthru
      _
    // Predicated region
    $region50: #{tpu_custom_call.1} parent=1 // pred_check
      _
    $region51: #{tpu_custom_call.1} parent=1 // pred_check_branch
      %125 = sbr.rel (0) target = $region53
    $region52: #{tpu_custom_call.1} parent=1 // pred_region
      %127 = dma.done [#allocation13], 3072
    $region53: #{tpu_custom_call.1} parent=1 // pred_fallthru
      _
    // Predicated region
    $region54: #{tpu_custom_call.1} parent=1 // pred_check
      _
    $region55: #{tpu_custom_call.1} parent=1 // pred_check_branch
      %129 = sbr.rel (0) target = $region57
    $region56: #{tpu_custom_call.1} parent=1 // pred_region
      %131 = dma.done [#allocation13], 128
    $region57: #{tpu_custom_call.1} parent=1 // pred_fallthru
      _
    %v133 = vld [vmem:[#allocation11] ss:$8 sm:$0xf]
    %s134 = scalar_lea.vmem [#allocation11], 1
    %v135 = vld [vmem:[%s134] ss:$8 sm:$0xf]
    %v136 = vld [vmem:[#allocation3] sm:$0xff]
    %v137 = vld [vmem:[#allocation3 + $0x8] sm:$0xff]
    %v138 = vld [vmem:[#allocation3 + $0x10] sm:$0xff]
    %v139 = vld [vmem:[#allocation3 + $0x18] sm:$0xff]
    %v140 = vld [vmem:[#allocation3 + $0x20] sm:$0xff]
    %v141 = vld [vmem:[#allocation3 + $0x28] sm:$0xff]
    %v142 = vld [vmem:[#allocation3 + $0x30] sm:$0xff]
    %v143 = vld [vmem:[#allocation3 + $0x38] sm:$0xff]
    %v144 = vld [vmem:[#allocation3 + $0x40] sm:$0xff]
    %v145 = vld [vmem:[#allocation3 + $0x48] sm:$0xff]
    %v146 = vpack.c.bf16 %v137, %v136
    %v147 = vpack.c.bf16 %v139, %v138
    %v148 = vpack.c.bf16 %v141, %v140
    %v149 = vpack.c.bf16 %v143, %v142
    %v150 = vpack.c.bf16 %v145, %v144
    %v151 = vld [vmem:[#allocation8] sm:$0xff]
    %v152 = vld [vmem:[#allocation8 + $0x8] sm:$0xff]
    %v153 = vld [vmem:[#allocation8 + $0x10] sm:$0xff]
    %v154 = vld [vmem:[#allocation8 + $0x18] sm:$0xff]
    %v155 = vld [vmem:[#allocation8 + $0x20] sm:$0xff]
    %v156 = vld [vmem:[#allocation8 + $0x28] sm:$0xff]
    %v157 = vld [vmem:[#allocation8 + $0x30] sm:$0xff]
    %v158 = vld [vmem:[#allocation8 + $0x38] sm:$0xff]
    %v159 = vld [vmem:[#allocation8 + $0x40] sm:$0xff]
    %v160 = vld [vmem:[#allocation8 + $0x48] sm:$0xff]
    %v161 = vld [vmem:[#allocation8 + $0x50] sm:$0xff]
    %v162 = vld [vmem:[#allocation8 + $0x58] sm:$0xff]
    %v163 = vld [vmem:[#allocation8 + $0x60] sm:$0xff]
    %v164 = vld [vmem:[#allocation8 + $0x68] sm:$0xff]
    %v165 = vld [vmem:[#allocation8 + $0x70] sm:$0xff]
    %v166 = vld [vmem:[#allocation8 + $0x78] sm:$0xff]
    %v167 = vld [vmem:[#allocation8 + $0x80] sm:$0xff]
    %v168 = vld [vmem:[#allocation8 + $0x88] sm:$0xff]
    %v169 = vld [vmem:[#allocation8 + $0x90] sm:$0xff]
    %v170 = vld [vmem:[#allocation8 + $0x98] sm:$0xff]
    %v171 = vld [vmem:[#allocation8 + $0xa0] sm:$0xff]
    %v172 = vld [vmem:[#allocation8 + $0xa8] sm:$0xff]
    %v173 = vld [vmem:[#allocation8 + $0xb0] sm:$0xff]
    %v174 = vld [vmem:[#allocation8 + $0xb8] sm:$0xff]
    %v175 = vld [vmem:[#allocation8 + $0xc0] sm:$0xff]
    %v176 = vld [vmem:[#allocation8 + $0xc8] sm:$0xff]
    %v177 = vld [vmem:[#allocation8 + $0xd0] sm:$0xff]
    %v178 = vld [vmem:[#allocation8 + $0xd8] sm:$0xff]
    %v179 = vld [vmem:[#allocation8 + $0xe0] sm:$0xff]
    %v180 = vld [vmem:[#allocation8 + $0xe8] sm:$0xff]
    %v181 = vld [vmem:[#allocation8 + $0xf0] sm:$0xff]
    %v182 = vld [vmem:[#allocation8 + $0xf8] sm:$0xff]
    %v184 = vperm.slane %v133, 0
    %v185 = vperm.slane %v133, 1
    %v186 = vperm.slane %v133, 2
    %v187 = vperm.slane %v133, 3
    %v224 = vunpack.c.l.b16 %v151
    %v225 = vunpack.c.h.b16 %v151
    %v226 = vunpack.c.l.b16 %v152
    %v227 = vunpack.c.h.b16 %v152
    %v228 = vunpack.c.l.b16 %v153
    %v229 = vunpack.c.h.b16 %v153
    %v230 = vunpack.c.l.b16 %v154
    %v231 = vunpack.c.h.b16 %v154
    %v232 = vunpack.c.l.b16 %v155
    %v233 = vunpack.c.h.b16 %v155
    %v234 = vunpack.c.l.b16 %v156
    %v235 = vunpack.c.h.b16 %v156
    %v236 = vunpack.c.l.b16 %v157
    %v237 = vunpack.c.h.b16 %v157
    %v238 = vunpack.c.l.b16 %v158
    %v239 = vunpack.c.h.b16 %v158
    %v240 = vunpack.c.l.b16 %v159
    %v241 = vunpack.c.h.b16 %v159
    %v242 = vunpack.c.l.b16 %v160
    %v243 = vunpack.c.h.b16 %v160
    %v244 = vunpack.c.l.b16 %v161
    %v245 = vunpack.c.h.b16 %v161
    %v246 = vunpack.c.l.b16 %v162
    %v247 = vunpack.c.h.b16 %v162
    %v248 = vunpack.c.l.b16 %v163
    %v249 = vunpack.c.h.b16 %v163
    %v250 = vunpack.c.l.b16 %v164
    %v251 = vunpack.c.h.b16 %v164
    %v252 = vunpack.c.l.b16 %v165
    %v253 = vunpack.c.h.b16 %v165
    %v254 = vunpack.c.l.b16 %v166
    %v255 = vunpack.c.h.b16 %v166
    %v256 = vunpack.c.l.b16 %v167
    %v257 = vunpack.c.h.b16 %v167
    %v258 = vunpack.c.l.b16 %v168
    %v259 = vunpack.c.h.b16 %v168
    %v260 = vunpack.c.l.b16 %v169
    %v261 = vunpack.c.h.b16 %v169
    %v262 = vunpack.c.l.b16 %v170
    %v263 = vunpack.c.h.b16 %v170
    %v264 = vunpack.c.l.b16 %v171
    %v265 = vunpack.c.h.b16 %v171
    %v266 = vunpack.c.l.b16 %v172
    %v267 = vunpack.c.h.b16 %v172
    %v268 = vunpack.c.l.b16 %v173
    %v269 = vunpack.c.h.b16 %v173
    %v270 = vunpack.c.l.b16 %v174
    %v271 = vunpack.c.h.b16 %v174
    %v272 = vunpack.c.l.b16 %v175
    %v273 = vunpack.c.h.b16 %v175
    %v274 = vunpack.c.l.b16 %v176
    %v275 = vunpack.c.h.b16 %v176
    %v276 = vunpack.c.l.b16 %v177
    %v277 = vunpack.c.h.b16 %v177
    %v278 = vunpack.c.l.b16 %v178
    %v279 = vunpack.c.h.b16 %v178
    %v280 = vunpack.c.l.b16 %v179
    %v281 = vunpack.c.h.b16 %v179
    %v282 = vunpack.c.l.b16 %v180
    %v283 = vunpack.c.h.b16 %v180
    %v284 = vunpack.c.l.b16 %v181
    %v285 = vunpack.c.h.b16 %v181
    %v286 = vunpack.c.l.b16 %v182
    %v287 = vunpack.c.h.b16 %v182
    %v288 = vpack.c.b16 %v228, %v224
    %v289 = vpack.c.b16 %v229, %v225
    %v290 = vpack.c.b16 %v230, %v226
    %v291 = vpack.c.b16 %v231, %v227
    %v292 = vpack.c.b16 %v236, %v232
    %v293 = vpack.c.b16 %v237, %v233
    %v294 = vpack.c.b16 %v238, %v234
    %v295 = vpack.c.b16 %v239, %v235
    %v296 = vpack.c.b16 %v244, %v240
    %v297 = vpack.c.b16 %v245, %v241
    %v298 = vpack.c.b16 %v246, %v242
    %v299 = vpack.c.b16 %v247, %v243
    %v300 = vpack.c.b16 %v252, %v248
    %v301 = vpack.c.b16 %v253, %v249
    %v302 = vpack.c.b16 %v254, %v250
    %v303 = vpack.c.b16 %v255, %v251
    %v304 = vpack.c.b16 %v260, %v256
    %v305 = vpack.c.b16 %v261, %v257
    %v306 = vpack.c.b16 %v262, %v258
    %v307 = vpack.c.b16 %v263, %v259
    %v308 = vpack.c.b16 %v268, %v264
    %v309 = vpack.c.b16 %v269, %v265
    %v310 = vpack.c.b16 %v270, %v266
    %v311 = vpack.c.b16 %v271, %v267
    %v312 = vpack.c.b16 %v276, %v272
    %v313 = vpack.c.b16 %v277, %v273
    %v314 = vpack.c.b16 %v278, %v274
    %v315 = vpack.c.b16 %v279, %v275
    %v316 = vpack.c.b16 %v284, %v280
    %v317 = vpack.c.b16 %v285, %v281
    %v318 = vpack.c.b16 %v286, %v282
    %v319 = vpack.c.b16 %v287, %v283
    %352 = vmatpush.bf16.msra.mxu0 %v316
    %353 = vmatpush.bf16.msra.mxu0 %v312
    %354 = vmatpush.bf16.msra.mxu0 %v308
    %355 = vmatpush.bf16.msra.mxu0 %v304
    %356 = vmatpush.bf16.msra.mxu0 %v300
    %357 = vmatpush.bf16.msra.mxu0 %v296
    %358 = vmatpush.bf16.msra.mxu0 %v292
    %359 = vmatpush.bf16.msra.mxu0 %v288
    %360 = vmatmul.bf16.gmra.mxu0 %v146
    %v361 = vpop.f32.mrf.mxu0
    %v362 = vadd.f32 %v184, %v361
    %v363 = vpop.f32.mrf.mxu0
    %v364 = vadd.f32 %v184, %v363
    %365 = vmatmul.bf16.gmra.mxu0 %v147
    %v366 = vpop.f32.mrf.mxu0
    %v367 = vadd.f32 %v184, %v366
    %v368 = vpop.f32.mrf.mxu0
    %v369 = vadd.f32 %v184, %v368
    %370 = vmatmul.bf16.gmra.mxu0 %v148
    %v371 = vpop.f32.mrf.mxu0
    %v372 = vadd.f32 %v184, %v371
    %v373 = vpop.f32.mrf.mxu0
    %v374 = vadd.f32 %v184, %v373
    %375 = vmatmul.bf16.gmra.mxu0 %v149
    %v376 = vpop.f32.mrf.mxu0
    %v377 = vadd.f32 %v184, %v376
    %v378 = vpop.f32.mrf.mxu0
    %v379 = vadd.f32 %v184, %v378
    %380 = vmatmul.bf16.gmra.mxu0 %v150
    %v381 = vpop.f32.mrf.mxu0
    %v382 = vadd.f32 %v184, %v381
    %v383 = vpop.f32.mrf.mxu0
    %v384 = vadd.f32 %v184, %v383
    %385 = vdwg.mxu0
    %386 = vmatpush.bf16.msra.mxu0 %v317
    %387 = vmatpush.bf16.msra.mxu0 %v313
    %388 = vmatpush.bf16.msra.mxu0 %v309
    %389 = vmatpush.bf16.msra.mxu0 %v305
    %390 = vmatpush.bf16.msra.mxu0 %v301
    %391 = vmatpush.bf16.msra.mxu0 %v297
    %392 = vmatpush.bf16.msra.mxu0 %v293
    %393 = vmatpush.bf16.msra.mxu0 %v289
    %394 = vmatmul.bf16.gmra.mxu0 %v146
    %v395 = vpop.f32.mrf.mxu0
    %v396 = vadd.f32 %v185, %v395
    %v397 = vpop.f32.mrf.mxu0
    %v398 = vadd.f32 %v185, %v397
    %399 = vmatmul.bf16.gmra.mxu0 %v147
    %v400 = vpop.f32.mrf.mxu0
    %v401 = vadd.f32 %v185, %v400
    %v402 = vpop.f32.mrf.mxu0
    %v403 = vadd.f32 %v185, %v402
    %404 = vmatmul.bf16.gmra.mxu0 %v148
    %v405 = vpop.f32.mrf.mxu0
    %v406 = vadd.f32 %v185, %v405
    %v407 = vpop.f32.mrf.mxu0
    %v408 = vadd.f32 %v185, %v407
    %409 = vmatmul.bf16.gmra.mxu0 %v149
    %v410 = vpop.f32.mrf.mxu0
    %v411 = vadd.f32 %v185, %v410
    %v412 = vpop.f32.mrf.mxu0
    %v413 = vadd.f32 %v185, %v412
    %414 = vmatmul.bf16.gmra.mxu0 %v150
    %v415 = vpop.f32.mrf.mxu0
    %v416 = vadd.f32 %v185, %v415
    %v417 = vpop.f32.mrf.mxu0
    %v418 = vadd.f32 %v185, %v417
    %419 = vdwg.mxu0
    %420 = vmatpush.bf16.msra.mxu0 %v318
    %421 = vmatpush.bf16.msra.mxu0 %v314
    %422 = vmatpush.bf16.msra.mxu0 %v310
    %423 = vmatpush.bf16.msra.mxu0 %v306
    %424 = vmatpush.bf16.msra.mxu0 %v302
    %425 = vmatpush.bf16.msra.mxu0 %v298
    %426 = vmatpush.bf16.msra.mxu0 %v294
    %427 = vmatpush.bf16.msra.mxu0 %v290
    %428 = vmatmul.bf16.gmra.mxu0 %v146
    %v429 = vpop.f32.mrf.mxu0
    %v430 = vadd.f32 %v186, %v429
    %v431 = vpop.f32.mrf.mxu0
    %v432 = vadd.f32 %v186, %v431
    %433 = vmatmul.bf16.gmra.mxu0 %v147
    %v434 = vpop.f32.mrf.mxu0
    %v435 = vadd.f32 %v186, %v434
    %v436 = vpop.f32.mrf.mxu0
    %v437 = vadd.f32 %v186, %v436
    %438 = vmatmul.bf16.gmra.mxu0 %v148
    %v439 = vpop.f32.mrf.mxu0
    %v440 = vadd.f32 %v186, %v439
    %v441 = vpop.f32.mrf.mxu0
    %v442 = vadd.f32 %v186, %v441
    %443 = vmatmul.bf16.gmra.mxu0 %v149
    %v444 = vpop.f32.mrf.mxu0
    %v445 = vadd.f32 %v186, %v444
    %v446 = vpop.f32.mrf.mxu0
    %v447 = vadd.f32 %v186, %v446
    %448 = vmatmul.bf16.gmra.mxu0 %v150
    %v449 = vpop.f32.mrf.mxu0
    %v450 = vadd.f32 %v186, %v449
    %v451 = vpop.f32.mrf.mxu0
    %v452 = vadd.f32 %v186, %v451
    %453 = vdwg.mxu0
    %454 = vmatpush.bf16.msra.mxu0 %v319
    %455 = vmatpush.bf16.msra.mxu0 %v315
    %456 = vmatpush.bf16.msra.mxu0 %v311
    %457 = vmatpush.bf16.msra.mxu0 %v307
    %458 = vmatpush.bf16.msra.mxu0 %v303
    %459 = vmatpush.bf16.msra.mxu0 %v299
    %460 = vmatpush.bf16.msra.mxu0 %v295
    %461 = vmatpush.bf16.msra.mxu0 %v291
    %462 = vmatmul.bf16.gmra.mxu0 %v146
    %v463 = vpop.f32.mrf.mxu0
    %v464 = vadd.f32 %v187, %v463
    %v465 = vpop.f32.mrf.mxu0
    %v466 = vadd.f32 %v187, %v465
    %467 = vmatmul.bf16.gmra.mxu0 %v147
    %v468 = vpop.f32.mrf.mxu0
    %v469 = vadd.f32 %v187, %v468
    %v470 = vpop.f32.mrf.mxu0
    %v471 = vadd.f32 %v187, %v470
    %472 = vmatmul.bf16.gmra.mxu0 %v148
    %v473 = vpop.f32.mrf.mxu0
    %v474 = vadd.f32 %v187, %v473
    %v475 = vpop.f32.mrf.mxu0
    %v476 = vadd.f32 %v187, %v475
    %477 = vmatmul.bf16.gmra.mxu0 %v149
    %v478 = vpop.f32.mrf.mxu0
    %v479 = vadd.f32 %v187, %v478
    %v480 = vpop.f32.mrf.mxu0
    %v481 = vadd.f32 %v187, %v480
    %482 = vmatmul.bf16.gmra.mxu0 %v150
    %v483 = vpop.f32.mrf.mxu0
    %v484 = vadd.f32 %v187, %v483
    %v485 = vpop.f32.mrf.mxu0
    %v486 = vadd.f32 %v187, %v485
    %487 = vdwg.mxu0
    %488 = vst [vmem:[#allocation2] sm:$0xff] %v362
    %489 = vst [vmem:[#allocation2 + $0x8] sm:$0xff] %v396
    %490 = vst [vmem:[#allocation2 + $0x10] sm:$0xff] %v430
    %491 = vst [vmem:[#allocation2 + $0x18] sm:$0xff] %v464
    %492 = vst [vmem:[#allocation2 + $0x20] sm:$0xff] %v364
    %493 = vst [vmem:[#allocation2 + $0x28] sm:$0xff] %v398
    %494 = vst [vmem:[#allocation2 + $0x30] sm:$0xff] %v432
    %495 = vst [vmem:[#allocation2 + $0x38] sm:$0xff] %v466
    %496 = vst [vmem:[#allocation2 + $0x40] sm:$0xff] %v367
    %497 = vst [vmem:[#allocation2 + $0x48] sm:$0xff] %v401
    %498 = vst [vmem:[#allocation2 + $0x50] sm:$0xff] %v435
    %499 = vst [vmem:[#allocation2 + $0x58] sm:$0xff] %v469
    %500 = vst [vmem:[#allocation2 + $0x60] sm:$0xff] %v369
    %501 = vst [vmem:[#allocation2 + $0x68] sm:$0xff] %v403
    %502 = vst [vmem:[#allocation2 + $0x70] sm:$0xff] %v437
    %503 = vst [vmem:[#allocation2 + $0x78] sm:$0xff] %v471
    %504 = vst [vmem:[#allocation2 + $0x80] sm:$0xff] %v372
    %505 = vst [vmem:[#allocation2 + $0x88] sm:$0xff] %v406
    %506 = vst [vmem:[#allocation2 + $0x90] sm:$0xff] %v440
    %507 = vst [vmem:[#allocation2 + $0x98] sm:$0xff] %v474
    %508 = vst [vmem:[#allocation2 + $0xa0] sm:$0xff] %v374
    %509 = vst [vmem:[#allocation2 + $0xa8] sm:$0xff] %v408
    %510 = vst [vmem:[#allocation2 + $0xb0] sm:$0xff] %v442
    %511 = vst [vmem:[#allocation2 + $0xb8] sm:$0xff] %v476
    %512 = vst [vmem:[#allocation2 + $0xc0] sm:$0xff] %v377
    %513 = vst [vmem:[#allocation2 + $0xc8] sm:$0xff] %v411
    %514 = vst [vmem:[#allocation2 + $0xd0] sm:$0xff] %v445
    %515 = vst [vmem:[#allocation2 + $0xd8] sm:$0xff] %v479
    %516 = vst [vmem:[#allocation2 + $0xe0] sm:$0xff] %v379
    %517 = vst [vmem:[#allocation2 + $0xe8] sm:$0xff] %v413
    %518 = vst [vmem:[#allocation2 + $0xf0] sm:$0xff] %v447
    %519 = vst [vmem:[#allocation2 + $0xf8] sm:$0xff] %v481
    %520 = vst [vmem:[#allocation2 + $0x100] sm:$0xff] %v382
    %521 = vst [vmem:[#allocation2 + $0x108] sm:$0xff] %v416
    %522 = vst [vmem:[#allocation2 + $0x110] sm:$0xff] %v450
    %523 = vst [vmem:[#allocation2 + $0x118] sm:$0xff] %v484
    %524 = vst [vmem:[#allocation2 + $0x120] sm:$0xff] %v384
    %525 = vst [vmem:[#allocation2 + $0x128] sm:$0xff] %v418
    %526 = vst [vmem:[#allocation2 + $0x130] sm:$0xff] %v452
    %527 = vst [vmem:[#allocation2 + $0x138] sm:$0xff] %v486
    %v528 = vld [vmem:[#allocation8 + $0x100] sm:$0xff]
    %v529 = vld [vmem:[#allocation8 + $0x108] sm:$0xff]
    %v530 = vld [vmem:[#allocation8 + $0x110] sm:$0xff]
    %v531 = vld [vmem:[#allocation8 + $0x118] sm:$0xff]
    %v532 = vld [vmem:[#allocation8 + $0x120] sm:$0xff]
    %v533 = vld [vmem:[#allocation8 + $0x128] sm:$0xff]
    %v534 = vld [vmem:[#allocation8 + $0x130] sm:$0xff]
    %v535 = vld [vmem:[#allocation8 + $0x138] sm:$0xff]
    %v536 = vld [vmem:[#allocation8 + $0x140] sm:$0xff]
    %v537 = vld [vmem:[#allocation8 + $0x148] sm:$0xff]
    %v538 = vld [vmem:[#allocation8 + $0x150] sm:$0xff]
    %v539 = vld [vmem:[#allocation8 + $0x158] sm:$0xff]
    %v540 = vld [vmem:[#allocation8 + $0x160] sm:$0xff]
    %v541 = vld [vmem:[#allocation8 + $0x168] sm:$0xff]
    %v542 = vld [vmem:[#allocation8 + $0x170] sm:$0xff]
    %v543 = vld [vmem:[#allocation8 + $0x178] sm:$0xff]
    %v544 = vld [vmem:[#allocation8 + $0x180] sm:$0xff]
    %v545 = vld [vmem:[#allocation8 + $0x188] sm:$0xff]
    %v546 = vld [vmem:[#allocation8 + $0x190] sm:$0xff]
    %v547 = vld [vmem:[#allocation8 + $0x198] sm:$0xff]
    %v548 = vld [vmem:[#allocation8 + $0x1a0] sm:$0xff]
    %v549 = vld [vmem:[#allocation8 + $0x1a8] sm:$0xff]
    %v550 = vld [vmem:[#allocation8 + $0x1b0] sm:$0xff]
    %v551 = vld [vmem:[#allocation8 + $0x1b8] sm:$0xff]
    %v552 = vld [vmem:[#allocation8 + $0x1c0] sm:$0xff]
    %v553 = vld [vmem:[#allocation8 + $0x1c8] sm:$0xff]
    %v554 = vld [vmem:[#allocation8 + $0x1d0] sm:$0xff]
    %v555 = vld [vmem:[#allocation8 + $0x1d8] sm:$0xff]
    %v556 = vld [vmem:[#allocation8 + $0x1e0] sm:$0xff]
    %v557 = vld [vmem:[#allocation8 + $0x1e8] sm:$0xff]
    %v558 = vld [vmem:[#allocation8 + $0x1f0] sm:$0xff]
    %v559 = vld [vmem:[#allocation8 + $0x1f8] sm:$0xff]
    %v560 = vld [vmem:[#allocation9] sm:$0xff]
    %v561 = vld [vmem:[#allocation9 + $0x8] sm:$0xff]
    %v562 = vld [vmem:[#allocation9 + $0x10] sm:$0xff]
    %v563 = vld [vmem:[#allocation9 + $0x18] sm:$0xff]
    %v564 = vld [vmem:[#allocation9 + $0x20] sm:$0xff]
    %v565 = vld [vmem:[#allocation9 + $0x28] sm:$0xff]
    %v566 = vld [vmem:[#allocation9 + $0x30] sm:$0xff]
    %v567 = vld [vmem:[#allocation9 + $0x38] sm:$0xff]
    %v568 = vld [vmem:[#allocation9 + $0x40] sm:$0xff]
    %v569 = vld [vmem:[#allocation9 + $0x48] sm:$0xff]
    %v570 = vld [vmem:[#allocation9 + $0x50] sm:$0xff]
    %v571 = vld [vmem:[#allocation9 + $0x58] sm:$0xff]
    %v572 = vld [vmem:[#allocation9 + $0x60] sm:$0xff]
    %v573 = vld [vmem:[#allocation9 + $0x68] sm:$0xff]
    %v574 = vld [vmem:[#allocation9 + $0x70] sm:$0xff]
    %v575 = vld [vmem:[#allocation9 + $0x78] sm:$0xff]
    %v576 = vld [vmem:[#allocation9 + $0x80] sm:$0xff]
    %v577 = vld [vmem:[#allocation9 + $0x88] sm:$0xff]
    %v578 = vld [vmem:[#allocation9 + $0x90] sm:$0xff]
    %v579 = vld [vmem:[#allocation9 + $0x98] sm:$0xff]
    %v580 = vld [vmem:[#allocation9 + $0xa0] sm:$0xff]
    %v581 = vld [vmem:[#allocation9 + $0xa8] sm:$0xff]
    %v582 = vld [vmem:[#allocation9 + $0xb0] sm:$0xff]
    %v583 = vld [vmem:[#allocation9 + $0xb8] sm:$0xff]
    %v584 = vld [vmem:[#allocation9 + $0xc0] sm:$0xff]
    %v585 = vld [vmem:[#allocation9 + $0xc8] sm:$0xff]
    %v586 = vld [vmem:[#allocation9 + $0xd0] sm:$0xff]
    %v587 = vld [vmem:[#allocation9 + $0xd8] sm:$0xff]
    %v588 = vld [vmem:[#allocation9 + $0xe0] sm:$0xff]
    %v589 = vld [vmem:[#allocation9 + $0xe8] sm:$0xff]
    %v590 = vld [vmem:[#allocation9 + $0xf0] sm:$0xff]
    %v591 = vld [vmem:[#allocation9 + $0xf8] sm:$0xff]
    %v592 = vld [vmem:[#allocation9 + $0x100] sm:$0xff]
    %v593 = vld [vmem:[#allocation9 + $0x108] sm:$0xff]
    %v594 = vld [vmem:[#allocation9 + $0x110] sm:$0xff]
    %v595 = vld [vmem:[#allocation9 + $0x118] sm:$0xff]
    %v596 = vld [vmem:[#allocation9 + $0x120] sm:$0xff]
    %v597 = vld [vmem:[#allocation9 + $0x128] sm:$0xff]
    %v598 = vld [vmem:[#allocation9 + $0x130] sm:$0xff]
    %v599 = vld [vmem:[#allocation9 + $0x138] sm:$0xff]
    %v600 = vld [vmem:[#allocation9 + $0x140] sm:$0xff]
    %v601 = vld [vmem:[#allocation9 + $0x148] sm:$0xff]
    %v602 = vld [vmem:[#allocation9 + $0x150] sm:$0xff]
    %v603 = vld [vmem:[#allocation9 + $0x158] sm:$0xff]
    %v604 = vld [vmem:[#allocation9 + $0x160] sm:$0xff]
    %v605 = vld [vmem:[#allocation9 + $0x168] sm:$0xff]
    %v606 = vld [vmem:[#allocation9 + $0x170] sm:$0xff]
    %v607 = vld [vmem:[#allocation9 + $0x178] sm:$0xff]
    %v608 = vld [vmem:[#allocation9 + $0x180] sm:$0xff]
    %v609 = vld [vmem:[#allocation9 + $0x188] sm:$0xff]
    %v610 = vld [vmem:[#allocation9 + $0x190] sm:$0xff]
    %v611 = vld [vmem:[#allocation9 + $0x198] sm:$0xff]
    %v612 = vld [vmem:[#allocation9 + $0x1a0] sm:$0xff]
    %v613 = vld [vmem:[#allocation9 + $0x1a8] sm:$0xff]
    %v614 = vld [vmem:[#allocation9 + $0x1b0] sm:$0xff]
    %v615 = vld [vmem:[#allocation9 + $0x1b8] sm:$0xff]
    %v616 = vld [vmem:[#allocation9 + $0x1c0] sm:$0xff]
    %v617 = vld [vmem:[#allocation9 + $0x1c8] sm:$0xff]
    %v618 = vld [vmem:[#allocation9 + $0x1d0] sm:$0xff]
    %v619 = vld [vmem:[#allocation9 + $0x1d8] sm:$0xff]
    %v620 = vld [vmem:[#allocation9 + $0x1e0] sm:$0xff]
    %v621 = vld [vmem:[#allocation9 + $0x1e8] sm:$0xff]
    %v622 = vld [vmem:[#allocation9 + $0x1f0] sm:$0xff]
    %v623 = vld [vmem:[#allocation9 + $0x1f8] sm:$0xff]
    %v624 = vld [vmem:[#allocation6] sm:$0xff]
    %vm625 = vcmp.gt.f32.partialorder %v624, 0.5
    %v626 = vld [vmem:[#allocation2] sm:$0xff]
    %v627 = vld [vmem:[#allocation2 + $0x8] sm:$0xff]
    %v628 = vld [vmem:[#allocation2 + $0x10] sm:$0xff]
    %v629 = vld [vmem:[#allocation2 + $0x18] sm:$0xff]
    %v662 = vunpack.c.l.b16 %v528
    %v663 = vunpack.c.h.b16 %v528
    %v664 = vunpack.c.l.b16 %v529
    %v665 = vunpack.c.h.b16 %v529
    %v666 = vunpack.c.l.b16 %v530
    %v667 = vunpack.c.h.b16 %v530
    %v668 = vunpack.c.l.b16 %v531
    %v669 = vunpack.c.h.b16 %v531
    %v670 = vunpack.c.l.b16 %v532
    %v671 = vunpack.c.h.b16 %v532
    %v672 = vunpack.c.l.b16 %v533
    %v673 = vunpack.c.h.b16 %v533
    %v674 = vunpack.c.l.b16 %v534
    %v675 = vunpack.c.h.b16 %v534
    %v676 = vunpack.c.l.b16 %v535
    %v677 = vunpack.c.h.b16 %v535
    %v678 = vunpack.c.l.b16 %v536
    %v679 = vunpack.c.h.b16 %v536
    %v680 = vunpack.c.l.b16 %v537
    %v681 = vunpack.c.h.b16 %v537
    %v682 = vunpack.c.l.b16 %v538
    %v683 = vunpack.c.h.b16 %v538
    %v684 = vunpack.c.l.b16 %v539
    %v685 = vunpack.c.h.b16 %v539
    %v686 = vunpack.c.l.b16 %v540
    %v687 = vunpack.c.h.b16 %v540
    %v688 = vunpack.c.l.b16 %v541
    %v689 = vunpack.c.h.b16 %v541
    %v690 = vunpack.c.l.b16 %v542
    %v691 = vunpack.c.h.b16 %v542
    %v692 = vunpack.c.l.b16 %v543
    %v693 = vunpack.c.h.b16 %v543
    %v694 = vunpack.c.l.b16 %v544
    %v695 = vunpack.c.h.b16 %v544
    %v696 = vunpack.c.l.b16 %v545
    %v697 = vunpack.c.h.b16 %v545
    %v698 = vunpack.c.l.b16 %v546
    %v699 = vunpack.c.h.b16 %v546
    %v700 = vunpack.c.l.b16 %v547
    %v701 = vunpack.c.h.b16 %v547
    %v702 = vunpack.c.l.b16 %v548
    %v703 = vunpack.c.h.b16 %v548
    %v704 = vunpack.c.l.b16 %v549
    %v705 = vunpack.c.h.b16 %v549
    %v706 = vunpack.c.l.b16 %v550
    %v707 = vunpack.c.h.b16 %v550
    %v708 = vunpack.c.l.b16 %v551
    %v709 = vunpack.c.h.b16 %v551
    %v710 = vunpack.c.l.b16 %v552
    %v711 = vunpack.c.h.b16 %v552
    %v712 = vunpack.c.l.b16 %v553
    %v713 = vunpack.c.h.b16 %v553
    %v714 = vunpack.c.l.b16 %v554
    %v715 = vunpack.c.h.b16 %v554
    %v716 = vunpack.c.l.b16 %v555
    %v717 = vunpack.c.h.b16 %v555
    %v718 = vunpack.c.l.b16 %v556
    %v719 = vunpack.c.h.b16 %v556
    %v720 = vunpack.c.l.b16 %v557
    %v721 = vunpack.c.h.b16 %v557
    %v722 = vunpack.c.l.b16 %v558
    %v723 = vunpack.c.h.b16 %v558
    %v724 = vunpack.c.l.b16 %v559
    %v725 = vunpack.c.h.b16 %v559
    %v726 = vpack.c.b16 %v666, %v662
    %v727 = vpack.c.b16 %v667, %v663
    %v728 = vpack.c.b16 %v668, %v664
    %v729 = vpack.c.b16 %v669, %v665
    %v730 = vpack.c.b16 %v674, %v670
    %v731 = vpack.c.b16 %v675, %v671
    %v732 = vpack.c.b16 %v676, %v672
    %v733 = vpack.c.b16 %v677, %v673
    %v734 = vpack.c.b16 %v682, %v678
    %v735 = vpack.c.b16 %v683, %v679
    %v736 = vpack.c.b16 %v684, %v680
    %v737 = vpack.c.b16 %v685, %v681
    %v738 = vpack.c.b16 %v690, %v686
    %v739 = vpack.c.b16 %v691, %v687
    %v740 = vpack.c.b16 %v692, %v688
    %v741 = vpack.c.b16 %v693, %v689
    %v742 = vpack.c.b16 %v698, %v694
    %v743 = vpack.c.b16 %v699, %v695
    %v744 = vpack.c.b16 %v700, %v696
    %v745 = vpack.c.b16 %v701, %v697
    %v746 = vpack.c.b16 %v706, %v702
    %v747 = vpack.c.b16 %v707, %v703
    %v748 = vpack.c.b16 %v708, %v704
    %v749 = vpack.c.b16 %v709, %v705
    %v750 = vpack.c.b16 %v714, %v710
    %v751 = vpack.c.b16 %v715, %v711
    %v752 = vpack.c.b16 %v716, %v712
    %v753 = vpack.c.b16 %v717, %v713
    %v754 = vpack.c.b16 %v722, %v718
    %v755 = vpack.c.b16 %v723, %v719
    %v756 = vpack.c.b16 %v724, %v720
    %v757 = vpack.c.b16 %v725, %v721
    %790 = vmatpush.bf16.msra.mxu0 %v754
    %791 = vmatpush.bf16.msra.mxu0 %v750
    %792 = vmatpush.bf16.msra.mxu0 %v746
    %793 = vmatpush.bf16.msra.mxu0 %v742
    %794 = vmatpush.bf16.msra.mxu0 %v738
    %795 = vmatpush.bf16.msra.mxu0 %v734
    %796 = vmatpush.bf16.msra.mxu0 %v730
    %797 = vmatpush.bf16.msra.mxu0 %v726
    %798 = vmatmul.bf16.gmra.mxu0 0
    %v799 = vpop.f32.mrf.mxu0
    %v800 = vadd.f32 0.0, %v799
    %v801 = vpop.f32.mrf.mxu0
    %802 = vdwg.mxu0
    %803 = vmatpush.bf16.msra.mxu0 %v755
    %804 = vmatpush.bf16.msra.mxu0 %v751
    %805 = vmatpush.bf16.msra.mxu0 %v747
    %806 = vmatpush.bf16.msra.mxu0 %v743
    %807 = vmatpush.bf16.msra.mxu0 %v739
    %808 = vmatpush.bf16.msra.mxu0 %v735
    %809 = vmatpush.bf16.msra.mxu0 %v731
    %810 = vmatpush.bf16.msra.mxu0 %v727
    %811 = vmatmul.bf16.gmra.mxu0 0
    %v812 = vpop.f32.mrf.mxu0
    %v813 = vadd.f32 0.0, %v812
    %v814 = vpop.f32.mrf.mxu0
    %815 = vdwg.mxu0
    %816 = vmatpush.bf16.msra.mxu0 %v756
    %817 = vmatpush.bf16.msra.mxu0 %v752
    %818 = vmatpush.bf16.msra.mxu0 %v748
    %819 = vmatpush.bf16.msra.mxu0 %v744
    %820 = vmatpush.bf16.msra.mxu0 %v740
    %821 = vmatpush.bf16.msra.mxu0 %v736
    %822 = vmatpush.bf16.msra.mxu0 %v732
    %823 = vmatpush.bf16.msra.mxu0 %v728
    %824 = vmatmul.bf16.gmra.mxu0 0
    %v825 = vpop.f32.mrf.mxu0
    %v826 = vadd.f32 0.0, %v825
    %v827 = vpop.f32.mrf.mxu0
    %828 = vdwg.mxu0
    %829 = vmatpush.bf16.msra.mxu0 %v757
    %830 = vmatpush.bf16.msra.mxu0 %v753
    %831 = vmatpush.bf16.msra.mxu0 %v749
    %832 = vmatpush.bf16.msra.mxu0 %v745
    %833 = vmatpush.bf16.msra.mxu0 %v741
    %834 = vmatpush.bf16.msra.mxu0 %v737
    %835 = vmatpush.bf16.msra.mxu0 %v733
    %836 = vmatpush.bf16.msra.mxu0 %v729
    %837 = vmatmul.bf16.gmra.mxu0 0
    %v838 = vpop.f32.mrf.mxu0
    %v839 = vadd.f32 0.0, %v838
    %v840 = vpop.f32.mrf.mxu0
    %841 = vdwg.mxu0
    %v842 = vadd.f32 %v626, %v800
    %v843 = vadd.f32 %v627, %v813
    %v844 = vadd.f32 %v628, %v826
    %v845 = vadd.f32 %v629, %v839
    %v846 = vxor.u32 %v842, 2147483648
    %v847 = vmul.f32 %v846, 1.442695
    %v848 = vpow.pop %v847
    %v849 = vadd.f32 %v848, 1.0
    %v850 = vrcp.pop %v849
    %v851 = vmul.f32 %v849, %v850
    %v852 = vsub.f32 1.0, %v851
    %v853 = vmul.f32 %v850, %v852
    %v854 = vadd.f32 %v850, %v853
    %vm855 = vweird.f32 %v849
    %vm856 = vweird.f32 %v850
    %vm857 = vmor %vm855, %vm856
    %v858 = vsel %vm857, %v850, %v854
    %v859 = vand.u32 2147483647, %v849
    %vm860 = vcmp.eq.f32.partialorder %v859, 8.507059e+37
    %v861 = vand.u32 %v849, 2147483648
    %v862 = vor.u32 1.1754944e-38, %v861
    %v863 = vsel %vm860, %v862, %v858
    %v864 = vmul.f32 1.0, %v863
    %v865 = vxor.u32 %v843, 2147483648
    %v866 = vmul.f32 %v865, 1.442695
    %v867 = vpow.pop %v866
    %v868 = vadd.f32 %v867, 1.0
    %v869 = vrcp.pop %v868
    %v870 = vmul.f32 %v868, %v869
    %v871 = vsub.f32 1.0, %v870
    %v872 = vmul.f32 %v869, %v871
    %v873 = vadd.f32 %v869, %v872
    %vm874 = vweird.f32 %v868
    %vm875 = vweird.f32 %v869
    %vm876 = vmor %vm874, %vm875
    %v877 = vsel %vm876, %v869, %v873
    %v878 = vand.u32 2147483647, %v868
    %vm879 = vcmp.eq.f32.partialorder %v878, 8.507059e+37
    %v880 = vand.u32 %v868, 2147483648
    %v881 = vor.u32 1.1754944e-38, %v880
    %v882 = vsel %vm879, %v881, %v877
    %v883 = vmul.f32 1.0, %v882
    %v884 = vtanh.pop %v844
    %v885 = vxor.u32 %v845, 2147483648
    %v886 = vmul.f32 %v885, 1.442695
    %v887 = vpow.pop %v886
    %v888 = vadd.f32 %v887, 1.0
    %v889 = vrcp.pop %v888
    %v890 = vmul.f32 %v888, %v889
    %v891 = vsub.f32 1.0, %v890
    %v892 = vmul.f32 %v889, %v891
    %v893 = vadd.f32 %v889, %v892
    %vm894 = vweird.f32 %v888
    %vm895 = vweird.f32 %v889
    %vm896 = vmor %vm894, %vm895
    %v897 = vsel %vm896, %v889, %v893
    %v898 = vand.u32 2147483647, %v888
    %vm899 = vcmp.eq.f32.partialorder %v898, 8.507059e+37
    %v900 = vand.u32 %v888, 2147483648
    %v901 = vor.u32 1.1754944e-38, %v900
    %v902 = vsel %vm899, %v901, %v897
    %v903 = vmul.f32 1.0, %v902
    %v904 = vmul.f32 %v883, 0.0
    %v905 = vmul.f32 %v864, %v884
    %v906 = vadd.f32 %v904, %v905
    %v907 = vtanh.pop %v906
    %v908 = vmul.f32 %v903, %v907
    %v909 = vmax.f32 %v908, 0.0
    %v910 = vmax.f32 %v906, 0.0
    %v911 = vsel %vm625, %v909, 0.0
    %v912 = vsel %vm625, %v910, 0.0
    %v913 = vpack.c.bf16 %v911, %v911
    %v946 = vunpack.c.l.b16 %v592
    %v947 = vunpack.c.h.b16 %v592
    %v948 = vunpack.c.l.b16 %v593
    %v949 = vunpack.c.h.b16 %v593
    %v950 = vunpack.c.l.b16 %v594
    %v951 = vunpack.c.h.b16 %v594
    %v952 = vunpack.c.l.b16 %v595
    %v953 = vunpack.c.h.b16 %v595
    %v954 = vunpack.c.l.b16 %v596
    %v955 = vunpack.c.h.b16 %v596
    %v956 = vunpack.c.l.b16 %v597
    %v957 = vunpack.c.h.b16 %v597
    %v958 = vunpack.c.l.b16 %v598
    %v959 = vunpack.c.h.b16 %v598
    %v960 = vunpack.c.l.b16 %v599
    %v961 = vunpack.c.h.b16 %v599
    %v962 = vunpack.c.l.b16 %v600
    %v963 = vunpack.c.h.b16 %v600
    %v964 = vunpack.c.l.b16 %v601
    %v965 = vunpack.c.h.b16 %v601
    %v966 = vunpack.c.l.b16 %v602
    %v967 = vunpack.c.h.b16 %v602
    %v968 = vunpack.c.l.b16 %v603
    %v969 = vunpack.c.h.b16 %v603
    %v970 = vunpack.c.l.b16 %v604
    %v971 = vunpack.c.h.b16 %v604
    %v972 = vunpack.c.l.b16 %v605
    %v973 = vunpack.c.h.b16 %v605
    %v974 = vunpack.c.l.b16 %v606
    %v975 = vunpack.c.h.b16 %v606
    %v976 = vunpack.c.l.b16 %v607
    %v977 = vunpack.c.h.b16 %v607
    %v978 = vunpack.c.l.b16 %v608
    %v979 = vunpack.c.h.b16 %v608
    %v980 = vunpack.c.l.b16 %v609
    %v981 = vunpack.c.h.b16 %v609
    %v982 = vunpack.c.l.b16 %v610
    %v983 = vunpack.c.h.b16 %v610
    %v984 = vunpack.c.l.b16 %v611
    %v985 = vunpack.c.h.b16 %v611
    %v986 = vunpack.c.l.b16 %v612
    %v987 = vunpack.c.h.b16 %v612
    %v988 = vunpack.c.l.b16 %v613
    %v989 = vunpack.c.h.b16 %v613
    %v990 = vunpack.c.l.b16 %v614
    %v991 = vunpack.c.h.b16 %v614
    %v992 = vunpack.c.l.b16 %v615
    %v993 = vunpack.c.h.b16 %v615
    %v994 = vunpack.c.l.b16 %v616
    %v995 = vunpack.c.h.b16 %v616
    %v996 = vunpack.c.l.b16 %v617
    %v997 = vunpack.c.h.b16 %v617
    %v998 = vunpack.c.l.b16 %v618
    %v999 = vunpack.c.h.b16 %v618
    %v1000 = vunpack.c.l.b16 %v619
    %v1001 = vunpack.c.h.b16 %v619
    %v1002 = vunpack.c.l.b16 %v620
    %v1003 = vunpack.c.h.b16 %v620
    %v1004 = vunpack.c.l.b16 %v621
    %v1005 = vunpack.c.h.b16 %v621
    %v1006 = vunpack.c.l.b16 %v622
    %v1007 = vunpack.c.h.b16 %v622
    %v1008 = vunpack.c.l.b16 %v623
    %v1009 = vunpack.c.h.b16 %v623
    %v1010 = vpack.c.b16 %v950, %v946
    %v1011 = vpack.c.b16 %v951, %v947
    %v1012 = vpack.c.b16 %v952, %v948
    %v1013 = vpack.c.b16 %v953, %v949
    %v1014 = vpack.c.b16 %v958, %v954
    %v1015 = vpack.c.b16 %v959, %v955
    %v1016 = vpack.c.b16 %v960, %v956
    %v1017 = vpack.c.b16 %v961, %v957
    %v1018 = vpack.c.b16 %v966, %v962
    %v1019 = vpack.c.b16 %v967, %v963
    %v1020 = vpack.c.b16 %v968, %v964
    %v1021 = vpack.c.b16 %v969, %v965
    %v1022 = vpack.c.b16 %v974, %v970
    %v1023 = vpack.c.b16 %v975, %v971
    %v1024 = vpack.c.b16 %v976, %v972
    %v1025 = vpack.c.b16 %v977, %v973
    %v1026 = vpack.c.b16 %v982, %v978
    %v1027 = vpack.c.b16 %v983, %v979
    %v1028 = vpack.c.b16 %v984, %v980
    %v1029 = vpack.c.b16 %v985, %v981
    %v1030 = vpack.c.b16 %v990, %v986
    %v1031 = vpack.c.b16 %v991, %v987
    %v1032 = vpack.c.b16 %v992, %v988
    %v1033 = vpack.c.b16 %v993, %v989
    %v1034 = vpack.c.b16 %v998, %v994
    %v1035 = vpack.c.b16 %v999, %v995
    %v1036 = vpack.c.b16 %v1000, %v996
    %v1037 = vpack.c.b16 %v1001, %v997
    %v1038 = vpack.c.b16 %v1006, %v1002
    %v1039 = vpack.c.b16 %v1007, %v1003
    %v1040 = vpack.c.b16 %v1008, %v1004
    %v1041 = vpack.c.b16 %v1009, %v1005
    %1074 = vmatpush.bf16.msra.mxu0 %v1038
    %1075 = vmatpush.bf16.msra.mxu0 %v1034
    %1076 = vmatpush.bf16.msra.mxu0 %v1030
    %1077 = vmatpush.bf16.msra.mxu0 %v1026
    %1078 = vmatpush.bf16.msra.mxu0 %v1022
    %1079 = vmatpush.bf16.msra.mxu0 %v1018
    %1080 = vmatpush.bf16.msra.mxu0 %v1014
    %1081 = vmatpush.bf16.msra.mxu0 %v1010
    %1082 = vmatmul.bf16.gmra.mxu0 0
    %v1083 = vpop.f32.mrf.mxu0
    %v1084 = vadd.f32 0.0, %v1083
    %v1085 = vpop.f32.mrf.mxu0
    %1086 = vdwg.mxu0
    %1087 = vmatpush.bf16.msra.mxu0 %v1039
    %1088 = vmatpush.bf16.msra.mxu0 %v1035
    %1089 = vmatpush.bf16.msra.mxu0 %v1031
    %1090 = vmatpush.bf16.msra.mxu0 %v1027
    %1091 = vmatpush.bf16.msra.mxu0 %v1023
    %1092 = vmatpush.bf16.msra.mxu0 %v1019
    %1093 = vmatpush.bf16.msra.mxu0 %v1015
    %1094 = vmatpush.bf16.msra.mxu0 %v1011
    %1095 = vmatmul.bf16.gmra.mxu0 0
    %v1096 = vpop.f32.mrf.mxu0
    %v1097 = vadd.f32 0.0, %v1096
    %v1098 = vpop.f32.mrf.mxu0
    %1099 = vdwg.mxu0
    %1100 = vmatpush.bf16.msra.mxu0 %v1040
    %1101 = vmatpush.bf16.msra.mxu0 %v1036
    %1102 = vmatpush.bf16.msra.mxu0 %v1032
    %1103 = vmatpush.bf16.msra.mxu0 %v1028
    %1104 = vmatpush.bf16.msra.mxu0 %v1024
    %1105 = vmatpush.bf16.msra.mxu0 %v1020
    %1106 = vmatpush.bf16.msra.mxu0 %v1016
    %1107 = vmatpush.bf16.msra.mxu0 %v1012
    %1108 = vmatmul.bf16.gmra.mxu0 0
    %v1109 = vpop.f32.mrf.mxu0
    %v1110 = vadd.f32 0.0, %v1109
    %v1111 = vpop.f32.mrf.mxu0
    %1112 = vdwg.mxu0
    %1113 = vmatpush.bf16.msra.mxu0 %v1041
    %1114 = vmatpush.bf16.msra.mxu0 %v1037
    %1115 = vmatpush.bf16.msra.mxu0 %v1033
    %1116 = vmatpush.bf16.msra.mxu0 %v1029
    %1117 = vmatpush.bf16.msra.mxu0 %v1025
    %1118 = vmatpush.bf16.msra.mxu0 %v1021
    %1119 = vmatpush.bf16.msra.mxu0 %v1017
    %1120 = vmatpush.bf16.msra.mxu0 %v1013
    %1121 = vmatmul.bf16.gmra.mxu0 0
    %v1122 = vpop.f32.mrf.mxu0
    %v1123 = vadd.f32 0.0, %v1122
    %v1124 = vpop.f32.mrf.mxu0
    %1125 = vdwg.mxu0
    %v1158 = vunpack.c.l.b16 %v560
    %v1159 = vunpack.c.h.b16 %v560
    %v1160 = vunpack.c.l.b16 %v561
    %v1161 = vunpack.c.h.b16 %v561
    %v1162 = vunpack.c.l.b16 %v562
    %v1163 = vunpack.c.h.b16 %v562
    %v1164 = vunpack.c.l.b16 %v563
    %v1165 = vunpack.c.h.b16 %v563
    %v1166 = vunpack.c.l.b16 %v564
    %v1167 = vunpack.c.h.b16 %v564
    %v1168 = vunpack.c.l.b16 %v565
    %v1169 = vunpack.c.h.b16 %v565
    %v1170 = vunpack.c.l.b16 %v566
    %v1171 = vunpack.c.h.b16 %v566
    %v1172 = vunpack.c.l.b16 %v567
    %v1173 = vunpack.c.h.b16 %v567
    %v1174 = vunpack.c.l.b16 %v568
    %v1175 = vunpack.c.h.b16 %v568
    %v1176 = vunpack.c.l.b16 %v569
    %v1177 = vunpack.c.h.b16 %v569
    %v1178 = vunpack.c.l.b16 %v570
    %v1179 = vunpack.c.h.b16 %v570
    %v1180 = vunpack.c.l.b16 %v571
    %v1181 = vunpack.c.h.b16 %v571
    %v1182 = vunpack.c.l.b16 %v572
    %v1183 = vunpack.c.h.b16 %v572
    %v1184 = vunpack.c.l.b16 %v573
    %v1185 = vunpack.c.h.b16 %v573
    %v1186 = vunpack.c.l.b16 %v574
    %v1187 = vunpack.c.h.b16 %v574
    %v1188 = vunpack.c.l.b16 %v575
    %v1189 = vunpack.c.h.b16 %v575
    %v1190 = vunpack.c.l.b16 %v576
    %v1191 = vunpack.c.h.b16 %v576
    %v1192 = vunpack.c.l.b16 %v577
    %v1193 = vunpack.c.h.b16 %v577
    %v1194 = vunpack.c.l.b16 %v578
    %v1195 = vunpack.c.h.b16 %v578
    %v1196 = vunpack.c.l.b16 %v579
    %v1197 = vunpack.c.h.b16 %v579
    %v1198 = vunpack.c.l.b16 %v580
    %v1199 = vunpack.c.h.b16 %v580
    %v1200 = vunpack.c.l.b16 %v581
    %v1201 = vunpack.c.h.b16 %v581
    %v1202 = vunpack.c.l.b16 %v582
    %v1203 = vunpack.c.h.b16 %v582
    %v1204 = vunpack.c.l.b16 %v583
    %v1205 = vunpack.c.h.b16 %v583
    %v1206 = vunpack.c.l.b16 %v584
    %v1207 = vunpack.c.h.b16 %v584
    %v1208 = vunpack.c.l.b16 %v585
    %v1209 = vunpack.c.h.b16 %v585
    %v1210 = vunpack.c.l.b16 %v586
    %v1211 = vunpack.c.h.b16 %v586
    %v1212 = vunpack.c.l.b16 %v587
    %v1213 = vunpack.c.h.b16 %v587
    %v1214 = vunpack.c.l.b16 %v588
    %v1215 = vunpack.c.h.b16 %v588
    %v1216 = vunpack.c.l.b16 %v589
    %v1217 = vunpack.c.h.b16 %v589
    %v1218 = vunpack.c.l.b16 %v590
    %v1219 = vunpack.c.h.b16 %v590
    %v1220 = vunpack.c.l.b16 %v591
    %v1221 = vunpack.c.h.b16 %v591
    %v1222 = vpack.c.b16 %v1162, %v1158
    %v1223 = vpack.c.b16 %v1163, %v1159
    %v1224 = vpack.c.b16 %v1164, %v1160
    %v1225 = vpack.c.b16 %v1165, %v1161
    %v1226 = vpack.c.b16 %v1170, %v1166
    %v1227 = vpack.c.b16 %v1171, %v1167
    %v1228 = vpack.c.b16 %v1172, %v1168
    %v1229 = vpack.c.b16 %v1173, %v1169
    %v1230 = vpack.c.b16 %v1178, %v1174
    %v1231 = vpack.c.b16 %v1179, %v1175
    %v1232 = vpack.c.b16 %v1180, %v1176
    %v1233 = vpack.c.b16 %v1181, %v1177
    %v1234 = vpack.c.b16 %v1186, %v1182
    %v1235 = vpack.c.b16 %v1187, %v1183
    %v1236 = vpack.c.b16 %v1188, %v1184
    %v1237 = vpack.c.b16 %v1189, %v1185
    %v1238 = vpack.c.b16 %v1194, %v1190
    %v1239 = vpack.c.b16 %v1195, %v1191
    %v1240 = vpack.c.b16 %v1196, %v1192
    %v1241 = vpack.c.b16 %v1197, %v1193
    %v1242 = vpack.c.b16 %v1202, %v1198
    %v1243 = vpack.c.b16 %v1203, %v1199
    %v1244 = vpack.c.b16 %v1204, %v1200
    %v1245 = vpack.c.b16 %v1205, %v1201
    %v1246 = vpack.c.b16 %v1210, %v1206
    %v1247 = vpack.c.b16 %v1211, %v1207
    %v1248 = vpack.c.b16 %v1212, %v1208
    %v1249 = vpack.c.b16 %v1213, %v1209
    %v1250 = vpack.c.b16 %v1218, %v1214
    %v1251 = vpack.c.b16 %v1219, %v1215
    %v1252 = vpack.c.b16 %v1220, %v1216
    %v1253 = vpack.c.b16 %v1221, %v1217
    %1286 = vmatpush.bf16.msra.mxu0 %v1250
    %1287 = vmatpush.bf16.msra.mxu0 %v1246
    %1288 = vmatpush.bf16.msra.mxu0 %v1242
    %1289 = vmatpush.bf16.msra.mxu0 %v1238
    %1290 = vmatpush.bf16.msra.mxu0 %v1234
    %1291 = vmatpush.bf16.msra.mxu0 %v1230
    %1292 = vmatpush.bf16.msra.mxu0 %v1226
    %1293 = vmatpush.bf16.msra.mxu0 %v1222
    %1294 = vmatmul.bf16.gmra.mxu0 %v913
    %v1295 = vpop.f32.mrf.mxu0
    %v1296 = vadd.f32 %v1084, %v1295
    %v1297 = vpop.f32.mrf.mxu0
    %1298 = vdwg.mxu0
    %1299 = vmatpush.bf16.msra.mxu0 %v1251
    %1300 = vmatpush.bf16.msra.mxu0 %v1247
    %1301 = vmatpush.bf16.msra.mxu0 %v1243
    %1302 = vmatpush.bf16.msra.mxu0 %v1239
    %1303 = vmatpush.bf16.msra.mxu0 %v1235
    %1304 = vmatpush.bf16.msra.mxu0 %v1231
    %1305 = vmatpush.bf16.msra.mxu0 %v1227
    %1306 = vmatpush.bf16.msra.mxu0 %v1223
    %1307 = vmatmul.bf16.gmra.mxu0 %v913
    %v1308 = vpop.f32.mrf.mxu0
    %v1309 = vadd.f32 %v1097, %v1308
    %v1310 = vpop.f32.mrf.mxu0
    %1311 = vdwg.mxu0
    %1312 = vmatpush.bf16.msra.mxu0 %v1252
    %1313 = vmatpush.bf16.msra.mxu0 %v1248
    %1314 = vmatpush.bf16.msra.mxu0 %v1244
    %1315 = vmatpush.bf16.msra.mxu0 %v1240
    %1316 = vmatpush.bf16.msra.mxu0 %v1236
    %1317 = vmatpush.bf16.msra.mxu0 %v1232
    %1318 = vmatpush.bf16.msra.mxu0 %v1228
    %1319 = vmatpush.bf16.msra.mxu0 %v1224
    %1320 = vmatmul.bf16.gmra.mxu0 %v913
    %v1321 = vpop.f32.mrf.mxu0
    %v1322 = vadd.f32 %v1110, %v1321
    %v1323 = vpop.f32.mrf.mxu0
    %1324 = vdwg.mxu0
    %1325 = vmatpush.bf16.msra.mxu0 %v1253
    %1326 = vmatpush.bf16.msra.mxu0 %v1249
    %1327 = vmatpush.bf16.msra.mxu0 %v1245
    %1328 = vmatpush.bf16.msra.mxu0 %v1241
    %1329 = vmatpush.bf16.msra.mxu0 %v1237
    %1330 = vmatpush.bf16.msra.mxu0 %v1233
    %1331 = vmatpush.bf16.msra.mxu0 %v1229
    %1332 = vmatpush.bf16.msra.mxu0 %v1225
    %1333 = vmatmul.bf16.gmra.mxu0 %v913
    %v1334 = vpop.f32.mrf.mxu0
    %v1335 = vadd.f32 %v1123, %v1334
    %v1336 = vpop.f32.mrf.mxu0
    %1337 = vdwg.mxu0
    %v1339 = vperm.slane %v135, 0
    %v1340 = vperm.slane %v135, 1
    %v1341 = vperm.slane %v135, 2
    %v1342 = vperm.slane %v135, 3
    %v1347 = vadd.f32 %v1296, %v1339
    %v1348 = vadd.f32 %v1309, %v1340
    %v1349 = vadd.f32 %v1322, %v1341
    %v1350 = vadd.f32 %v1335, %v1342
    %v1351 = vxor.u32 %v1347, 2147483648
    %v1352 = vmul.f32 %v1351, 1.442695
    %v1353 = vpow.pop %v1352
    %v1354 = vadd.f32 %v1353, 1.0
    %v1355 = vrcp.pop %v1354
    %v1356 = vmul.f32 %v1354, %v1355
    %v1357 = vsub.f32 1.0, %v1356
    %v1358 = vmul.f32 %v1355, %v1357
    %v1359 = vadd.f32 %v1355, %v1358
    %vm1360 = vweird.f32 %v1354
    %vm1361 = vweird.f32 %v1355
    %vm1362 = vmor %vm1360, %vm1361
    %v1363 = vsel %vm1362, %v1355, %v1359
    %v1364 = vand.u32 2147483647, %v1354
    %vm1365 = vcmp.eq.f32.partialorder %v1364, 8.507059e+37
    %v1366 = vand.u32 %v1354, 2147483648
    %v1367 = vor.u32 1.1754944e-38, %v1366
    %v1368 = vsel %vm1365, %v1367, %v1363
    %v1369 = vmul.f32 1.0, %v1368
    %v1370 = vxor.u32 %v1348, 2147483648
    %v1371 = vmul.f32 %v1370, 1.442695
    %v1372 = vpow.pop %v1371
    %v1373 = vadd.f32 %v1372, 1.0
    %v1374 = vrcp.pop %v1373
    %v1375 = vmul.f32 %v1373, %v1374
    %v1376 = vsub.f32 1.0, %v1375
    %v1377 = vmul.f32 %v1374, %v1376
    %v1378 = vadd.f32 %v1374, %v1377
    %vm1379 = vweird.f32 %v1373
    %vm1380 = vweird.f32 %v1374
    %vm1381 = vmor %vm1379, %vm1380
    %v1382 = vsel %vm1381, %v1374, %v1378
    %v1383 = vand.u32 2147483647, %v1373
    %vm1384 = vcmp.eq.f32.partialorder %v1383, 8.507059e+37
    %v1385 = vand.u32 %v1373, 2147483648
    %v1386 = vor.u32 1.1754944e-38, %v1385
    %v1387 = vsel %vm1384, %v1386, %v1382
    %v1388 = vmul.f32 1.0, %v1387
    %v1389 = vtanh.pop %v1349
    %v1390 = vxor.u32 %v1350, 2147483648
    %v1391 = vmul.f32 %v1390, 1.442695
    %v1392 = vpow.pop %v1391
    %v1393 = vadd.f32 %v1392, 1.0
    %v1394 = vrcp.pop %v1393
    %v1395 = vmul.f32 %v1393, %v1394
    %v1396 = vsub.f32 1.0, %v1395
    %v1397 = vmul.f32 %v1394, %v1396
    %v1398 = vadd.f32 %v1394, %v1397
    %vm1399 = vweird.f32 %v1393
    %vm1400 = vweird.f32 %v1394
    %vm1401 = vmor %vm1399, %vm1400
    %v1402 = vsel %vm1401, %v1394, %v1398
    %v1403 = vand.u32 2147483647, %v1393
    %vm1404 = vcmp.eq.f32.partialorder %v1403, 8.507059e+37
    %v1405 = vand.u32 %v1393, 2147483648
    %v1406 = vor.u32 1.1754944e-38, %v1405
    %v1407 = vsel %vm1404, %v1406, %v1402
    %v1408 = vmul.f32 1.0, %v1407
    %v1409 = vmul.f32 %v1388, 0.0
    %v1410 = vmul.f32 %v1369, %v1389
    %v1411 = vadd.f32 %v1409, %v1410
    %v1412 = vtanh.pop %v1411
    %v1413 = vmul.f32 %v1408, %v1412
    %v1414 = vmax.f32 %v1413, 0.0
    %v1415 = vmax.f32 %v1411, 0.0
    %v1416 = vsel %vm625, %v1414, 0.0
    %v1417 = vsel %vm625, %v1415, 0.0
    %s1418 = scalar_lea.vmem [#allocation6], 8
    %v1419 = vld [vmem:[%s1418] sm:$0xff]
    %vm1420 = vcmp.gt.f32.partialorder %v1419, 0.5
    %v1421 = vld [vmem:[#allocation2 + $0x20] sm:$0xff]
    %v1422 = vld [vmem:[#allocation2 + $0x28] sm:$0xff]
    %v1423 = vld [vmem:[#allocation2 + $0x30] sm:$0xff]
    %v1424 = vld [vmem:[#allocation2 + $0x38] sm:$0xff]
    %1425 = vmatpush.bf16.msra.mxu0 %v754
    %1426 = vmatpush.bf16.msra.mxu0 %v750
    %1427 = vmatpush.bf16.msra.mxu0 %v746
    %1428 = vmatpush.bf16.msra.mxu0 %v742
    %1429 = vmatpush.bf16.msra.mxu0 %v738
    %1430 = vmatpush.bf16.msra.mxu0 %v734
    %1431 = vmatpush.bf16.msra.mxu0 %v730
    %1432 = vmatpush.bf16.msra.mxu0 %v726
    %1433 = vmatmul.bf16.gmra.mxu0 %v913
    %v1434 = vpop.f32.mrf.mxu0
    %v1435 = vadd.f32 0.0, %v1434
    %v1436 = vpop.f32.mrf.mxu0
    %1437 = vdwg.mxu0
    %1438 = vmatpush.bf16.msra.mxu0 %v755
    %1439 = vmatpush.bf16.msra.mxu0 %v751
    %1440 = vmatpush.bf16.msra.mxu0 %v747
    %1441 = vmatpush.bf16.msra.mxu0 %v743
    %1442 = vmatpush.bf16.msra.mxu0 %v739
    %1443 = vmatpush.bf16.msra.mxu0 %v735
    %1444 = vmatpush.bf16.msra.mxu0 %v731
    %1445 = vmatpush.bf16.msra.mxu0 %v727
    %1446 = vmatmul.bf16.gmra.mxu0 %v913
    %v1447 = vpop.f32.mrf.mxu0
    %v1448 = vadd.f32 0.0, %v1447
    %v1449 = vpop.f32.mrf.mxu0
    %1450 = vdwg.mxu0
    %1451 = vmatpush.bf16.msra.mxu0 %v756
    %1452 = vmatpush.bf16.msra.mxu0 %v752
    %1453 = vmatpush.bf16.msra.mxu0 %v748
    %1454 = vmatpush.bf16.msra.mxu0 %v744
    %1455 = vmatpush.bf16.msra.mxu0 %v740
    %1456 = vmatpush.bf16.msra.mxu0 %v736
    %1457 = vmatpush.bf16.msra.mxu0 %v732
    %1458 = vmatpush.bf16.msra.mxu0 %v728
    %1459 = vmatmul.bf16.gmra.mxu0 %v913
    %v1460 = vpop.f32.mrf.mxu0
    %v1461 = vadd.f32 0.0, %v1460
    %v1462 = vpop.f32.mrf.mxu0
    %1463 = vdwg.mxu0
    %1464 = vmatpush.bf16.msra.mxu0 %v757
    %1465 = vmatpush.bf16.msra.mxu0 %v753
    %1466 = vmatpush.bf16.msra.mxu0 %v749
    %1467 = vmatpush.bf16.msra.mxu0 %v745
    %1468 = vmatpush.bf16.msra.mxu0 %v741
    %1469 = vmatpush.bf16.msra.mxu0 %v737
    %1470 = vmatpush.bf16.msra.mxu0 %v733
    %1471 = vmatpush.bf16.msra.mxu0 %v729
    %1472 = vmatmul.bf16.gmra.mxu0 %v913
    %v1473 = vpop.f32.mrf.mxu0
    %v1474 = vadd.f32 0.0, %v1473
    %v1475 = vpop.f32.mrf.mxu0
    %1476 = vdwg.mxu0
    %v1477 = vadd.f32 %v1421, %v1435
    %v1478 = vadd.f32 %v1422, %v1448
    %v1479 = vadd.f32 %v1423, %v1461
    %v1480 = vadd.f32 %v1424, %v1474
    %v1481 = vxor.u32 %v1477, 2147483648
    %v1482 = vmul.f32 %v1481, 1.442695
    %v1483 = vpow.pop %v1482
    %v1484 = vadd.f32 %v1483, 1.0
    %v1485 = vrcp.pop %v1484
    %v1486 = vmul.f32 %v1484, %v1485
    %v1487 = vsub.f32 1.0, %v1486
    %v1488 = vmul.f32 %v1485, %v1487
    %v1489 = vadd.f32 %v1485, %v1488
    %vm1490 = vweird.f32 %v1484
    %vm1491 = vweird.f32 %v1485
    %vm1492 = vmor %vm1490, %vm1491
    %v1493 = vsel %vm1492, %v1485, %v1489
    %v1494 = vand.u32 2147483647, %v1484
    %vm1495 = vcmp.eq.f32.partialorder %v1494, 8.507059e+37
    %v1496 = vand.u32 %v1484, 2147483648
    %v1497 = vor.u32 1.1754944e-38, %v1496
    %v1498 = vsel %vm1495, %v1497, %v1493
    %v1499 = vmul.f32 1.0, %v1498
    %v1500 = vxor.u32 %v1478, 2147483648
    %v1501 = vmul.f32 %v1500, 1.442695
    %v1502 = vpow.pop %v1501
    %v1503 = vadd.f32 %v1502, 1.0
    %v1504 = vrcp.pop %v1503
    %v1505 = vmul.f32 %v1503, %v1504
    %v1506 = vsub.f32 1.0, %v1505
    %v1507 = vmul.f32 %v1504, %v1506
    %v1508 = vadd.f32 %v1504, %v1507
    %vm1509 = vweird.f32 %v1503
    %vm1510 = vweird.f32 %v1504
    %vm1511 = vmor %vm1509, %vm1510
    %v1512 = vsel %vm1511, %v1504, %v1508
    %v1513 = vand.u32 2147483647, %v1503
    %vm1514 = vcmp.eq.f32.partialorder %v1513, 8.507059e+37
    %v1515 = vand.u32 %v1503, 2147483648
    %v1516 = vor.u32 1.1754944e-38, %v1515
    %v1517 = vsel %vm1514, %v1516, %v1512
    %v1518 = vmul.f32 1.0, %v1517
    %v1519 = vtanh.pop %v1479
    %v1520 = vxor.u32 %v1480, 2147483648
    %v1521 = vmul.f32 %v1520, 1.442695
    %v1522 = vpow.pop %v1521
    %v1523 = vadd.f32 %v1522, 1.0
    %v1524 = vrcp.pop %v1523
    %v1525 = vmul.f32 %v1523, %v1524
    %v1526 = vsub.f32 1.0, %v1525
    %v1527 = vmul.f32 %v1524, %v1526
    %v1528 = vadd.f32 %v1524, %v1527
    %vm1529 = vweird.f32 %v1523
    %vm1530 = vweird.f32 %v1524
    %vm1531 = vmor %vm1529, %vm1530
    %v1532 = vsel %vm1531, %v1524, %v1528
    %v1533 = vand.u32 2147483647, %v1523
    %vm1534 = vcmp.eq.f32.partialorder %v1533, 8.507059e+37
    %v1535 = vand.u32 %v1523, 2147483648
    %v1536 = vor.u32 1.1754944e-38, %v1535
    %v1537 = vsel %vm1534, %v1536, %v1532
    %v1538 = vmul.f32 1.0, %v1537
    %v1539 = vmul.f32 %v1518, %v912
    %v1540 = vmul.f32 %v1499, %v1519
    %v1541 = vadd.f32 %v1539, %v1540
    %v1542 = vtanh.pop %v1541
    %v1543 = vmul.f32 %v1538, %v1542
    %v1544 = vmax.f32 %v1543, 0.0
    %v1545 = vmax.f32 %v1541, 0.0
    %v1546 = vsel %vm1420, %v1544, %v911
    %v1547 = vsel %vm1420, %v1545, %v912
    %v1548 = vpack.c.bf16 %v1546, %v1546
    %v1549 = vpack.c.bf16 %v1416, %v1416
    %1550 = vmatpush.bf16.msra.mxu0 %v1038
    %1551 = vmatpush.bf16.msra.mxu0 %v1034
    %1552 = vmatpush.bf16.msra.mxu0 %v1030
    %1553 = vmatpush.bf16.msra.mxu0 %v1026
    %1554 = vmatpush.bf16.msra.mxu0 %v1022
    %1555 = vmatpush.bf16.msra.mxu0 %v1018
    %1556 = vmatpush.bf16.msra.mxu0 %v1014
    %1557 = vmatpush.bf16.msra.mxu0 %v1010
    %1558 = vmatmul.bf16.gmra.mxu0 %v1549
    %v1559 = vpop.f32.mrf.mxu0
    %v1560 = vadd.f32 0.0, %v1559
    %v1561 = vpop.f32.mrf.mxu0
    %1562 = vdwg.mxu0
    %1563 = vmatpush.bf16.msra.mxu0 %v1039
    %1564 = vmatpush.bf16.msra.mxu0 %v1035
    %1565 = vmatpush.bf16.msra.mxu0 %v1031
    %1566 = vmatpush.bf16.msra.mxu0 %v1027
    %1567 = vmatpush.bf16.msra.mxu0 %v1023
    %1568 = vmatpush.bf16.msra.mxu0 %v1019
    %1569 = vmatpush.bf16.msra.mxu0 %v1015
    %1570 = vmatpush.bf16.msra.mxu0 %v1011
    %1571 = vmatmul.bf16.gmra.mxu0 %v1549
    %v1572 = vpop.f32.mrf.mxu0
    %v1573 = vadd.f32 0.0, %v1572
    %v1574 = vpop.f32.mrf.mxu0
    %1575 = vdwg.mxu0
    %1576 = vmatpush.bf16.msra.mxu0 %v1040
    %1577 = vmatpush.bf16.msra.mxu0 %v1036
    %1578 = vmatpush.bf16.msra.mxu0 %v1032
    %1579 = vmatpush.bf16.msra.mxu0 %v1028
    %1580 = vmatpush.bf16.msra.mxu0 %v1024
    %1581 = vmatpush.bf16.msra.mxu0 %v1020
    %1582 = vmatpush.bf16.msra.mxu0 %v1016
    %1583 = vmatpush.bf16.msra.mxu0 %v1012
    %1584 = vmatmul.bf16.gmra.mxu0 %v1549
    %v1585 = vpop.f32.mrf.mxu0
    %v1586 = vadd.f32 0.0, %v1585
    %v1587 = vpop.f32.mrf.mxu0
    %1588 = vdwg.mxu0
    %1589 = vmatpush.bf16.msra.mxu0 %v1041
    %1590 = vmatpush.bf16.msra.mxu0 %v1037
    %1591 = vmatpush.bf16.msra.mxu0 %v1033
    %1592 = vmatpush.bf16.msra.mxu0 %v1029
    %1593 = vmatpush.bf16.msra.mxu0 %v1025
    %1594 = vmatpush.bf16.msra.mxu0 %v1021
    %1595 = vmatpush.bf16.msra.mxu0 %v1017
    %1596 = vmatpush.bf16.msra.mxu0 %v1013
    %1597 = vmatmul.bf16.gmra.mxu0 %v1549
    %v1598 = vpop.f32.mrf.mxu0
    %v1599 = vadd.f32 0.0, %v1598
    %v1600 = vpop.f32.mrf.mxu0
    %1601 = vdwg.mxu0
    %1602 = vmatpush.bf16.msra.mxu0 %v1250
    %1603 = vmatpush.bf16.msra.mxu0 %v1246
    %1604 = vmatpush.bf16.msra.mxu0 %v1242
    %1605 = vmatpush.bf16.msra.mxu0 %v1238
    %1606 = vmatpush.bf16.msra.mxu0 %v1234
    %1607 = vmatpush.bf16.msra.mxu0 %v1230
    %1608 = vmatpush.bf16.msra.mxu0 %v1226
    %1609 = vmatpush.bf16.msra.mxu0 %v1222
    %1610 = vmatmul.bf16.gmra.mxu0 %v1548
    %v1611 = vpop.f32.mrf.mxu0
    %v1612 = vadd.f32 %v1560, %v1611
    %v1613 = vpop.f32.mrf.mxu0
    %1614 = vdwg.mxu0
    %1615 = vmatpush.bf16.msra.mxu0 %v1251
    %1616 = vmatpush.bf16.msra.mxu0 %v1247
    %1617 = vmatpush.bf16.msra.mxu0 %v1243
    %1618 = vmatpush.bf16.msra.mxu0 %v1239
    %1619 = vmatpush.bf16.msra.mxu0 %v1235
    %1620 = vmatpush.bf16.msra.mxu0 %v1231
    %1621 = vmatpush.bf16.msra.mxu0 %v1227
    %1622 = vmatpush.bf16.msra.mxu0 %v1223
    %1623 = vmatmul.bf16.gmra.mxu0 %v1548
    %v1624 = vpop.f32.mrf.mxu0
    %v1625 = vadd.f32 %v1573, %v1624
    %v1626 = vpop.f32.mrf.mxu0
    %1627 = vdwg.mxu0
    %1628 = vmatpush.bf16.msra.mxu0 %v1252
    %1629 = vmatpush.bf16.msra.mxu0 %v1248
    %1630 = vmatpush.bf16.msra.mxu0 %v1244
    %1631 = vmatpush.bf16.msra.mxu0 %v1240
    %1632 = vmatpush.bf16.msra.mxu0 %v1236
    %1633 = vmatpush.bf16.msra.mxu0 %v1232
    %1634 = vmatpush.bf16.msra.mxu0 %v1228
    %1635 = vmatpush.bf16.msra.mxu0 %v1224
    %1636 = vmatmul.bf16.gmra.mxu0 %v1548
    %v1637 = vpop.f32.mrf.mxu0
    %v1638 = vadd.f32 %v1586, %v1637
    %v1639 = vpop.f32.mrf.mxu0
    %1640 = vdwg.mxu0
    %1641 = vmatpush.bf16.msra.mxu0 %v1253
    %1642 = vmatpush.bf16.msra.mxu0 %v1249
    %1643 = vmatpush.bf16.msra.mxu0 %v1245
    %1644 = vmatpush.bf16.msra.mxu0 %v1241
    %1645 = vmatpush.bf16.msra.mxu0 %v1237
    %1646 = vmatpush.bf16.msra.mxu0 %v1233
    %1647 = vmatpush.bf16.msra.mxu0 %v1229
    %1648 = vmatpush.bf16.msra.mxu0 %v1225
    %1649 = vmatmul.bf16.gmra.mxu0 %v1548
    %v1650 = vpop.f32.mrf.mxu0
    %v1651 = vadd.f32 %v1599, %v1650
    %v1652 = vpop.f32.mrf.mxu0
    %1653 = vdwg.mxu0
    %v1654 = vadd.f32 %v1612, %v1339
    %v1655 = vadd.f32 %v1625, %v1340
    %v1656 = vadd.f32 %v1638, %v1341
    %v1657 = vadd.f32 %v1651, %v1342
    %v1658 = vxor.u32 %v1654, 2147483648
    %v1659 = vmul.f32 %v1658, 1.442695
    %v1660 = vpow.pop %v1659
    %v1661 = vadd.f32 %v1660, 1.0
    %v1662 = vrcp.pop %v1661
    %v1663 = vmul.f32 %v1661, %v1662
    %v1664 = vsub.f32 1.0, %v1663
    %v1665 = vmul.f32 %v1662, %v1664
    %v1666 = vadd.f32 %v1662, %v1665
    %vm1667 = vweird.f32 %v1661
    %vm1668 = vweird.f32 %v1662
    %vm1669 = vmor %vm1667, %vm1668
    %v1670 = vsel %vm1669, %v1662, %v1666
    %v1671 = vand.u32 2147483647, %v1661
    %vm1672 = vcmp.eq.f32.partialorder %v1671, 8.507059e+37
    %v1673 = vand.u32 %v1661, 2147483648
    %v1674 = vor.u32 1.1754944e-38, %v1673
    %v1675 = vsel %vm1672, %v1674, %v1670
    %v1676 = vmul.f32 1.0, %v1675
    %v1677 = vxor.u32 %v1655, 2147483648
    %v1678 = vmul.f32 %v1677, 1.442695
    %v1679 = vpow.pop %v1678
    %v1680 = vadd.f32 %v1679, 1.0
    %v1681 = vrcp.pop %v1680
    %v1682 = vmul.f32 %v1680, %v1681
    %v1683 = vsub.f32 1.0, %v1682
    %v1684 = vmul.f32 %v1681, %v1683
    %v1685 = vadd.f32 %v1681, %v1684
    %vm1686 = vweird.f32 %v1680
    %vm1687 = vweird.f32 %v1681
    %vm1688 = vmor %vm1686, %vm1687
    %v1689 = vsel %vm1688, %v1681, %v1685
    %v1690 = vand.u32 2147483647, %v1680
    %vm1691 = vcmp.eq.f32.partialorder %v1690, 8.507059e+37
    %v1692 = vand.u32 %v1680, 2147483648
    %v1693 = vor.u32 1.1754944e-38, %v1692
    %v1694 = vsel %vm1691, %v1693, %v1689
    %v1695 = vmul.f32 1.0, %v1694
    %v1696 = vtanh.pop %v1656
    %v1697 = vxor.u32 %v1657, 2147483648
    %v1698 = vmul.f32 %v1697, 1.442695
    %v1699 = vpow.pop %v1698
    %v1700 = vadd.f32 %v1699, 1.0
    %v1701 = vrcp.pop %v1700
    %v1702 = vmul.f32 %v1700, %v1701
    %v1703 = vsub.f32 1.0, %v1702
    %v1704 = vmul.f32 %v1701, %v1703
    %v1705 = vadd.f32 %v1701, %v1704
    %vm1706 = vweird.f32 %v1700
    %vm1707 = vweird.f32 %v1701
    %vm1708 = vmor %vm1706, %vm1707
    %v1709 = vsel %vm1708, %v1701, %v1705
    %v1710 = vand.u32 2147483647, %v1700
    %vm1711 = vcmp.eq.f32.partialorder %v1710, 8.507059e+37
    %v1712 = vand.u32 %v1700, 2147483648
    %v1713 = vor.u32 1.1754944e-38, %v1712
    %v1714 = vsel %vm1711, %v1713, %v1709
    %v1715 = vmul.f32 1.0, %v1714
    %v1716 = vmul.f32 %v1695, %v1417
    %v1717 = vmul.f32 %v1676, %v1696
    %v1718 = vadd.f32 %v1716, %v1717
    %v1719 = vtanh.pop %v1718
    %v1720 = vmul.f32 %v1715, %v1719
    %v1721 = vmax.f32 %v1720, 0.0
    %v1722 = vmax.f32 %v1718, 0.0
    %v1723 = vsel %vm1420, %v1721, %v1416
    %v1724 = vsel %vm1420, %v1722, %v1417
    %s1725 = scalar_lea.vmem [#allocation6], 16
    %v1726 = vld [vmem:[%s1725] sm:$0xff]
    %vm1727 = vcmp.gt.f32.partialorder %v1726, 0.5
    %v1728 = vld [vmem:[#allocation2 + $0x40] sm:$0xff]
    %v1729 = vld [vmem:[#allocation2 + $0x48] sm:$0xff]
    %v1730 = vld [vmem:[#allocation2 + $0x50] sm:$0xff]
    %v1731 = vld [vmem:[#allocation2 + $0x58] sm:$0xff]
    %1732 = vmatpush.bf16.msra.mxu0 %v754
    %1733 = vmatpush.bf16.msra.mxu0 %v750
    %1734 = vmatpush.bf16.msra.mxu0 %v746
    %1735 = vmatpush.bf16.msra.mxu0 %v742
    %1736 = vmatpush.bf16.msra.mxu0 %v738
    %1737 = vmatpush.bf16.msra.mxu0 %v734
    %1738 = vmatpush.bf16.msra.mxu0 %v730
    %1739 = vmatpush.bf16.msra.mxu0 %v726
    %1740 = vmatmul.bf16.gmra.mxu0 %v1548
    %v1741 = vpop.f32.mrf.mxu0
    %v1742 = vadd.f32 0.0, %v1741
    %v1743 = vpop.f32.mrf.mxu0
    %1744 = vdwg.mxu0
    %1745 = vmatpush.bf16.msra.mxu0 %v755
    %1746 = vmatpush.bf16.msra.mxu0 %v751
    %1747 = vmatpush.bf16.msra.mxu0 %v747
    %1748 = vmatpush.bf16.msra.mxu0 %v743
    %1749 = vmatpush.bf16.msra.mxu0 %v739
    %1750 = vmatpush.bf16.msra.mxu0 %v735
    %1751 = vmatpush.bf16.msra.mxu0 %v731
    %1752 = vmatpush.bf16.msra.mxu0 %v727
    %1753 = vmatmul.bf16.gmra.mxu0 %v1548
    %v1754 = vpop.f32.mrf.mxu0
    %v1755 = vadd.f32 0.0, %v1754
    %v1756 = vpop.f32.mrf.mxu0
    %1757 = vdwg.mxu0
    %1758 = vmatpush.bf16.msra.mxu0 %v756
    %1759 = vmatpush.bf16.msra.mxu0 %v752
    %1760 = vmatpush.bf16.msra.mxu0 %v748
    %1761 = vmatpush.bf16.msra.mxu0 %v744
    %1762 = vmatpush.bf16.msra.mxu0 %v740
    %1763 = vmatpush.bf16.msra.mxu0 %v736
    %1764 = vmatpush.bf16.msra.mxu0 %v732
    %1765 = vmatpush.bf16.msra.mxu0 %v728
    %1766 = vmatmul.bf16.gmra.mxu0 %v1548
    %v1767 = vpop.f32.mrf.mxu0
    %v1768 = vadd.f32 0.0, %v1767
    %v1769 = vpop.f32.mrf.mxu0
    %1770 = vdwg.mxu0
    %1771 = vmatpush.bf16.msra.mxu0 %v757
    %1772 = vmatpush.bf16.msra.mxu0 %v753
    %1773 = vmatpush.bf16.msra.mxu0 %v749
    %1774 = vmatpush.bf16.msra.mxu0 %v745
    %1775 = vmatpush.bf16.msra.mxu0 %v741
    %1776 = vmatpush.bf16.msra.mxu0 %v737
    %1777 = vmatpush.bf16.msra.mxu0 %v733
    %1778 = vmatpush.bf16.msra.mxu0 %v729
    %1779 = vmatmul.bf16.gmra.mxu0 %v1548
    %v1780 = vpop.f32.mrf.mxu0
    %v1781 = vadd.f32 0.0, %v1780
    %v1782 = vpop.f32.mrf.mxu0
    %1783 = vdwg.mxu0
    %v1784 = vadd.f32 %v1728, %v1742
    %v1785 = vadd.f32 %v1729, %v1755
    %v1786 = vadd.f32 %v1730, %v1768
    %v1787 = vadd.f32 %v1731, %v1781
    %v1788 = vxor.u32 %v1784, 2147483648
    %v1789 = vmul.f32 %v1788, 1.442695
    %v1790 = vpow.pop %v1789
    %v1791 = vadd.f32 %v1790, 1.0
    %v1792 = vrcp.pop %v1791
    %v1793 = vmul.f32 %v1791, %v1792
    %v1794 = vsub.f32 1.0, %v1793
    %v1795 = vmul.f32 %v1792, %v1794
    %v1796 = vadd.f32 %v1792, %v1795
    %vm1797 = vweird.f32 %v1791
    %vm1798 = vweird.f32 %v1792
    %vm1799 = vmor %vm1797, %vm1798
    %v1800 = vsel %vm1799, %v1792, %v1796
    %v1801 = vand.u32 2147483647, %v1791
    %vm1802 = vcmp.eq.f32.partialorder %v1801, 8.507059e+37
    %v1803 = vand.u32 %v1791, 2147483648
    %v1804 = vor.u32 1.1754944e-38, %v1803
    %v1805 = vsel %vm1802, %v1804, %v1800
    %v1806 = vmul.f32 1.0, %v1805
    %v1807 = vxor.u32 %v1785, 2147483648
    %v1808 = vmul.f32 %v1807, 1.442695
    %v1809 = vpow.pop %v1808
    %v1810 = vadd.f32 %v1809, 1.0
    %v1811 = vrcp.pop %v1810
    %v1812 = vmul.f32 %v1810, %v1811
    %v1813 = vsub.f32 1.0, %v1812
    %v1814 = vmul.f32 %v1811, %v1813
    %v1815 = vadd.f32 %v1811, %v1814
    %vm1816 = vweird.f32 %v1810
    %vm1817 = vweird.f32 %v1811
    %vm1818 = vmor %vm1816, %vm1817
    %v1819 = vsel %vm1818, %v1811, %v1815
    %v1820 = vand.u32 2147483647, %v1810
    %vm1821 = vcmp.eq.f32.partialorder %v1820, 8.507059e+37
    %v1822 = vand.u32 %v1810, 2147483648
    %v1823 = vor.u32 1.1754944e-38, %v1822
    %v1824 = vsel %vm1821, %v1823, %v1819
    %v1825 = vmul.f32 1.0, %v1824
    %v1826 = vtanh.pop %v1786
    %v1827 = vxor.u32 %v1787, 2147483648
    %v1828 = vmul.f32 %v1827, 1.442695
    %v1829 = vpow.pop %v1828
    %v1830 = vadd.f32 %v1829, 1.0
    %v1831 = vrcp.pop %v1830
    %v1832 = vmul.f32 %v1830, %v1831
    %v1833 = vsub.f32 1.0, %v1832
    %v1834 = vmul.f32 %v1831, %v1833
    %v1835 = vadd.f32 %v1831, %v1834
    %vm1836 = vweird.f32 %v1830
    %vm1837 = vweird.f32 %v1831
    %vm1838 = vmor %vm1836, %vm1837
    %v1839 = vsel %vm1838, %v1831, %v1835
    %v1840 = vand.u32 2147483647, %v1830
    %vm1841 = vcmp.eq.f32.partialorder %v1840, 8.507059e+37
    %v1842 = vand.u32 %v1830, 2147483648
    %v1843 = vor.u32 1.1754944e-38, %v1842
    %v1844 = vsel %vm1841, %v1843, %v1839
    %v1845 = vmul.f32 1.0, %v1844
    %v1846 = vmul.f32 %v1825, %v1547
    %v1847 = vmul.f32 %v1806, %v1826
    %v1848 = vadd.f32 %v1846, %v1847
    %v1849 = vtanh.pop %v1848
    %v1850 = vmul.f32 %v1845, %v1849
    %v1851 = vmax.f32 %v1850, 0.0
    %v1852 = vmax.f32 %v1848, 0.0
    %v1853 = vsel %vm1727, %v1851, %v1546
    %v1854 = vsel %vm1727, %v1852, %v1547
    %v1855 = vpack.c.bf16 %v1853, %v1853
    %v1856 = vpack.c.bf16 %v1723, %v1723
    %1857 = vmatpush.bf16.msra.mxu0 %v1038
    %1858 = vmatpush.bf16.msra.mxu0 %v1034
    %1859 = vmatpush.bf16.msra.mxu0 %v1030
    %1860 = vmatpush.bf16.msra.mxu0 %v1026
    %1861 = vmatpush.bf16.msra.mxu0 %v1022
    %1862 = vmatpush.bf16.msra.mxu0 %v1018
    %1863 = vmatpush.bf16.msra.mxu0 %v1014
    %1864 = vmatpush.bf16.msra.mxu0 %v1010
    %1865 = vmatmul.bf16.gmra.mxu0 %v1856
    %v1866 = vpop.f32.mrf.mxu0
    %v1867 = vadd.f32 0.0, %v1866
    %v1868 = vpop.f32.mrf.mxu0
    %1869 = vdwg.mxu0
    %1870 = vmatpush.bf16.msra.mxu0 %v1039
    %1871 = vmatpush.bf16.msra.mxu0 %v1035
    %1872 = vmatpush.bf16.msra.mxu0 %v1031
    %1873 = vmatpush.bf16.msra.mxu0 %v1027
    %1874 = vmatpush.bf16.msra.mxu0 %v1023
    %1875 = vmatpush.bf16.msra.mxu0 %v1019
    %1876 = vmatpush.bf16.msra.mxu0 %v1015
    %1877 = vmatpush.bf16.msra.mxu0 %v1011
    %1878 = vmatmul.bf16.gmra.mxu0 %v1856
    %v1879 = vpop.f32.mrf.mxu0
    %v1880 = vadd.f32 0.0, %v1879
    %v1881 = vpop.f32.mrf.mxu0
    %1882 = vdwg.mxu0
    %1883 = vmatpush.bf16.msra.mxu0 %v1040
    %1884 = vmatpush.bf16.msra.mxu0 %v1036
    %1885 = vmatpush.bf16.msra.mxu0 %v1032
    %1886 = vmatpush.bf16.msra.mxu0 %v1028
    %1887 = vmatpush.bf16.msra.mxu0 %v1024
    %1888 = vmatpush.bf16.msra.mxu0 %v1020
    %1889 = vmatpush.bf16.msra.mxu0 %v1016
    %1890 = vmatpush.bf16.msra.mxu0 %v1012
    %1891 = vmatmul.bf16.gmra.mxu0 %v1856
    %v1892 = vpop.f32.mrf.mxu0
    %v1893 = vadd.f32 0.0, %v1892
    %v1894 = vpop.f32.mrf.mxu0
    %1895 = vdwg.mxu0
    %1896 = vmatpush.bf16.msra.mxu0 %v1041
    %1897 = vmatpush.bf16.msra.mxu0 %v1037
    %1898 = vmatpush.bf16.msra.mxu0 %v1033
    %1899 = vmatpush.bf16.msra.mxu0 %v1029
    %1900 = vmatpush.bf16.msra.mxu0 %v1025
    %1901 = vmatpush.bf16.msra.mxu0 %v1021
    %1902 = vmatpush.bf16.msra.mxu0 %v1017
    %1903 = vmatpush.bf16.msra.mxu0 %v1013
    %1904 = vmatmul.bf16.gmra.mxu0 %v1856
    %v1905 = vpop.f32.mrf.mxu0
    %v1906 = vadd.f32 0.0, %v1905
    %v1907 = vpop.f32.mrf.mxu0
    %1908 = vdwg.mxu0
    %1909 = vmatpush.bf16.msra.mxu0 %v1250
    %1910 = vmatpush.bf16.msra.mxu0 %v1246
    %1911 = vmatpush.bf16.msra.mxu0 %v1242
    %1912 = vmatpush.bf16.msra.mxu0 %v1238
    %1913 = vmatpush.bf16.msra.mxu0 %v1234
    %1914 = vmatpush.bf16.msra.mxu0 %v1230
    %1915 = vmatpush.bf16.msra.mxu0 %v1226
    %1916 = vmatpush.bf16.msra.mxu0 %v1222
    %1917 = vmatmul.bf16.gmra.mxu0 %v1855
    %v1918 = vpop.f32.mrf.mxu0
    %v1919 = vadd.f32 %v1867, %v1918
    %v1920 = vpop.f32.mrf.mxu0
    %1921 = vdwg.mxu0
    %1922 = vmatpush.bf16.msra.mxu0 %v1251
    %1923 = vmatpush.bf16.msra.mxu0 %v1247
    %1924 = vmatpush.bf16.msra.mxu0 %v1243
    %1925 = vmatpush.bf16.msra.mxu0 %v1239
    %1926 = vmatpush.bf16.msra.mxu0 %v1235
    %1927 = vmatpush.bf16.msra.mxu0 %v1231
    %1928 = vmatpush.bf16.msra.mxu0 %v1227
    %1929 = vmatpush.bf16.msra.mxu0 %v1223
    %1930 = vmatmul.bf16.gmra.mxu0 %v1855
    %v1931 = vpop.f32.mrf.mxu0
    %v1932 = vadd.f32 %v1880, %v1931
    %v1933 = vpop.f32.mrf.mxu0
    %1934 = vdwg.mxu0
    %1935 = vmatpush.bf16.msra.mxu0 %v1252
    %1936 = vmatpush.bf16.msra.mxu0 %v1248
    %1937 = vmatpush.bf16.msra.mxu0 %v1244
    %1938 = vmatpush.bf16.msra.mxu0 %v1240
    %1939 = vmatpush.bf16.msra.mxu0 %v1236
    %1940 = vmatpush.bf16.msra.mxu0 %v1232
    %1941 = vmatpush.bf16.msra.mxu0 %v1228
    %1942 = vmatpush.bf16.msra.mxu0 %v1224
    %1943 = vmatmul.bf16.gmra.mxu0 %v1855
    %v1944 = vpop.f32.mrf.mxu0
    %v1945 = vadd.f32 %v1893, %v1944
    %v1946 = vpop.f32.mrf.mxu0
    %1947 = vdwg.mxu0
    %1948 = vmatpush.bf16.msra.mxu0 %v1253
    %1949 = vmatpush.bf16.msra.mxu0 %v1249
    %1950 = vmatpush.bf16.msra.mxu0 %v1245
    %1951 = vmatpush.bf16.msra.mxu0 %v1241
    %1952 = vmatpush.bf16.msra.mxu0 %v1237
    %1953 = vmatpush.bf16.msra.mxu0 %v1233
    %1954 = vmatpush.bf16.msra.mxu0 %v1229
    %1955 = vmatpush.bf16.msra.mxu0 %v1225
    %1956 = vmatmul.bf16.gmra.mxu0 %v1855
    %v1957 = vpop.f32.mrf.mxu0
    %v1958 = vadd.f32 %v1906, %v1957
    %v1959 = vpop.f32.mrf.mxu0
    %1960 = vdwg.mxu0
    %v1961 = vadd.f32 %v1919, %v1339
    %v1962 = vadd.f32 %v1932, %v1340
    %v1963 = vadd.f32 %v1945, %v1341
    %v1964 = vadd.f32 %v1958, %v1342
    %v1965 = vxor.u32 %v1961, 2147483648
    %v1966 = vmul.f32 %v1965, 1.442695
    %v1967 = vpow.pop %v1966
    %v1968 = vadd.f32 %v1967, 1.0
    %v1969 = vrcp.pop %v1968
    %v1970 = vmul.f32 %v1968, %v1969
    %v1971 = vsub.f32 1.0, %v1970
    %v1972 = vmul.f32 %v1969, %v1971
    %v1973 = vadd.f32 %v1969, %v1972
    %vm1974 = vweird.f32 %v1968
    %vm1975 = vweird.f32 %v1969
    %vm1976 = vmor %vm1974, %vm1975
    %v1977 = vsel %vm1976, %v1969, %v1973
    %v1978 = vand.u32 2147483647, %v1968
    %vm1979 = vcmp.eq.f32.partialorder %v1978, 8.507059e+37
    %v1980 = vand.u32 %v1968, 2147483648
    %v1981 = vor.u32 1.1754944e-38, %v1980
    %v1982 = vsel %vm1979, %v1981, %v1977
    %v1983 = vmul.f32 1.0, %v1982
    %v1984 = vxor.u32 %v1962, 2147483648
    %v1985 = vmul.f32 %v1984, 1.442695
    %v1986 = vpow.pop %v1985
    %v1987 = vadd.f32 %v1986, 1.0
    %v1988 = vrcp.pop %v1987
    %v1989 = vmul.f32 %v1987, %v1988
    %v1990 = vsub.f32 1.0, %v1989
    %v1991 = vmul.f32 %v1988, %v1990
    %v1992 = vadd.f32 %v1988, %v1991
    %vm1993 = vweird.f32 %v1987
    %vm1994 = vweird.f32 %v1988
    %vm1995 = vmor %vm1993, %vm1994
    %v1996 = vsel %vm1995, %v1988, %v1992
    %v1997 = vand.u32 2147483647, %v1987
    %vm1998 = vcmp.eq.f32.partialorder %v1997, 8.507059e+37
    %v1999 = vand.u32 %v1987, 2147483648
    %v2000 = vor.u32 1.1754944e-38, %v1999
    %v2001 = vsel %vm1998, %v2000, %v1996
    %v2002 = vmul.f32 1.0, %v2001
    %v2003 = vtanh.pop %v1963
    %v2004 = vxor.u32 %v1964, 2147483648
    %v2005 = vmul.f32 %v2004, 1.442695
    %v2006 = vpow.pop %v2005
    %v2007 = vadd.f32 %v2006, 1.0
    %v2008 = vrcp.pop %v2007
    %v2009 = vmul.f32 %v2007, %v2008
    %v2010 = vsub.f32 1.0, %v2009
    %v2011 = vmul.f32 %v2008, %v2010
    %v2012 = vadd.f32 %v2008, %v2011
    %vm2013 = vweird.f32 %v2007
    %vm2014 = vweird.f32 %v2008
    %vm2015 = vmor %vm2013, %vm2014
    %v2016 = vsel %vm2015, %v2008, %v2012
    %v2017 = vand.u32 2147483647, %v2007
    %vm2018 = vcmp.eq.f32.partialorder %v2017, 8.507059e+37
    %v2019 = vand.u32 %v2007, 2147483648
    %v2020 = vor.u32 1.1754944e-38, %v2019
    %v2021 = vsel %vm2018, %v2020, %v2016
    %v2022 = vmul.f32 1.0, %v2021
    %v2023 = vmul.f32 %v2002, %v1724
    %v2024 = vmul.f32 %v1983, %v2003
    %v2025 = vadd.f32 %v2023, %v2024
    %v2026 = vtanh.pop %v2025
    %v2027 = vmul.f32 %v2022, %v2026
    %v2028 = vmax.f32 %v2027, 0.0
    %v2029 = vmax.f32 %v2025, 0.0
    %v2030 = vsel %vm1727, %v2028, %v1723
    %v2031 = vsel %vm1727, %v2029, %v1724
    %s2032 = scalar_lea.vmem [#allocation6], 24
    %v2033 = vld [vmem:[%s2032] sm:$0xff]
    %vm2034 = vcmp.gt.f32.partialorder %v2033, 0.5
    %v2035 = vld [vmem:[#allocation2 + $0x60] sm:$0xff]
    %v2036 = vld [vmem:[#allocation2 + $0x68] sm:$0xff]
    %v2037 = vld [vmem:[#allocation2 + $0x70] sm:$0xff]
    %v2038 = vld [vmem:[#allocation2 + $0x78] sm:$0xff]
    %2039 = vmatpush.bf16.msra.mxu0 %v754
    %2040 = vmatpush.bf16.msra.mxu0 %v750
    %2041 = vmatpush.bf16.msra.mxu0 %v746
    %2042 = vmatpush.bf16.msra.mxu0 %v742
    %2043 = vmatpush.bf16.msra.mxu0 %v738
    %2044 = vmatpush.bf16.msra.mxu0 %v734
    %2045 = vmatpush.bf16.msra.mxu0 %v730
    %2046 = vmatpush.bf16.msra.mxu0 %v726
    %2047 = vmatmul.bf16.gmra.mxu0 %v1855
    %v2048 = vpop.f32.mrf.mxu0
    %v2049 = vadd.f32 0.0, %v2048
    %v2050 = vpop.f32.mrf.mxu0
    %2051 = vdwg.mxu0
    %2052 = vmatpush.bf16.msra.mxu0 %v755
    %2053 = vmatpush.bf16.msra.mxu0 %v751
    %2054 = vmatpush.bf16.msra.mxu0 %v747
    %2055 = vmatpush.bf16.msra.mxu0 %v743
    %2056 = vmatpush.bf16.msra.mxu0 %v739
    %2057 = vmatpush.bf16.msra.mxu0 %v735
    %2058 = vmatpush.bf16.msra.mxu0 %v731
    %2059 = vmatpush.bf16.msra.mxu0 %v727
    %2060 = vmatmul.bf16.gmra.mxu0 %v1855
    %v2061 = vpop.f32.mrf.mxu0
    %v2062 = vadd.f32 0.0, %v2061
    %v2063 = vpop.f32.mrf.mxu0
    %2064 = vdwg.mxu0
    %2065 = vmatpush.bf16.msra.mxu0 %v756
    %2066 = vmatpush.bf16.msra.mxu0 %v752
    %2067 = vmatpush.bf16.msra.mxu0 %v748
    %2068 = vmatpush.bf16.msra.mxu0 %v744
    %2069 = vmatpush.bf16.msra.mxu0 %v740
    %2070 = vmatpush.bf16.msra.mxu0 %v736
    %2071 = vmatpush.bf16.msra.mxu0 %v732
    %2072 = vmatpush.bf16.msra.mxu0 %v728
    %2073 = vmatmul.bf16.gmra.mxu0 %v1855
    %v2074 = vpop.f32.mrf.mxu0
    %v2075 = vadd.f32 0.0, %v2074
    %v2076 = vpop.f32.mrf.mxu0
    %2077 = vdwg.mxu0
    %2078 = vmatpush.bf16.msra.mxu0 %v757
    %2079 = vmatpush.bf16.msra.mxu0 %v753
    %2080 = vmatpush.bf16.msra.mxu0 %v749
    %2081 = vmatpush.bf16.msra.mxu0 %v745
    %2082 = vmatpush.bf16.msra.mxu0 %v741
    %2083 = vmatpush.bf16.msra.mxu0 %v737
    %2084 = vmatpush.bf16.msra.mxu0 %v733
    %2085 = vmatpush.bf16.msra.mxu0 %v729
    %2086 = vmatmul.bf16.gmra.mxu0 %v1855
    %v2087 = vpop.f32.mrf.mxu0
    %v2088 = vadd.f32 0.0, %v2087
    %v2089 = vpop.f32.mrf.mxu0
    %2090 = vdwg.mxu0
    %v2091 = vadd.f32 %v2035, %v2049
    %v2092 = vadd.f32 %v2036, %v2062
    %v2093 = vadd.f32 %v2037, %v2075
    %v2094 = vadd.f32 %v2038, %v2088
    %v2095 = vxor.u32 %v2091, 2147483648
    %v2096 = vmul.f32 %v2095, 1.442695
    %v2097 = vpow.pop %v2096
    %v2098 = vadd.f32 %v2097, 1.0
    %v2099 = vrcp.pop %v2098
    %v2100 = vmul.f32 %v2098, %v2099
    %v2101 = vsub.f32 1.0, %v2100
    %v2102 = vmul.f32 %v2099, %v2101
    %v2103 = vadd.f32 %v2099, %v2102
    %vm2104 = vweird.f32 %v2098
    %vm2105 = vweird.f32 %v2099
    %vm2106 = vmor %vm2104, %vm2105
    %v2107 = vsel %vm2106, %v2099, %v2103
    %v2108 = vand.u32 2147483647, %v2098
    %vm2109 = vcmp.eq.f32.partialorder %v2108, 8.507059e+37
    %v2110 = vand.u32 %v2098, 2147483648
    %v2111 = vor.u32 1.1754944e-38, %v2110
    %v2112 = vsel %vm2109, %v2111, %v2107
    %v2113 = vmul.f32 1.0, %v2112
    %v2114 = vxor.u32 %v2092, 2147483648
    %v2115 = vmul.f32 %v2114, 1.442695
    %v2116 = vpow.pop %v2115
    %v2117 = vadd.f32 %v2116, 1.0
    %v2118 = vrcp.pop %v2117
    %v2119 = vmul.f32 %v2117, %v2118
    %v2120 = vsub.f32 1.0, %v2119
    %v2121 = vmul.f32 %v2118, %v2120
    %v2122 = vadd.f32 %v2118, %v2121
    %vm2123 = vweird.f32 %v2117
    %vm2124 = vweird.f32 %v2118
    %vm2125 = vmor %vm2123, %vm2124
    %v2126 = vsel %vm2125, %v2118, %v2122
    %v2127 = vand.u32 2147483647, %v2117
    %vm2128 = vcmp.eq.f32.partialorder %v2127, 8.507059e+37
    %v2129 = vand.u32 %v2117, 2147483648
    %v2130 = vor.u32 1.1754944e-38, %v2129
    %v2131 = vsel %vm2128, %v2130, %v2126
    %v2132 = vmul.f32 1.0, %v2131
    %v2133 = vtanh.pop %v2093
    %v2134 = vxor.u32 %v2094, 2147483648
    %v2135 = vmul.f32 %v2134, 1.442695
    %v2136 = vpow.pop %v2135
    %v2137 = vadd.f32 %v2136, 1.0
    %v2138 = vrcp.pop %v2137
    %v2139 = vmul.f32 %v2137, %v2138
    %v2140 = vsub.f32 1.0, %v2139
    %v2141 = vmul.f32 %v2138, %v2140
    %v2142 = vadd.f32 %v2138, %v2141
    %vm2143 = vweird.f32 %v2137
    %vm2144 = vweird.f32 %v2138
    %vm2145 = vmor %vm2143, %vm2144
    %v2146 = vsel %vm2145, %v2138, %v2142
    %v2147 = vand.u32 2147483647, %v2137
    %vm2148 = vcmp.eq.f32.partialorder %v2147, 8.507059e+37
    %v2149 = vand.u32 %v2137, 2147483648
    %v2150 = vor.u32 1.1754944e-38, %v2149
    %v2151 = vsel %vm2148, %v2150, %v2146
    %v2152 = vmul.f32 1.0, %v2151
    %v2153 = vmul.f32 %v2132, %v1854
    %v2154 = vmul.f32 %v2113, %v2133
    %v2155 = vadd.f32 %v2153, %v2154
    %v2156 = vtanh.pop %v2155
    %v2157 = vmul.f32 %v2152, %v2156
    %v2158 = vmax.f32 %v2157, 0.0
    %v2159 = vmax.f32 %v2155, 0.0
    %v2160 = vsel %vm2034, %v2158, %v1853
    %v2161 = vsel %vm2034, %v2159, %v1854
    %v2162 = vpack.c.bf16 %v2160, %v2160
    %v2163 = vpack.c.bf16 %v2030, %v2030
    %2164 = vmatpush.bf16.msra.mxu0 %v1038
    %2165 = vmatpush.bf16.msra.mxu0 %v1034
    %2166 = vmatpush.bf16.msra.mxu0 %v1030
    %2167 = vmatpush.bf16.msra.mxu0 %v1026
    %2168 = vmatpush.bf16.msra.mxu0 %v1022
    %2169 = vmatpush.bf16.msra.mxu0 %v1018
    %2170 = vmatpush.bf16.msra.mxu0 %v1014
    %2171 = vmatpush.bf16.msra.mxu0 %v1010
    %2172 = vmatmul.bf16.gmra.mxu0 %v2163
    %v2173 = vpop.f32.mrf.mxu0
    %v2174 = vadd.f32 0.0, %v2173
    %v2175 = vpop.f32.mrf.mxu0
    %2176 = vdwg.mxu0
    %2177 = vmatpush.bf16.msra.mxu0 %v1039
    %2178 = vmatpush.bf16.msra.mxu0 %v1035
    %2179 = vmatpush.bf16.msra.mxu0 %v1031
    %2180 = vmatpush.bf16.msra.mxu0 %v1027
    %2181 = vmatpush.bf16.msra.mxu0 %v1023
    %2182 = vmatpush.bf16.msra.mxu0 %v1019
    %2183 = vmatpush.bf16.msra.mxu0 %v1015
    %2184 = vmatpush.bf16.msra.mxu0 %v1011
    %2185 = vmatmul.bf16.gmra.mxu0 %v2163
    %v2186 = vpop.f32.mrf.mxu0
    %v2187 = vadd.f32 0.0, %v2186
    %v2188 = vpop.f32.mrf.mxu0
    %2189 = vdwg.mxu0
    %2190 = vmatpush.bf16.msra.mxu0 %v1040
    %2191 = vmatpush.bf16.msra.mxu0 %v1036
    %2192 = vmatpush.bf16.msra.mxu0 %v1032
    %2193 = vmatpush.bf16.msra.mxu0 %v1028
    %2194 = vmatpush.bf16.msra.mxu0 %v1024
    %2195 = vmatpush.bf16.msra.mxu0 %v1020
    %2196 = vmatpush.bf16.msra.mxu0 %v1016
    %2197 = vmatpush.bf16.msra.mxu0 %v1012
    %2198 = vmatmul.bf16.gmra.mxu0 %v2163
    %v2199 = vpop.f32.mrf.mxu0
    %v2200 = vadd.f32 0.0, %v2199
    %v2201 = vpop.f32.mrf.mxu0
    %2202 = vdwg.mxu0
    %2203 = vmatpush.bf16.msra.mxu0 %v1041
    %2204 = vmatpush.bf16.msra.mxu0 %v1037
    %2205 = vmatpush.bf16.msra.mxu0 %v1033
    %2206 = vmatpush.bf16.msra.mxu0 %v1029
    %2207 = vmatpush.bf16.msra.mxu0 %v1025
    %2208 = vmatpush.bf16.msra.mxu0 %v1021
    %2209 = vmatpush.bf16.msra.mxu0 %v1017
    %2210 = vmatpush.bf16.msra.mxu0 %v1013
    %2211 = vmatmul.bf16.gmra.mxu0 %v2163
    %v2212 = vpop.f32.mrf.mxu0
    %v2213 = vadd.f32 0.0, %v2212
    %v2214 = vpop.f32.mrf.mxu0
    %2215 = vdwg.mxu0
    %2216 = vmatpush.bf16.msra.mxu0 %v1250
    %2217 = vmatpush.bf16.msra.mxu0 %v1246
    %2218 = vmatpush.bf16.msra.mxu0 %v1242
    %2219 = vmatpush.bf16.msra.mxu0 %v1238
    %2220 = vmatpush.bf16.msra.mxu0 %v1234
    %2221 = vmatpush.bf16.msra.mxu0 %v1230
    %2222 = vmatpush.bf16.msra.mxu0 %v1226
    %2223 = vmatpush.bf16.msra.mxu0 %v1222
    %2224 = vmatmul.bf16.gmra.mxu0 %v2162
    %v2225 = vpop.f32.mrf.mxu0
    %v2226 = vadd.f32 %v2174, %v2225
    %v2227 = vpop.f32.mrf.mxu0
    %2228 = vdwg.mxu0
    %2229 = vmatpush.bf16.msra.mxu0 %v1251
    %2230 = vmatpush.bf16.msra.mxu0 %v1247
    %2231 = vmatpush.bf16.msra.mxu0 %v1243
    %2232 = vmatpush.bf16.msra.mxu0 %v1239
    %2233 = vmatpush.bf16.msra.mxu0 %v1235
    %2234 = vmatpush.bf16.msra.mxu0 %v1231
    %2235 = vmatpush.bf16.msra.mxu0 %v1227
    %2236 = vmatpush.bf16.msra.mxu0 %v1223
    %2237 = vmatmul.bf16.gmra.mxu0 %v2162
    %v2238 = vpop.f32.mrf.mxu0
    %v2239 = vadd.f32 %v2187, %v2238
    %v2240 = vpop.f32.mrf.mxu0
    %2241 = vdwg.mxu0
    %2242 = vmatpush.bf16.msra.mxu0 %v1252
    %2243 = vmatpush.bf16.msra.mxu0 %v1248
    %2244 = vmatpush.bf16.msra.mxu0 %v1244
    %2245 = vmatpush.bf16.msra.mxu0 %v1240
    %2246 = vmatpush.bf16.msra.mxu0 %v1236
    %2247 = vmatpush.bf16.msra.mxu0 %v1232
    %2248 = vmatpush.bf16.msra.mxu0 %v1228
    %2249 = vmatpush.bf16.msra.mxu0 %v1224
    %2250 = vmatmul.bf16.gmra.mxu0 %v2162
    %v2251 = vpop.f32.mrf.mxu0
    %v2252 = vadd.f32 %v2200, %v2251
    %v2253 = vpop.f32.mrf.mxu0
    %2254 = vdwg.mxu0
    %2255 = vmatpush.bf16.msra.mxu0 %v1253
    %2256 = vmatpush.bf16.msra.mxu0 %v1249
    %2257 = vmatpush.bf16.msra.mxu0 %v1245
    %2258 = vmatpush.bf16.msra.mxu0 %v1241
    %2259 = vmatpush.bf16.msra.mxu0 %v1237
    %2260 = vmatpush.bf16.msra.mxu0 %v1233
    %2261 = vmatpush.bf16.msra.mxu0 %v1229
    %2262 = vmatpush.bf16.msra.mxu0 %v1225
    %2263 = vmatmul.bf16.gmra.mxu0 %v2162
    %v2264 = vpop.f32.mrf.mxu0
    %v2265 = vadd.f32 %v2213, %v2264
    %v2266 = vpop.f32.mrf.mxu0
    %2267 = vdwg.mxu0
    %v2268 = vadd.f32 %v2226, %v1339
    %v2269 = vadd.f32 %v2239, %v1340
    %v2270 = vadd.f32 %v2252, %v1341
    %v2271 = vadd.f32 %v2265, %v1342
    %v2272 = vxor.u32 %v2268, 2147483648
    %v2273 = vmul.f32 %v2272, 1.442695
    %v2274 = vpow.pop %v2273
    %v2275 = vadd.f32 %v2274, 1.0
    %v2276 = vrcp.pop %v2275
    %v2277 = vmul.f32 %v2275, %v2276
    %v2278 = vsub.f32 1.0, %v2277
    %v2279 = vmul.f32 %v2276, %v2278
    %v2280 = vadd.f32 %v2276, %v2279
    %vm2281 = vweird.f32 %v2275
    %vm2282 = vweird.f32 %v2276
    %vm2283 = vmor %vm2281, %vm2282
    %v2284 = vsel %vm2283, %v2276, %v2280
    %v2285 = vand.u32 2147483647, %v2275
    %vm2286 = vcmp.eq.f32.partialorder %v2285, 8.507059e+37
    %v2287 = vand.u32 %v2275, 2147483648
    %v2288 = vor.u32 1.1754944e-38, %v2287
    %v2289 = vsel %vm2286, %v2288, %v2284
    %v2290 = vmul.f32 1.0, %v2289
    %v2291 = vxor.u32 %v2269, 2147483648
    %v2292 = vmul.f32 %v2291, 1.442695
    %v2293 = vpow.pop %v2292
    %v2294 = vadd.f32 %v2293, 1.0
    %v2295 = vrcp.pop %v2294
    %v2296 = vmul.f32 %v2294, %v2295
    %v2297 = vsub.f32 1.0, %v2296
    %v2298 = vmul.f32 %v2295, %v2297
    %v2299 = vadd.f32 %v2295, %v2298
    %vm2300 = vweird.f32 %v2294
    %vm2301 = vweird.f32 %v2295
    %vm2302 = vmor %vm2300, %vm2301
    %v2303 = vsel %vm2302, %v2295, %v2299
    %v2304 = vand.u32 2147483647, %v2294
    %vm2305 = vcmp.eq.f32.partialorder %v2304, 8.507059e+37
    %v2306 = vand.u32 %v2294, 2147483648
    %v2307 = vor.u32 1.1754944e-38, %v2306
    %v2308 = vsel %vm2305, %v2307, %v2303
    %v2309 = vmul.f32 1.0, %v2308
    %v2310 = vtanh.pop %v2270
    %v2311 = vxor.u32 %v2271, 2147483648
    %v2312 = vmul.f32 %v2311, 1.442695
    %v2313 = vpow.pop %v2312
    %v2314 = vadd.f32 %v2313, 1.0
    %v2315 = vrcp.pop %v2314
    %v2316 = vmul.f32 %v2314, %v2315
    %v2317 = vsub.f32 1.0, %v2316
    %v2318 = vmul.f32 %v2315, %v2317
    %v2319 = vadd.f32 %v2315, %v2318
    %vm2320 = vweird.f32 %v2314
    %vm2321 = vweird.f32 %v2315
    %vm2322 = vmor %vm2320, %vm2321
    %v2323 = vsel %vm2322, %v2315, %v2319
    %v2324 = vand.u32 2147483647, %v2314
    %vm2325 = vcmp.eq.f32.partialorder %v2324, 8.507059e+37
    %v2326 = vand.u32 %v2314, 2147483648
    %v2327 = vor.u32 1.1754944e-38, %v2326
    %v2328 = vsel %vm2325, %v2327, %v2323
    %v2329 = vmul.f32 1.0, %v2328
    %v2330 = vmul.f32 %v2309, %v2031
    %v2331 = vmul.f32 %v2290, %v2310
    %v2332 = vadd.f32 %v2330, %v2331
    %v2333 = vtanh.pop %v2332
    %v2334 = vmul.f32 %v2329, %v2333
    %v2335 = vmax.f32 %v2334, 0.0
    %v2336 = vmax.f32 %v2332, 0.0
    %v2337 = vsel %vm2034, %v2335, %v2030
    %v2338 = vsel %vm2034, %v2336, %v2031
    %s2339 = scalar_lea.vmem [#allocation6], 32
    %v2340 = vld [vmem:[%s2339] sm:$0xff]
    %vm2341 = vcmp.gt.f32.partialorder %v2340, 0.5
    %v2342 = vld [vmem:[#allocation2 + $0x80] sm:$0xff]
    %v2343 = vld [vmem:[#allocation2 + $0x88] sm:$0xff]
    %v2344 = vld [vmem:[#allocation2 + $0x90] sm:$0xff]
    %v2345 = vld [vmem:[#allocation2 + $0x98] sm:$0xff]
    %2346 = vmatpush.bf16.msra.mxu0 %v754
    %2347 = vmatpush.bf16.msra.mxu0 %v750
    %2348 = vmatpush.bf16.msra.mxu0 %v746
    %2349 = vmatpush.bf16.msra.mxu0 %v742
    %2350 = vmatpush.bf16.msra.mxu0 %v738
    %2351 = vmatpush.bf16.msra.mxu0 %v734
    %2352 = vmatpush.bf16.msra.mxu0 %v730
    %2353 = vmatpush.bf16.msra.mxu0 %v726
    %2354 = vmatmul.bf16.gmra.mxu0 %v2162
    %v2355 = vpop.f32.mrf.mxu0
    %v2356 = vadd.f32 0.0, %v2355
    %v2357 = vpop.f32.mrf.mxu0
    %2358 = vdwg.mxu0
    %2359 = vmatpush.bf16.msra.mxu0 %v755
    %2360 = vmatpush.bf16.msra.mxu0 %v751
    %2361 = vmatpush.bf16.msra.mxu0 %v747
    %2362 = vmatpush.bf16.msra.mxu0 %v743
    %2363 = vmatpush.bf16.msra.mxu0 %v739
    %2364 = vmatpush.bf16.msra.mxu0 %v735
    %2365 = vmatpush.bf16.msra.mxu0 %v731
    %2366 = vmatpush.bf16.msra.mxu0 %v727
    %2367 = vmatmul.bf16.gmra.mxu0 %v2162
    %v2368 = vpop.f32.mrf.mxu0
    %v2369 = vadd.f32 0.0, %v2368
    %v2370 = vpop.f32.mrf.mxu0
    %2371 = vdwg.mxu0
    %2372 = vmatpush.bf16.msra.mxu0 %v756
    %2373 = vmatpush.bf16.msra.mxu0 %v752
    %2374 = vmatpush.bf16.msra.mxu0 %v748
    %2375 = vmatpush.bf16.msra.mxu0 %v744
    %2376 = vmatpush.bf16.msra.mxu0 %v740
    %2377 = vmatpush.bf16.msra.mxu0 %v736
    %2378 = vmatpush.bf16.msra.mxu0 %v732
    %2379 = vmatpush.bf16.msra.mxu0 %v728
    %2380 = vmatmul.bf16.gmra.mxu0 %v2162
    %v2381 = vpop.f32.mrf.mxu0
    %v2382 = vadd.f32 0.0, %v2381
    %v2383 = vpop.f32.mrf.mxu0
    %2384 = vdwg.mxu0
    %2385 = vmatpush.bf16.msra.mxu0 %v757
    %2386 = vmatpush.bf16.msra.mxu0 %v753
    %2387 = vmatpush.bf16.msra.mxu0 %v749
    %2388 = vmatpush.bf16.msra.mxu0 %v745
    %2389 = vmatpush.bf16.msra.mxu0 %v741
    %2390 = vmatpush.bf16.msra.mxu0 %v737
    %2391 = vmatpush.bf16.msra.mxu0 %v733
    %2392 = vmatpush.bf16.msra.mxu0 %v729
    %2393 = vmatmul.bf16.gmra.mxu0 %v2162
    %v2394 = vpop.f32.mrf.mxu0
    %v2395 = vadd.f32 0.0, %v2394
    %v2396 = vpop.f32.mrf.mxu0
    %2397 = vdwg.mxu0
    %v2398 = vadd.f32 %v2342, %v2356
    %v2399 = vadd.f32 %v2343, %v2369
    %v2400 = vadd.f32 %v2344, %v2382
    %v2401 = vadd.f32 %v2345, %v2395
    %v2402 = vxor.u32 %v2398, 2147483648
    %v2403 = vmul.f32 %v2402, 1.442695
    %v2404 = vpow.pop %v2403
    %v2405 = vadd.f32 %v2404, 1.0
    %v2406 = vrcp.pop %v2405
    %v2407 = vmul.f32 %v2405, %v2406
    %v2408 = vsub.f32 1.0, %v2407
    %v2409 = vmul.f32 %v2406, %v2408
    %v2410 = vadd.f32 %v2406, %v2409
    %vm2411 = vweird.f32 %v2405
    %vm2412 = vweird.f32 %v2406
    %vm2413 = vmor %vm2411, %vm2412
    %v2414 = vsel %vm2413, %v2406, %v2410
    %v2415 = vand.u32 2147483647, %v2405
    %vm2416 = vcmp.eq.f32.partialorder %v2415, 8.507059e+37
    %v2417 = vand.u32 %v2405, 2147483648
    %v2418 = vor.u32 1.1754944e-38, %v2417
    %v2419 = vsel %vm2416, %v2418, %v2414
    %v2420 = vmul.f32 1.0, %v2419
    %v2421 = vxor.u32 %v2399, 2147483648
    %v2422 = vmul.f32 %v2421, 1.442695
    %v2423 = vpow.pop %v2422
    %v2424 = vadd.f32 %v2423, 1.0
    %v2425 = vrcp.pop %v2424
    %v2426 = vmul.f32 %v2424, %v2425
    %v2427 = vsub.f32 1.0, %v2426
    %v2428 = vmul.f32 %v2425, %v2427
    %v2429 = vadd.f32 %v2425, %v2428
    %vm2430 = vweird.f32 %v2424
    %vm2431 = vweird.f32 %v2425
    %vm2432 = vmor %vm2430, %vm2431
    %v2433 = vsel %vm2432, %v2425, %v2429
    %v2434 = vand.u32 2147483647, %v2424
    %vm2435 = vcmp.eq.f32.partialorder %v2434, 8.507059e+37
    %v2436 = vand.u32 %v2424, 2147483648
    %v2437 = vor.u32 1.1754944e-38, %v2436
    %v2438 = vsel %vm2435, %v2437, %v2433
    %v2439 = vmul.f32 1.0, %v2438
    %v2440 = vtanh.pop %v2400
    %v2441 = vxor.u32 %v2401, 2147483648
    %v2442 = vmul.f32 %v2441, 1.442695
    %v2443 = vpow.pop %v2442
    %v2444 = vadd.f32 %v2443, 1.0
    %v2445 = vrcp.pop %v2444
    %v2446 = vmul.f32 %v2444, %v2445
    %v2447 = vsub.f32 1.0, %v2446
    %v2448 = vmul.f32 %v2445, %v2447
    %v2449 = vadd.f32 %v2445, %v2448
    %vm2450 = vweird.f32 %v2444
    %vm2451 = vweird.f32 %v2445
    %vm2452 = vmor %vm2450, %vm2451
    %v2453 = vsel %vm2452, %v2445, %v2449
    %v2454 = vand.u32 2147483647, %v2444
    %vm2455 = vcmp.eq.f32.partialorder %v2454, 8.507059e+37
    %v2456 = vand.u32 %v2444, 2147483648
    %v2457 = vor.u32 1.1754944e-38, %v2456
    %v2458 = vsel %vm2455, %v2457, %v2453
    %v2459 = vmul.f32 1.0, %v2458
    %v2460 = vmul.f32 %v2439, %v2161
    %v2461 = vmul.f32 %v2420, %v2440
    %v2462 = vadd.f32 %v2460, %v2461
    %v2463 = vtanh.pop %v2462
    %v2464 = vmul.f32 %v2459, %v2463
    %v2465 = vmax.f32 %v2464, 0.0
    %v2466 = vmax.f32 %v2462, 0.0
    %v2467 = vsel %vm2341, %v2465, %v2160
    %v2468 = vsel %vm2341, %v2466, %v2161
    %v2469 = vpack.c.bf16 %v2467, %v2467
    %v2470 = vpack.c.bf16 %v2337, %v2337
    %2471 = vmatpush.bf16.msra.mxu0 %v1038
    %2472 = vmatpush.bf16.msra.mxu0 %v1034
    %2473 = vmatpush.bf16.msra.mxu0 %v1030
    %2474 = vmatpush.bf16.msra.mxu0 %v1026
    %2475 = vmatpush.bf16.msra.mxu0 %v1022
    %2476 = vmatpush.bf16.msra.mxu0 %v1018
    %2477 = vmatpush.bf16.msra.mxu0 %v1014
    %2478 = vmatpush.bf16.msra.mxu0 %v1010
    %2479 = vmatmul.bf16.gmra.mxu0 %v2470
    %v2480 = vpop.f32.mrf.mxu0
    %v2481 = vadd.f32 0.0, %v2480
    %v2482 = vpop.f32.mrf.mxu0
    %2483 = vdwg.mxu0
    %2484 = vmatpush.bf16.msra.mxu0 %v1039
    %2485 = vmatpush.bf16.msra.mxu0 %v1035
    %2486 = vmatpush.bf16.msra.mxu0 %v1031
    %2487 = vmatpush.bf16.msra.mxu0 %v1027
    %2488 = vmatpush.bf16.msra.mxu0 %v1023
    %2489 = vmatpush.bf16.msra.mxu0 %v1019
    %2490 = vmatpush.bf16.msra.mxu0 %v1015
    %2491 = vmatpush.bf16.msra.mxu0 %v1011
    %2492 = vmatmul.bf16.gmra.mxu0 %v2470
    %v2493 = vpop.f32.mrf.mxu0
    %v2494 = vadd.f32 0.0, %v2493
    %v2495 = vpop.f32.mrf.mxu0
    %2496 = vdwg.mxu0
    %2497 = vmatpush.bf16.msra.mxu0 %v1040
    %2498 = vmatpush.bf16.msra.mxu0 %v1036
    %2499 = vmatpush.bf16.msra.mxu0 %v1032
    %2500 = vmatpush.bf16.msra.mxu0 %v1028
    %2501 = vmatpush.bf16.msra.mxu0 %v1024
    %2502 = vmatpush.bf16.msra.mxu0 %v1020
    %2503 = vmatpush.bf16.msra.mxu0 %v1016
    %2504 = vmatpush.bf16.msra.mxu0 %v1012
    %2505 = vmatmul.bf16.gmra.mxu0 %v2470
    %v2506 = vpop.f32.mrf.mxu0
    %v2507 = vadd.f32 0.0, %v2506
    %v2508 = vpop.f32.mrf.mxu0
    %2509 = vdwg.mxu0
    %2510 = vmatpush.bf16.msra.mxu0 %v1041
    %2511 = vmatpush.bf16.msra.mxu0 %v1037
    %2512 = vmatpush.bf16.msra.mxu0 %v1033
    %2513 = vmatpush.bf16.msra.mxu0 %v1029
    %2514 = vmatpush.bf16.msra.mxu0 %v1025
    %2515 = vmatpush.bf16.msra.mxu0 %v1021
    %2516 = vmatpush.bf16.msra.mxu0 %v1017
    %2517 = vmatpush.bf16.msra.mxu0 %v1013
    %2518 = vmatmul.bf16.gmra.mxu0 %v2470
    %v2519 = vpop.f32.mrf.mxu0
    %v2520 = vadd.f32 0.0, %v2519
    %v2521 = vpop.f32.mrf.mxu0
    %2522 = vdwg.mxu0
    %2523 = vmatpush.bf16.msra.mxu0 %v1250
    %2524 = vmatpush.bf16.msra.mxu0 %v1246
    %2525 = vmatpush.bf16.msra.mxu0 %v1242
    %2526 = vmatpush.bf16.msra.mxu0 %v1238
    %2527 = vmatpush.bf16.msra.mxu0 %v1234
    %2528 = vmatpush.bf16.msra.mxu0 %v1230
    %2529 = vmatpush.bf16.msra.mxu0 %v1226
    %2530 = vmatpush.bf16.msra.mxu0 %v1222
    %2531 = vmatmul.bf16.gmra.mxu0 %v2469
    %v2532 = vpop.f32.mrf.mxu0
    %v2533 = vadd.f32 %v2481, %v2532
    %v2534 = vpop.f32.mrf.mxu0
    %2535 = vdwg.mxu0
    %2536 = vmatpush.bf16.msra.mxu0 %v1251
    %2537 = vmatpush.bf16.msra.mxu0 %v1247
    %2538 = vmatpush.bf16.msra.mxu0 %v1243
    %2539 = vmatpush.bf16.msra.mxu0 %v1239
    %2540 = vmatpush.bf16.msra.mxu0 %v1235
    %2541 = vmatpush.bf16.msra.mxu0 %v1231
    %2542 = vmatpush.bf16.msra.mxu0 %v1227
    %2543 = vmatpush.bf16.msra.mxu0 %v1223
    %2544 = vmatmul.bf16.gmra.mxu0 %v2469
    %v2545 = vpop.f32.mrf.mxu0
    %v2546 = vadd.f32 %v2494, %v2545
    %v2547 = vpop.f32.mrf.mxu0
    %2548 = vdwg.mxu0
    %2549 = vmatpush.bf16.msra.mxu0 %v1252
    %2550 = vmatpush.bf16.msra.mxu0 %v1248
    %2551 = vmatpush.bf16.msra.mxu0 %v1244
    %2552 = vmatpush.bf16.msra.mxu0 %v1240
    %2553 = vmatpush.bf16.msra.mxu0 %v1236
    %2554 = vmatpush.bf16.msra.mxu0 %v1232
    %2555 = vmatpush.bf16.msra.mxu0 %v1228
    %2556 = vmatpush.bf16.msra.mxu0 %v1224
    %2557 = vmatmul.bf16.gmra.mxu0 %v2469
    %v2558 = vpop.f32.mrf.mxu0
    %v2559 = vadd.f32 %v2507, %v2558
    %v2560 = vpop.f32.mrf.mxu0
    %2561 = vdwg.mxu0
    %2562 = vmatpush.bf16.msra.mxu0 %v1253
    %2563 = vmatpush.bf16.msra.mxu0 %v1249
    %2564 = vmatpush.bf16.msra.mxu0 %v1245
    %2565 = vmatpush.bf16.msra.mxu0 %v1241
    %2566 = vmatpush.bf16.msra.mxu0 %v1237
    %2567 = vmatpush.bf16.msra.mxu0 %v1233
    %2568 = vmatpush.bf16.msra.mxu0 %v1229
    %2569 = vmatpush.bf16.msra.mxu0 %v1225
    %2570 = vmatmul.bf16.gmra.mxu0 %v2469
    %v2571 = vpop.f32.mrf.mxu0
    %v2572 = vadd.f32 %v2520, %v2571
    %v2573 = vpop.f32.mrf.mxu0
    %2574 = vdwg.mxu0
    %v2575 = vadd.f32 %v2533, %v1339
    %v2576 = vadd.f32 %v2546, %v1340
    %v2577 = vadd.f32 %v2559, %v1341
    %v2578 = vadd.f32 %v2572, %v1342
    %v2579 = vxor.u32 %v2575, 2147483648
    %v2580 = vmul.f32 %v2579, 1.442695
    %v2581 = vpow.pop %v2580
    %v2582 = vadd.f32 %v2581, 1.0
    %v2583 = vrcp.pop %v2582
    %v2584 = vmul.f32 %v2582, %v2583
    %v2585 = vsub.f32 1.0, %v2584
    %v2586 = vmul.f32 %v2583, %v2585
    %v2587 = vadd.f32 %v2583, %v2586
    %vm2588 = vweird.f32 %v2582
    %vm2589 = vweird.f32 %v2583
    %vm2590 = vmor %vm2588, %vm2589
    %v2591 = vsel %vm2590, %v2583, %v2587
    %v2592 = vand.u32 2147483647, %v2582
    %vm2593 = vcmp.eq.f32.partialorder %v2592, 8.507059e+37
    %v2594 = vand.u32 %v2582, 2147483648
    %v2595 = vor.u32 1.1754944e-38, %v2594
    %v2596 = vsel %vm2593, %v2595, %v2591
    %v2597 = vmul.f32 1.0, %v2596
    %v2598 = vxor.u32 %v2576, 2147483648
    %v2599 = vmul.f32 %v2598, 1.442695
    %v2600 = vpow.pop %v2599
    %v2601 = vadd.f32 %v2600, 1.0
    %v2602 = vrcp.pop %v2601
    %v2603 = vmul.f32 %v2601, %v2602
    %v2604 = vsub.f32 1.0, %v2603
    %v2605 = vmul.f32 %v2602, %v2604
    %v2606 = vadd.f32 %v2602, %v2605
    %vm2607 = vweird.f32 %v2601
    %vm2608 = vweird.f32 %v2602
    %vm2609 = vmor %vm2607, %vm2608
    %v2610 = vsel %vm2609, %v2602, %v2606
    %v2611 = vand.u32 2147483647, %v2601
    %vm2612 = vcmp.eq.f32.partialorder %v2611, 8.507059e+37
    %v2613 = vand.u32 %v2601, 2147483648
    %v2614 = vor.u32 1.1754944e-38, %v2613
    %v2615 = vsel %vm2612, %v2614, %v2610
    %v2616 = vmul.f32 1.0, %v2615
    %v2617 = vtanh.pop %v2577
    %v2618 = vxor.u32 %v2578, 2147483648
    %v2619 = vmul.f32 %v2618, 1.442695
    %v2620 = vpow.pop %v2619
    %v2621 = vadd.f32 %v2620, 1.0
    %v2622 = vrcp.pop %v2621
    %v2623 = vmul.f32 %v2621, %v2622
    %v2624 = vsub.f32 1.0, %v2623
    %v2625 = vmul.f32 %v2622, %v2624
    %v2626 = vadd.f32 %v2622, %v2625
    %vm2627 = vweird.f32 %v2621
    %vm2628 = vweird.f32 %v2622
    %vm2629 = vmor %vm2627, %vm2628
    %v2630 = vsel %vm2629, %v2622, %v2626
    %v2631 = vand.u32 2147483647, %v2621
    %vm2632 = vcmp.eq.f32.partialorder %v2631, 8.507059e+37
    %v2633 = vand.u32 %v2621, 2147483648
    %v2634 = vor.u32 1.1754944e-38, %v2633
    %v2635 = vsel %vm2632, %v2634, %v2630
    %v2636 = vmul.f32 1.0, %v2635
    %v2637 = vmul.f32 %v2616, %v2338
    %v2638 = vmul.f32 %v2597, %v2617
    %v2639 = vadd.f32 %v2637, %v2638
    %v2640 = vtanh.pop %v2639
    %v2641 = vmul.f32 %v2636, %v2640
    %v2642 = vmax.f32 %v2641, 0.0
    %v2643 = vmax.f32 %v2639, 0.0
    %v2644 = vsel %vm2341, %v2642, %v2337
    %v2645 = vsel %vm2341, %v2643, %v2338
    %s2646 = scalar_lea.vmem [#allocation6], 40
    %v2647 = vld [vmem:[%s2646] sm:$0xff]
    %vm2648 = vcmp.gt.f32.partialorder %v2647, 0.5
    %v2649 = vld [vmem:[#allocation2 + $0xa0] sm:$0xff]
    %v2650 = vld [vmem:[#allocation2 + $0xa8] sm:$0xff]
    %v2651 = vld [vmem:[#allocation2 + $0xb0] sm:$0xff]
    %v2652 = vld [vmem:[#allocation2 + $0xb8] sm:$0xff]
    %2653 = vmatpush.bf16.msra.mxu0 %v754
    %2654 = vmatpush.bf16.msra.mxu0 %v750
    %2655 = vmatpush.bf16.msra.mxu0 %v746
    %2656 = vmatpush.bf16.msra.mxu0 %v742
    %2657 = vmatpush.bf16.msra.mxu0 %v738
    %2658 = vmatpush.bf16.msra.mxu0 %v734
    %2659 = vmatpush.bf16.msra.mxu0 %v730
    %2660 = vmatpush.bf16.msra.mxu0 %v726
    %2661 = vmatmul.bf16.gmra.mxu0 %v2469
    %v2662 = vpop.f32.mrf.mxu0
    %v2663 = vadd.f32 0.0, %v2662
    %v2664 = vpop.f32.mrf.mxu0
    %2665 = vdwg.mxu0
    %2666 = vmatpush.bf16.msra.mxu0 %v755
    %2667 = vmatpush.bf16.msra.mxu0 %v751
    %2668 = vmatpush.bf16.msra.mxu0 %v747
    %2669 = vmatpush.bf16.msra.mxu0 %v743
    %2670 = vmatpush.bf16.msra.mxu0 %v739
    %2671 = vmatpush.bf16.msra.mxu0 %v735
    %2672 = vmatpush.bf16.msra.mxu0 %v731
    %2673 = vmatpush.bf16.msra.mxu0 %v727
    %2674 = vmatmul.bf16.gmra.mxu0 %v2469
    %v2675 = vpop.f32.mrf.mxu0
    %v2676 = vadd.f32 0.0, %v2675
    %v2677 = vpop.f32.mrf.mxu0
    %2678 = vdwg.mxu0
    %2679 = vmatpush.bf16.msra.mxu0 %v756
    %2680 = vmatpush.bf16.msra.mxu0 %v752
    %2681 = vmatpush.bf16.msra.mxu0 %v748
    %2682 = vmatpush.bf16.msra.mxu0 %v744
    %2683 = vmatpush.bf16.msra.mxu0 %v740
    %2684 = vmatpush.bf16.msra.mxu0 %v736
    %2685 = vmatpush.bf16.msra.mxu0 %v732
    %2686 = vmatpush.bf16.msra.mxu0 %v728
    %2687 = vmatmul.bf16.gmra.mxu0 %v2469
    %v2688 = vpop.f32.mrf.mxu0
    %v2689 = vadd.f32 0.0, %v2688
    %v2690 = vpop.f32.mrf.mxu0
    %2691 = vdwg.mxu0
    %2692 = vmatpush.bf16.msra.mxu0 %v757
    %2693 = vmatpush.bf16.msra.mxu0 %v753
    %2694 = vmatpush.bf16.msra.mxu0 %v749
    %2695 = vmatpush.bf16.msra.mxu0 %v745
    %2696 = vmatpush.bf16.msra.mxu0 %v741
    %2697 = vmatpush.bf16.msra.mxu0 %v737
    %2698 = vmatpush.bf16.msra.mxu0 %v733
    %2699 = vmatpush.bf16.msra.mxu0 %v729
    %2700 = vmatmul.bf16.gmra.mxu0 %v2469
    %v2701 = vpop.f32.mrf.mxu0
    %v2702 = vadd.f32 0.0, %v2701
    %v2703 = vpop.f32.mrf.mxu0
    %2704 = vdwg.mxu0
    %v2705 = vadd.f32 %v2649, %v2663
    %v2706 = vadd.f32 %v2650, %v2676
    %v2707 = vadd.f32 %v2651, %v2689
    %v2708 = vadd.f32 %v2652, %v2702
    %v2709 = vxor.u32 %v2705, 2147483648
    %v2710 = vmul.f32 %v2709, 1.442695
    %v2711 = vpow.pop %v2710
    %v2712 = vadd.f32 %v2711, 1.0
    %v2713 = vrcp.pop %v2712
    %v2714 = vmul.f32 %v2712, %v2713
    %v2715 = vsub.f32 1.0, %v2714
    %v2716 = vmul.f32 %v2713, %v2715
    %v2717 = vadd.f32 %v2713, %v2716
    %vm2718 = vweird.f32 %v2712
    %vm2719 = vweird.f32 %v2713
    %vm2720 = vmor %vm2718, %vm2719
    %v2721 = vsel %vm2720, %v2713, %v2717
    %v2722 = vand.u32 2147483647, %v2712
    %vm2723 = vcmp.eq.f32.partialorder %v2722, 8.507059e+37
    %v2724 = vand.u32 %v2712, 2147483648
    %v2725 = vor.u32 1.1754944e-38, %v2724
    %v2726 = vsel %vm2723, %v2725, %v2721
    %v2727 = vmul.f32 1.0, %v2726
    %v2728 = vxor.u32 %v2706, 2147483648
    %v2729 = vmul.f32 %v2728, 1.442695
    %v2730 = vpow.pop %v2729
    %v2731 = vadd.f32 %v2730, 1.0
    %v2732 = vrcp.pop %v2731
    %v2733 = vmul.f32 %v2731, %v2732
    %v2734 = vsub.f32 1.0, %v2733
    %v2735 = vmul.f32 %v2732, %v2734
    %v2736 = vadd.f32 %v2732, %v2735
    %vm2737 = vweird.f32 %v2731
    %vm2738 = vweird.f32 %v2732
    %vm2739 = vmor %vm2737, %vm2738
    %v2740 = vsel %vm2739, %v2732, %v2736
    %v2741 = vand.u32 2147483647, %v2731
    %vm2742 = vcmp.eq.f32.partialorder %v2741, 8.507059e+37
    %v2743 = vand.u32 %v2731, 2147483648
    %v2744 = vor.u32 1.1754944e-38, %v2743
    %v2745 = vsel %vm2742, %v2744, %v2740
    %v2746 = vmul.f32 1.0, %v2745
    %v2747 = vtanh.pop %v2707
    %v2748 = vxor.u32 %v2708, 2147483648
    %v2749 = vmul.f32 %v2748, 1.442695
    %v2750 = vpow.pop %v2749
    %v2751 = vadd.f32 %v2750, 1.0
    %v2752 = vrcp.pop %v2751
    %v2753 = vmul.f32 %v2751, %v2752
    %v2754 = vsub.f32 1.0, %v2753
    %v2755 = vmul.f32 %v2752, %v2754
    %v2756 = vadd.f32 %v2752, %v2755
    %vm2757 = vweird.f32 %v2751
    %vm2758 = vweird.f32 %v2752
    %vm2759 = vmor %vm2757, %vm2758
    %v2760 = vsel %vm2759, %v2752, %v2756
    %v2761 = vand.u32 2147483647, %v2751
    %vm2762 = vcmp.eq.f32.partialorder %v2761, 8.507059e+37
    %v2763 = vand.u32 %v2751, 2147483648
    %v2764 = vor.u32 1.1754944e-38, %v2763
    %v2765 = vsel %vm2762, %v2764, %v2760
    %v2766 = vmul.f32 1.0, %v2765
    %v2767 = vmul.f32 %v2746, %v2468
    %v2768 = vmul.f32 %v2727, %v2747
    %v2769 = vadd.f32 %v2767, %v2768
    %v2770 = vtanh.pop %v2769
    %v2771 = vmul.f32 %v2766, %v2770
    %v2772 = vmax.f32 %v2771, 0.0
    %v2773 = vmax.f32 %v2769, 0.0
    %v2774 = vsel %vm2648, %v2772, %v2467
    %v2775 = vsel %vm2648, %v2773, %v2468
    %v2776 = vpack.c.bf16 %v2774, %v2774
    %v2777 = vpack.c.bf16 %v2644, %v2644
    %2778 = vmatpush.bf16.msra.mxu0 %v1038
    %2779 = vmatpush.bf16.msra.mxu0 %v1034
    %2780 = vmatpush.bf16.msra.mxu0 %v1030
    %2781 = vmatpush.bf16.msra.mxu0 %v1026
    %2782 = vmatpush.bf16.msra.mxu0 %v1022
    %2783 = vmatpush.bf16.msra.mxu0 %v1018
    %2784 = vmatpush.bf16.msra.mxu0 %v1014
    %2785 = vmatpush.bf16.msra.mxu0 %v1010
    %2786 = vmatmul.bf16.gmra.mxu0 %v2777
    %v2787 = vpop.f32.mrf.mxu0
    %v2788 = vadd.f32 0.0, %v2787
    %v2789 = vpop.f32.mrf.mxu0
    %2790 = vdwg.mxu0
    %2791 = vmatpush.bf16.msra.mxu0 %v1039
    %2792 = vmatpush.bf16.msra.mxu0 %v1035
    %2793 = vmatpush.bf16.msra.mxu0 %v1031
    %2794 = vmatpush.bf16.msra.mxu0 %v1027
    %2795 = vmatpush.bf16.msra.mxu0 %v1023
    %2796 = vmatpush.bf16.msra.mxu0 %v1019
    %2797 = vmatpush.bf16.msra.mxu0 %v1015
    %2798 = vmatpush.bf16.msra.mxu0 %v1011
    %2799 = vmatmul.bf16.gmra.mxu0 %v2777
    %v2800 = vpop.f32.mrf.mxu0
    %v2801 = vadd.f32 0.0, %v2800
    %v2802 = vpop.f32.mrf.mxu0
    %2803 = vdwg.mxu0
    %2804 = vmatpush.bf16.msra.mxu0 %v1040
    %2805 = vmatpush.bf16.msra.mxu0 %v1036
    %2806 = vmatpush.bf16.msra.mxu0 %v1032
    %2807 = vmatpush.bf16.msra.mxu0 %v1028
    %2808 = vmatpush.bf16.msra.mxu0 %v1024
    %2809 = vmatpush.bf16.msra.mxu0 %v1020
    %2810 = vmatpush.bf16.msra.mxu0 %v1016
    %2811 = vmatpush.bf16.msra.mxu0 %v1012
    %2812 = vmatmul.bf16.gmra.mxu0 %v2777
    %v2813 = vpop.f32.mrf.mxu0
    %v2814 = vadd.f32 0.0, %v2813
    %v2815 = vpop.f32.mrf.mxu0
    %2816 = vdwg.mxu0
    %2817 = vmatpush.bf16.msra.mxu0 %v1041
    %2818 = vmatpush.bf16.msra.mxu0 %v1037
    %2819 = vmatpush.bf16.msra.mxu0 %v1033
    %2820 = vmatpush.bf16.msra.mxu0 %v1029
    %2821 = vmatpush.bf16.msra.mxu0 %v1025
    %2822 = vmatpush.bf16.msra.mxu0 %v1021
    %2823 = vmatpush.bf16.msra.mxu0 %v1017
    %2824 = vmatpush.bf16.msra.mxu0 %v1013
    %2825 = vmatmul.bf16.gmra.mxu0 %v2777
    %v2826 = vpop.f32.mrf.mxu0
    %v2827 = vadd.f32 0.0, %v2826
    %v2828 = vpop.f32.mrf.mxu0
    %2829 = vdwg.mxu0
    %2830 = vmatpush.bf16.msra.mxu0 %v1250
    %2831 = vmatpush.bf16.msra.mxu0 %v1246
    %2832 = vmatpush.bf16.msra.mxu0 %v1242
    %2833 = vmatpush.bf16.msra.mxu0 %v1238
    %2834 = vmatpush.bf16.msra.mxu0 %v1234
    %2835 = vmatpush.bf16.msra.mxu0 %v1230
    %2836 = vmatpush.bf16.msra.mxu0 %v1226
    %2837 = vmatpush.bf16.msra.mxu0 %v1222
    %2838 = vmatmul.bf16.gmra.mxu0 %v2776
    %v2839 = vpop.f32.mrf.mxu0
    %v2840 = vadd.f32 %v2788, %v2839
    %v2841 = vpop.f32.mrf.mxu0
    %2842 = vdwg.mxu0
    %2843 = vmatpush.bf16.msra.mxu0 %v1251
    %2844 = vmatpush.bf16.msra.mxu0 %v1247
    %2845 = vmatpush.bf16.msra.mxu0 %v1243
    %2846 = vmatpush.bf16.msra.mxu0 %v1239
    %2847 = vmatpush.bf16.msra.mxu0 %v1235
    %2848 = vmatpush.bf16.msra.mxu0 %v1231
    %2849 = vmatpush.bf16.msra.mxu0 %v1227
    %2850 = vmatpush.bf16.msra.mxu0 %v1223
    %2851 = vmatmul.bf16.gmra.mxu0 %v2776
    %v2852 = vpop.f32.mrf.mxu0
    %v2853 = vadd.f32 %v2801, %v2852
    %v2854 = vpop.f32.mrf.mxu0
    %2855 = vdwg.mxu0
    %2856 = vmatpush.bf16.msra.mxu0 %v1252
    %2857 = vmatpush.bf16.msra.mxu0 %v1248
    %2858 = vmatpush.bf16.msra.mxu0 %v1244
    %2859 = vmatpush.bf16.msra.mxu0 %v1240
    %2860 = vmatpush.bf16.msra.mxu0 %v1236
    %2861 = vmatpush.bf16.msra.mxu0 %v1232
    %2862 = vmatpush.bf16.msra.mxu0 %v1228
    %2863 = vmatpush.bf16.msra.mxu0 %v1224
    %2864 = vmatmul.bf16.gmra.mxu0 %v2776
    %v2865 = vpop.f32.mrf.mxu0
    %v2866 = vadd.f32 %v2814, %v2865
    %v2867 = vpop.f32.mrf.mxu0
    %2868 = vdwg.mxu0
    %2869 = vmatpush.bf16.msra.mxu0 %v1253
    %2870 = vmatpush.bf16.msra.mxu0 %v1249
    %2871 = vmatpush.bf16.msra.mxu0 %v1245
    %2872 = vmatpush.bf16.msra.mxu0 %v1241
    %2873 = vmatpush.bf16.msra.mxu0 %v1237
    %2874 = vmatpush.bf16.msra.mxu0 %v1233
    %2875 = vmatpush.bf16.msra.mxu0 %v1229
    %2876 = vmatpush.bf16.msra.mxu0 %v1225
    %2877 = vmatmul.bf16.gmra.mxu0 %v2776
    %v2878 = vpop.f32.mrf.mxu0
    %v2879 = vadd.f32 %v2827, %v2878
    %v2880 = vpop.f32.mrf.mxu0
    %2881 = vdwg.mxu0
    %v2882 = vadd.f32 %v2840, %v1339
    %v2883 = vadd.f32 %v2853, %v1340
    %v2884 = vadd.f32 %v2866, %v1341
    %v2885 = vadd.f32 %v2879, %v1342
    %v2886 = vxor.u32 %v2882, 2147483648
    %v2887 = vmul.f32 %v2886, 1.442695
    %v2888 = vpow.pop %v2887
    %v2889 = vadd.f32 %v2888, 1.0
    %v2890 = vrcp.pop %v2889
    %v2891 = vmul.f32 %v2889, %v2890
    %v2892 = vsub.f32 1.0, %v2891
    %v2893 = vmul.f32 %v2890, %v2892
    %v2894 = vadd.f32 %v2890, %v2893
    %vm2895 = vweird.f32 %v2889
    %vm2896 = vweird.f32 %v2890
    %vm2897 = vmor %vm2895, %vm2896
    %v2898 = vsel %vm2897, %v2890, %v2894
    %v2899 = vand.u32 2147483647, %v2889
    %vm2900 = vcmp.eq.f32.partialorder %v2899, 8.507059e+37
    %v2901 = vand.u32 %v2889, 2147483648
    %v2902 = vor.u32 1.1754944e-38, %v2901
    %v2903 = vsel %vm2900, %v2902, %v2898
    %v2904 = vmul.f32 1.0, %v2903
    %v2905 = vxor.u32 %v2883, 2147483648
    %v2906 = vmul.f32 %v2905, 1.442695
    %v2907 = vpow.pop %v2906
    %v2908 = vadd.f32 %v2907, 1.0
    %v2909 = vrcp.pop %v2908
    %v2910 = vmul.f32 %v2908, %v2909
    %v2911 = vsub.f32 1.0, %v2910
    %v2912 = vmul.f32 %v2909, %v2911
    %v2913 = vadd.f32 %v2909, %v2912
    %vm2914 = vweird.f32 %v2908
    %vm2915 = vweird.f32 %v2909
    %vm2916 = vmor %vm2914, %vm2915
    %v2917 = vsel %vm2916, %v2909, %v2913
    %v2918 = vand.u32 2147483647, %v2908
    %vm2919 = vcmp.eq.f32.partialorder %v2918, 8.507059e+37
    %v2920 = vand.u32 %v2908, 2147483648
    %v2921 = vor.u32 1.1754944e-38, %v2920
    %v2922 = vsel %vm2919, %v2921, %v2917
    %v2923 = vmul.f32 1.0, %v2922
    %v2924 = vtanh.pop %v2884
    %v2925 = vxor.u32 %v2885, 2147483648
    %v2926 = vmul.f32 %v2925, 1.442695
    %v2927 = vpow.pop %v2926
    %v2928 = vadd.f32 %v2927, 1.0
    %v2929 = vrcp.pop %v2928
    %v2930 = vmul.f32 %v2928, %v2929
    %v2931 = vsub.f32 1.0, %v2930
    %v2932 = vmul.f32 %v2929, %v2931
    %v2933 = vadd.f32 %v2929, %v2932
    %vm2934 = vweird.f32 %v2928
    %vm2935 = vweird.f32 %v2929
    %vm2936 = vmor %vm2934, %vm2935
    %v2937 = vsel %vm2936, %v2929, %v2933
    %v2938 = vand.u32 2147483647, %v2928
    %vm2939 = vcmp.eq.f32.partialorder %v2938, 8.507059e+37
    %v2940 = vand.u32 %v2928, 2147483648
    %v2941 = vor.u32 1.1754944e-38, %v2940
    %v2942 = vsel %vm2939, %v2941, %v2937
    %v2943 = vmul.f32 1.0, %v2942
    %v2944 = vmul.f32 %v2923, %v2645
    %v2945 = vmul.f32 %v2904, %v2924
    %v2946 = vadd.f32 %v2944, %v2945
    %v2947 = vtanh.pop %v2946
    %v2948 = vmul.f32 %v2943, %v2947
    %v2949 = vmax.f32 %v2948, 0.0
    %v2950 = vmax.f32 %v2946, 0.0
    %v2951 = vsel %vm2648, %v2949, %v2644
    %v2952 = vsel %vm2648, %v2950, %v2645
    %s2953 = scalar_lea.vmem [#allocation6], 48
    %v2954 = vld [vmem:[%s2953] sm:$0xff]
    %vm2955 = vcmp.gt.f32.partialorder %v2954, 0.5
    %v2956 = vld [vmem:[#allocation2 + $0xc0] sm:$0xff]
    %v2957 = vld [vmem:[#allocation2 + $0xc8] sm:$0xff]
    %v2958 = vld [vmem:[#allocation2 + $0xd0] sm:$0xff]
    %v2959 = vld [vmem:[#allocation2 + $0xd8] sm:$0xff]
    %2960 = vmatpush.bf16.msra.mxu0 %v754
    %2961 = vmatpush.bf16.msra.mxu0 %v750
    %2962 = vmatpush.bf16.msra.mxu0 %v746
    %2963 = vmatpush.bf16.msra.mxu0 %v742
    %2964 = vmatpush.bf16.msra.mxu0 %v738
    %2965 = vmatpush.bf16.msra.mxu0 %v734
    %2966 = vmatpush.bf16.msra.mxu0 %v730
    %2967 = vmatpush.bf16.msra.mxu0 %v726
    %2968 = vmatmul.bf16.gmra.mxu0 %v2776
    %v2969 = vpop.f32.mrf.mxu0
    %v2970 = vadd.f32 0.0, %v2969
    %v2971 = vpop.f32.mrf.mxu0
    %2972 = vdwg.mxu0
    %2973 = vmatpush.bf16.msra.mxu0 %v755
    %2974 = vmatpush.bf16.msra.mxu0 %v751
    %2975 = vmatpush.bf16.msra.mxu0 %v747
    %2976 = vmatpush.bf16.msra.mxu0 %v743
    %2977 = vmatpush.bf16.msra.mxu0 %v739
    %2978 = vmatpush.bf16.msra.mxu0 %v735
    %2979 = vmatpush.bf16.msra.mxu0 %v731
    %2980 = vmatpush.bf16.msra.mxu0 %v727
    %2981 = vmatmul.bf16.gmra.mxu0 %v2776
    %v2982 = vpop.f32.mrf.mxu0
    %v2983 = vadd.f32 0.0, %v2982
    %v2984 = vpop.f32.mrf.mxu0
    %2985 = vdwg.mxu0
    %2986 = vmatpush.bf16.msra.mxu0 %v756
    %2987 = vmatpush.bf16.msra.mxu0 %v752
    %2988 = vmatpush.bf16.msra.mxu0 %v748
    %2989 = vmatpush.bf16.msra.mxu0 %v744
    %2990 = vmatpush.bf16.msra.mxu0 %v740
    %2991 = vmatpush.bf16.msra.mxu0 %v736
    %2992 = vmatpush.bf16.msra.mxu0 %v732
    %2993 = vmatpush.bf16.msra.mxu0 %v728
    %2994 = vmatmul.bf16.gmra.mxu0 %v2776
    %v2995 = vpop.f32.mrf.mxu0
    %v2996 = vadd.f32 0.0, %v2995
    %v2997 = vpop.f32.mrf.mxu0
    %2998 = vdwg.mxu0
    %2999 = vmatpush.bf16.msra.mxu0 %v757
    %3000 = vmatpush.bf16.msra.mxu0 %v753
    %3001 = vmatpush.bf16.msra.mxu0 %v749
    %3002 = vmatpush.bf16.msra.mxu0 %v745
    %3003 = vmatpush.bf16.msra.mxu0 %v741
    %3004 = vmatpush.bf16.msra.mxu0 %v737
    %3005 = vmatpush.bf16.msra.mxu0 %v733
    %3006 = vmatpush.bf16.msra.mxu0 %v729
    %3007 = vmatmul.bf16.gmra.mxu0 %v2776
    %v3008 = vpop.f32.mrf.mxu0
    %v3009 = vadd.f32 0.0, %v3008
    %v3010 = vpop.f32.mrf.mxu0
    %3011 = vdwg.mxu0
    %v3012 = vadd.f32 %v2956, %v2970
    %v3013 = vadd.f32 %v2957, %v2983
    %v3014 = vadd.f32 %v2958, %v2996
    %v3015 = vadd.f32 %v2959, %v3009
    %v3016 = vxor.u32 %v3012, 2147483648
    %v3017 = vmul.f32 %v3016, 1.442695
    %v3018 = vpow.pop %v3017
    %v3019 = vadd.f32 %v3018, 1.0
    %v3020 = vrcp.pop %v3019
    %v3021 = vmul.f32 %v3019, %v3020
    %v3022 = vsub.f32 1.0, %v3021
    %v3023 = vmul.f32 %v3020, %v3022
    %v3024 = vadd.f32 %v3020, %v3023
    %vm3025 = vweird.f32 %v3019
    %vm3026 = vweird.f32 %v3020
    %vm3027 = vmor %vm3025, %vm3026
    %v3028 = vsel %vm3027, %v3020, %v3024
    %v3029 = vand.u32 2147483647, %v3019
    %vm3030 = vcmp.eq.f32.partialorder %v3029, 8.507059e+37
    %v3031 = vand.u32 %v3019, 2147483648
    %v3032 = vor.u32 1.1754944e-38, %v3031
    %v3033 = vsel %vm3030, %v3032, %v3028
    %v3034 = vmul.f32 1.0, %v3033
    %v3035 = vxor.u32 %v3013, 2147483648
    %v3036 = vmul.f32 %v3035, 1.442695
    %v3037 = vpow.pop %v3036
    %v3038 = vadd.f32 %v3037, 1.0
    %v3039 = vrcp.pop %v3038
    %v3040 = vmul.f32 %v3038, %v3039
    %v3041 = vsub.f32 1.0, %v3040
    %v3042 = vmul.f32 %v3039, %v3041
    %v3043 = vadd.f32 %v3039, %v3042
    %vm3044 = vweird.f32 %v3038
    %vm3045 = vweird.f32 %v3039
    %vm3046 = vmor %vm3044, %vm3045
    %v3047 = vsel %vm3046, %v3039, %v3043
    %v3048 = vand.u32 2147483647, %v3038
    %vm3049 = vcmp.eq.f32.partialorder %v3048, 8.507059e+37
    %v3050 = vand.u32 %v3038, 2147483648
    %v3051 = vor.u32 1.1754944e-38, %v3050
    %v3052 = vsel %vm3049, %v3051, %v3047
    %v3053 = vmul.f32 1.0, %v3052
    %v3054 = vtanh.pop %v3014
    %v3055 = vxor.u32 %v3015, 2147483648
    %v3056 = vmul.f32 %v3055, 1.442695
    %v3057 = vpow.pop %v3056
    %v3058 = vadd.f32 %v3057, 1.0
    %v3059 = vrcp.pop %v3058
    %v3060 = vmul.f32 %v3058, %v3059
    %v3061 = vsub.f32 1.0, %v3060
    %v3062 = vmul.f32 %v3059, %v3061
    %v3063 = vadd.f32 %v3059, %v3062
    %vm3064 = vweird.f32 %v3058
    %vm3065 = vweird.f32 %v3059
    %vm3066 = vmor %vm3064, %vm3065
    %v3067 = vsel %vm3066, %v3059, %v3063
    %v3068 = vand.u32 2147483647, %v3058
    %vm3069 = vcmp.eq.f32.partialorder %v3068, 8.507059e+37
    %v3070 = vand.u32 %v3058, 2147483648
    %v3071 = vor.u32 1.1754944e-38, %v3070
    %v3072 = vsel %vm3069, %v3071, %v3067
    %v3073 = vmul.f32 1.0, %v3072
    %v3074 = vmul.f32 %v3053, %v2775
    %v3075 = vmul.f32 %v3034, %v3054
    %v3076 = vadd.f32 %v3074, %v3075
    %v3077 = vtanh.pop %v3076
    %v3078 = vmul.f32 %v3073, %v3077
    %v3079 = vmax.f32 %v3078, 0.0
    %v3080 = vmax.f32 %v3076, 0.0
    %v3081 = vsel %vm2955, %v3079, %v2774
    %v3082 = vsel %vm2955, %v3080, %v2775
    %v3083 = vpack.c.bf16 %v3081, %v3081
    %v3084 = vpack.c.bf16 %v2951, %v2951
    %3085 = vmatpush.bf16.msra.mxu0 %v1038
    %3086 = vmatpush.bf16.msra.mxu0 %v1034
    %3087 = vmatpush.bf16.msra.mxu0 %v1030
    %3088 = vmatpush.bf16.msra.mxu0 %v1026
    %3089 = vmatpush.bf16.msra.mxu0 %v1022
    %3090 = vmatpush.bf16.msra.mxu0 %v1018
    %3091 = vmatpush.bf16.msra.mxu0 %v1014
    %3092 = vmatpush.bf16.msra.mxu0 %v1010
    %3093 = vmatmul.bf16.gmra.mxu0 %v3084
    %v3094 = vpop.f32.mrf.mxu0
    %v3095 = vadd.f32 0.0, %v3094
    %v3096 = vpop.f32.mrf.mxu0
    %3097 = vdwg.mxu0
    %3098 = vmatpush.bf16.msra.mxu0 %v1039
    %3099 = vmatpush.bf16.msra.mxu0 %v1035
    %3100 = vmatpush.bf16.msra.mxu0 %v1031
    %3101 = vmatpush.bf16.msra.mxu0 %v1027
    %3102 = vmatpush.bf16.msra.mxu0 %v1023
    %3103 = vmatpush.bf16.msra.mxu0 %v1019
    %3104 = vmatpush.bf16.msra.mxu0 %v1015
    %3105 = vmatpush.bf16.msra.mxu0 %v1011
    %3106 = vmatmul.bf16.gmra.mxu0 %v3084
    %v3107 = vpop.f32.mrf.mxu0
    %v3108 = vadd.f32 0.0, %v3107
    %v3109 = vpop.f32.mrf.mxu0
    %3110 = vdwg.mxu0
    %3111 = vmatpush.bf16.msra.mxu0 %v1040
    %3112 = vmatpush.bf16.msra.mxu0 %v1036
    %3113 = vmatpush.bf16.msra.mxu0 %v1032
    %3114 = vmatpush.bf16.msra.mxu0 %v1028
    %3115 = vmatpush.bf16.msra.mxu0 %v1024
    %3116 = vmatpush.bf16.msra.mxu0 %v1020
    %3117 = vmatpush.bf16.msra.mxu0 %v1016
    %3118 = vmatpush.bf16.msra.mxu0 %v1012
    %3119 = vmatmul.bf16.gmra.mxu0 %v3084
    %v3120 = vpop.f32.mrf.mxu0
    %v3121 = vadd.f32 0.0, %v3120
    %v3122 = vpop.f32.mrf.mxu0
    %3123 = vdwg.mxu0
    %3124 = vmatpush.bf16.msra.mxu0 %v1041
    %3125 = vmatpush.bf16.msra.mxu0 %v1037
    %3126 = vmatpush.bf16.msra.mxu0 %v1033
    %3127 = vmatpush.bf16.msra.mxu0 %v1029
    %3128 = vmatpush.bf16.msra.mxu0 %v1025
    %3129 = vmatpush.bf16.msra.mxu0 %v1021
    %3130 = vmatpush.bf16.msra.mxu0 %v1017
    %3131 = vmatpush.bf16.msra.mxu0 %v1013
    %3132 = vmatmul.bf16.gmra.mxu0 %v3084
    %v3133 = vpop.f32.mrf.mxu0
    %v3134 = vadd.f32 0.0, %v3133
    %v3135 = vpop.f32.mrf.mxu0
    %3136 = vdwg.mxu0
    %3137 = vmatpush.bf16.msra.mxu0 %v1250
    %3138 = vmatpush.bf16.msra.mxu0 %v1246
    %3139 = vmatpush.bf16.msra.mxu0 %v1242
    %3140 = vmatpush.bf16.msra.mxu0 %v1238
    %3141 = vmatpush.bf16.msra.mxu0 %v1234
    %3142 = vmatpush.bf16.msra.mxu0 %v1230
    %3143 = vmatpush.bf16.msra.mxu0 %v1226
    %3144 = vmatpush.bf16.msra.mxu0 %v1222
    %3145 = vmatmul.bf16.gmra.mxu0 %v3083
    %v3146 = vpop.f32.mrf.mxu0
    %v3147 = vadd.f32 %v3095, %v3146
    %v3148 = vpop.f32.mrf.mxu0
    %3149 = vdwg.mxu0
    %3150 = vmatpush.bf16.msra.mxu0 %v1251
    %3151 = vmatpush.bf16.msra.mxu0 %v1247
    %3152 = vmatpush.bf16.msra.mxu0 %v1243
    %3153 = vmatpush.bf16.msra.mxu0 %v1239
    %3154 = vmatpush.bf16.msra.mxu0 %v1235
    %3155 = vmatpush.bf16.msra.mxu0 %v1231
    %3156 = vmatpush.bf16.msra.mxu0 %v1227
    %3157 = vmatpush.bf16.msra.mxu0 %v1223
    %3158 = vmatmul.bf16.gmra.mxu0 %v3083
    %v3159 = vpop.f32.mrf.mxu0
    %v3160 = vadd.f32 %v3108, %v3159
    %v3161 = vpop.f32.mrf.mxu0
    %3162 = vdwg.mxu0
    %3163 = vmatpush.bf16.msra.mxu0 %v1252
    %3164 = vmatpush.bf16.msra.mxu0 %v1248
    %3165 = vmatpush.bf16.msra.mxu0 %v1244
    %3166 = vmatpush.bf16.msra.mxu0 %v1240
    %3167 = vmatpush.bf16.msra.mxu0 %v1236
    %3168 = vmatpush.bf16.msra.mxu0 %v1232
    %3169 = vmatpush.bf16.msra.mxu0 %v1228
    %3170 = vmatpush.bf16.msra.mxu0 %v1224
    %3171 = vmatmul.bf16.gmra.mxu0 %v3083
    %v3172 = vpop.f32.mrf.mxu0
    %v3173 = vadd.f32 %v3121, %v3172
    %v3174 = vpop.f32.mrf.mxu0
    %3175 = vdwg.mxu0
    %3176 = vmatpush.bf16.msra.mxu0 %v1253
    %3177 = vmatpush.bf16.msra.mxu0 %v1249
    %3178 = vmatpush.bf16.msra.mxu0 %v1245
    %3179 = vmatpush.bf16.msra.mxu0 %v1241
    %3180 = vmatpush.bf16.msra.mxu0 %v1237
    %3181 = vmatpush.bf16.msra.mxu0 %v1233
    %3182 = vmatpush.bf16.msra.mxu0 %v1229
    %3183 = vmatpush.bf16.msra.mxu0 %v1225
    %3184 = vmatmul.bf16.gmra.mxu0 %v3083
    %v3185 = vpop.f32.mrf.mxu0
    %v3186 = vadd.f32 %v3134, %v3185
    %v3187 = vpop.f32.mrf.mxu0
    %3188 = vdwg.mxu0
    %v3189 = vadd.f32 %v3147, %v1339
    %v3190 = vadd.f32 %v3160, %v1340
    %v3191 = vadd.f32 %v3173, %v1341
    %v3192 = vadd.f32 %v3186, %v1342
    %v3193 = vxor.u32 %v3189, 2147483648
    %v3194 = vmul.f32 %v3193, 1.442695
    %v3195 = vpow.pop %v3194
    %v3196 = vadd.f32 %v3195, 1.0
    %v3197 = vrcp.pop %v3196
    %v3198 = vmul.f32 %v3196, %v3197
    %v3199 = vsub.f32 1.0, %v3198
    %v3200 = vmul.f32 %v3197, %v3199
    %v3201 = vadd.f32 %v3197, %v3200
    %vm3202 = vweird.f32 %v3196
    %vm3203 = vweird.f32 %v3197
    %vm3204 = vmor %vm3202, %vm3203
    %v3205 = vsel %vm3204, %v3197, %v3201
    %v3206 = vand.u32 2147483647, %v3196
    %vm3207 = vcmp.eq.f32.partialorder %v3206, 8.507059e+37
    %v3208 = vand.u32 %v3196, 2147483648
    %v3209 = vor.u32 1.1754944e-38, %v3208
    %v3210 = vsel %vm3207, %v3209, %v3205
    %v3211 = vmul.f32 1.0, %v3210
    %v3212 = vxor.u32 %v3190, 2147483648
    %v3213 = vmul.f32 %v3212, 1.442695
    %v3214 = vpow.pop %v3213
    %v3215 = vadd.f32 %v3214, 1.0
    %v3216 = vrcp.pop %v3215
    %v3217 = vmul.f32 %v3215, %v3216
    %v3218 = vsub.f32 1.0, %v3217
    %v3219 = vmul.f32 %v3216, %v3218
    %v3220 = vadd.f32 %v3216, %v3219
    %vm3221 = vweird.f32 %v3215
    %vm3222 = vweird.f32 %v3216
    %vm3223 = vmor %vm3221, %vm3222
    %v3224 = vsel %vm3223, %v3216, %v3220
    %v3225 = vand.u32 2147483647, %v3215
    %vm3226 = vcmp.eq.f32.partialorder %v3225, 8.507059e+37
    %v3227 = vand.u32 %v3215, 2147483648
    %v3228 = vor.u32 1.1754944e-38, %v3227
    %v3229 = vsel %vm3226, %v3228, %v3224
    %v3230 = vmul.f32 1.0, %v3229
    %v3231 = vtanh.pop %v3191
    %v3232 = vxor.u32 %v3192, 2147483648
    %v3233 = vmul.f32 %v3232, 1.442695
    %v3234 = vpow.pop %v3233
    %v3235 = vadd.f32 %v3234, 1.0
    %v3236 = vrcp.pop %v3235
    %v3237 = vmul.f32 %v3235, %v3236
    %v3238 = vsub.f32 1.0, %v3237
    %v3239 = vmul.f32 %v3236, %v3238
    %v3240 = vadd.f32 %v3236, %v3239
    %vm3241 = vweird.f32 %v3235
    %vm3242 = vweird.f32 %v3236
    %vm3243 = vmor %vm3241, %vm3242
    %v3244 = vsel %vm3243, %v3236, %v3240
    %v3245 = vand.u32 2147483647, %v3235
    %vm3246 = vcmp.eq.f32.partialorder %v3245, 8.507059e+37
    %v3247 = vand.u32 %v3235, 2147483648
    %v3248 = vor.u32 1.1754944e-38, %v3247
    %v3249 = vsel %vm3246, %v3248, %v3244
    %v3250 = vmul.f32 1.0, %v3249
    %v3251 = vmul.f32 %v3230, %v2952
    %v3252 = vmul.f32 %v3211, %v3231
    %v3253 = vadd.f32 %v3251, %v3252
    %v3254 = vtanh.pop %v3253
    %v3255 = vmul.f32 %v3250, %v3254
    %v3256 = vmax.f32 %v3255, 0.0
    %v3257 = vmax.f32 %v3253, 0.0
    %v3258 = vsel %vm2955, %v3256, %v2951
    %v3259 = vsel %vm2955, %v3257, %v2952
    %s3260 = scalar_lea.vmem [#allocation6], 56
    %v3261 = vld [vmem:[%s3260] sm:$0xff]
    %vm3262 = vcmp.gt.f32.partialorder %v3261, 0.5
    %v3263 = vld [vmem:[#allocation2 + $0xe0] sm:$0xff]
    %v3264 = vld [vmem:[#allocation2 + $0xe8] sm:$0xff]
    %v3265 = vld [vmem:[#allocation2 + $0xf0] sm:$0xff]
    %v3266 = vld [vmem:[#allocation2 + $0xf8] sm:$0xff]
    %3267 = vmatpush.bf16.msra.mxu0 %v754
    %3268 = vmatpush.bf16.msra.mxu0 %v750
    %3269 = vmatpush.bf16.msra.mxu0 %v746
    %3270 = vmatpush.bf16.msra.mxu0 %v742
    %3271 = vmatpush.bf16.msra.mxu0 %v738
    %3272 = vmatpush.bf16.msra.mxu0 %v734
    %3273 = vmatpush.bf16.msra.mxu0 %v730
    %3274 = vmatpush.bf16.msra.mxu0 %v726
    %3275 = vmatmul.bf16.gmra.mxu0 %v3083
    %v3276 = vpop.f32.mrf.mxu0
    %v3277 = vadd.f32 0.0, %v3276
    %v3278 = vpop.f32.mrf.mxu0
    %3279 = vdwg.mxu0
    %3280 = vmatpush.bf16.msra.mxu0 %v755
    %3281 = vmatpush.bf16.msra.mxu0 %v751
    %3282 = vmatpush.bf16.msra.mxu0 %v747
    %3283 = vmatpush.bf16.msra.mxu0 %v743
    %3284 = vmatpush.bf16.msra.mxu0 %v739
    %3285 = vmatpush.bf16.msra.mxu0 %v735
    %3286 = vmatpush.bf16.msra.mxu0 %v731
    %3287 = vmatpush.bf16.msra.mxu0 %v727
    %3288 = vmatmul.bf16.gmra.mxu0 %v3083
    %v3289 = vpop.f32.mrf.mxu0
    %v3290 = vadd.f32 0.0, %v3289
    %v3291 = vpop.f32.mrf.mxu0
    %3292 = vdwg.mxu0
    %3293 = vmatpush.bf16.msra.mxu0 %v756
    %3294 = vmatpush.bf16.msra.mxu0 %v752
    %3295 = vmatpush.bf16.msra.mxu0 %v748
    %3296 = vmatpush.bf16.msra.mxu0 %v744
    %3297 = vmatpush.bf16.msra.mxu0 %v740
    %3298 = vmatpush.bf16.msra.mxu0 %v736
    %3299 = vmatpush.bf16.msra.mxu0 %v732
    %3300 = vmatpush.bf16.msra.mxu0 %v728
    %3301 = vmatmul.bf16.gmra.mxu0 %v3083
    %v3302 = vpop.f32.mrf.mxu0
    %v3303 = vadd.f32 0.0, %v3302
    %v3304 = vpop.f32.mrf.mxu0
    %3305 = vdwg.mxu0
    %3306 = vmatpush.bf16.msra.mxu0 %v757
    %3307 = vmatpush.bf16.msra.mxu0 %v753
    %3308 = vmatpush.bf16.msra.mxu0 %v749
    %3309 = vmatpush.bf16.msra.mxu0 %v745
    %3310 = vmatpush.bf16.msra.mxu0 %v741
    %3311 = vmatpush.bf16.msra.mxu0 %v737
    %3312 = vmatpush.bf16.msra.mxu0 %v733
    %3313 = vmatpush.bf16.msra.mxu0 %v729
    %3314 = vmatmul.bf16.gmra.mxu0 %v3083
    %v3315 = vpop.f32.mrf.mxu0
    %v3316 = vadd.f32 0.0, %v3315
    %v3317 = vpop.f32.mrf.mxu0
    %3318 = vdwg.mxu0
    %v3319 = vadd.f32 %v3263, %v3277
    %v3320 = vadd.f32 %v3264, %v3290
    %v3321 = vadd.f32 %v3265, %v3303
    %v3322 = vadd.f32 %v3266, %v3316
    %v3323 = vxor.u32 %v3319, 2147483648
    %v3324 = vmul.f32 %v3323, 1.442695
    %v3325 = vpow.pop %v3324
    %v3326 = vadd.f32 %v3325, 1.0
    %v3327 = vrcp.pop %v3326
    %v3328 = vmul.f32 %v3326, %v3327
    %v3329 = vsub.f32 1.0, %v3328
    %v3330 = vmul.f32 %v3327, %v3329
    %v3331 = vadd.f32 %v3327, %v3330
    %vm3332 = vweird.f32 %v3326
    %vm3333 = vweird.f32 %v3327
    %vm3334 = vmor %vm3332, %vm3333
    %v3335 = vsel %vm3334, %v3327, %v3331
    %v3336 = vand.u32 2147483647, %v3326
    %vm3337 = vcmp.eq.f32.partialorder %v3336, 8.507059e+37
    %v3338 = vand.u32 %v3326, 2147483648
    %v3339 = vor.u32 1.1754944e-38, %v3338
    %v3340 = vsel %vm3337, %v3339, %v3335
    %v3341 = vmul.f32 1.0, %v3340
    %v3342 = vxor.u32 %v3320, 2147483648
    %v3343 = vmul.f32 %v3342, 1.442695
    %v3344 = vpow.pop %v3343
    %v3345 = vadd.f32 %v3344, 1.0
    %v3346 = vrcp.pop %v3345
    %v3347 = vmul.f32 %v3345, %v3346
    %v3348 = vsub.f32 1.0, %v3347
    %v3349 = vmul.f32 %v3346, %v3348
    %v3350 = vadd.f32 %v3346, %v3349
    %vm3351 = vweird.f32 %v3345
    %vm3352 = vweird.f32 %v3346
    %vm3353 = vmor %vm3351, %vm3352
    %v3354 = vsel %vm3353, %v3346, %v3350
    %v3355 = vand.u32 2147483647, %v3345
    %vm3356 = vcmp.eq.f32.partialorder %v3355, 8.507059e+37
    %v3357 = vand.u32 %v3345, 2147483648
    %v3358 = vor.u32 1.1754944e-38, %v3357
    %v3359 = vsel %vm3356, %v3358, %v3354
    %v3360 = vmul.f32 1.0, %v3359
    %v3361 = vtanh.pop %v3321
    %v3362 = vxor.u32 %v3322, 2147483648
    %v3363 = vmul.f32 %v3362, 1.442695
    %v3364 = vpow.pop %v3363
    %v3365 = vadd.f32 %v3364, 1.0
    %v3366 = vrcp.pop %v3365
    %v3367 = vmul.f32 %v3365, %v3366
    %v3368 = vsub.f32 1.0, %v3367
    %v3369 = vmul.f32 %v3366, %v3368
    %v3370 = vadd.f32 %v3366, %v3369
    %vm3371 = vweird.f32 %v3365
    %vm3372 = vweird.f32 %v3366
    %vm3373 = vmor %vm3371, %vm3372
    %v3374 = vsel %vm3373, %v3366, %v3370
    %v3375 = vand.u32 2147483647, %v3365
    %vm3376 = vcmp.eq.f32.partialorder %v3375, 8.507059e+37
    %v3377 = vand.u32 %v3365, 2147483648
    %v3378 = vor.u32 1.1754944e-38, %v3377
    %v3379 = vsel %vm3376, %v3378, %v3374
    %v3380 = vmul.f32 1.0, %v3379
    %v3381 = vmul.f32 %v3360, %v3082
    %v3382 = vmul.f32 %v3341, %v3361
    %v3383 = vadd.f32 %v3381, %v3382
    %v3384 = vtanh.pop %v3383
    %v3385 = vmul.f32 %v3380, %v3384
    %v3386 = vmax.f32 %v3385, 0.0
    %v3387 = vmax.f32 %v3383, 0.0
    %v3388 = vsel %vm3262, %v3386, %v3081
    %v3389 = vsel %vm3262, %v3387, %v3082
    %v3390 = vpack.c.bf16 %v3388, %v3388
    %v3391 = vpack.c.bf16 %v3258, %v3258
    %3392 = vmatpush.bf16.msra.mxu0 %v1038
    %3393 = vmatpush.bf16.msra.mxu0 %v1034
    %3394 = vmatpush.bf16.msra.mxu0 %v1030
    %3395 = vmatpush.bf16.msra.mxu0 %v1026
    %3396 = vmatpush.bf16.msra.mxu0 %v1022
    %3397 = vmatpush.bf16.msra.mxu0 %v1018
    %3398 = vmatpush.bf16.msra.mxu0 %v1014
    %3399 = vmatpush.bf16.msra.mxu0 %v1010
    %3400 = vmatmul.bf16.gmra.mxu0 %v3391
    %v3401 = vpop.f32.mrf.mxu0
    %v3402 = vadd.f32 0.0, %v3401
    %v3403 = vpop.f32.mrf.mxu0
    %3404 = vdwg.mxu0
    %3405 = vmatpush.bf16.msra.mxu0 %v1039
    %3406 = vmatpush.bf16.msra.mxu0 %v1035
    %3407 = vmatpush.bf16.msra.mxu0 %v1031
    %3408 = vmatpush.bf16.msra.mxu0 %v1027
    %3409 = vmatpush.bf16.msra.mxu0 %v1023
    %3410 = vmatpush.bf16.msra.mxu0 %v1019
    %3411 = vmatpush.bf16.msra.mxu0 %v1015
    %3412 = vmatpush.bf16.msra.mxu0 %v1011
    %3413 = vmatmul.bf16.gmra.mxu0 %v3391
    %v3414 = vpop.f32.mrf.mxu0
    %v3415 = vadd.f32 0.0, %v3414
    %v3416 = vpop.f32.mrf.mxu0
    %3417 = vdwg.mxu0
    %3418 = vmatpush.bf16.msra.mxu0 %v1040
    %3419 = vmatpush.bf16.msra.mxu0 %v1036
    %3420 = vmatpush.bf16.msra.mxu0 %v1032
    %3421 = vmatpush.bf16.msra.mxu0 %v1028
    %3422 = vmatpush.bf16.msra.mxu0 %v1024
    %3423 = vmatpush.bf16.msra.mxu0 %v1020
    %3424 = vmatpush.bf16.msra.mxu0 %v1016
    %3425 = vmatpush.bf16.msra.mxu0 %v1012
    %3426 = vmatmul.bf16.gmra.mxu0 %v3391
    %v3427 = vpop.f32.mrf.mxu0
    %v3428 = vadd.f32 0.0, %v3427
    %v3429 = vpop.f32.mrf.mxu0
    %3430 = vdwg.mxu0
    %3431 = vmatpush.bf16.msra.mxu0 %v1041
    %3432 = vmatpush.bf16.msra.mxu0 %v1037
    %3433 = vmatpush.bf16.msra.mxu0 %v1033
    %3434 = vmatpush.bf16.msra.mxu0 %v1029
    %3435 = vmatpush.bf16.msra.mxu0 %v1025
    %3436 = vmatpush.bf16.msra.mxu0 %v1021
    %3437 = vmatpush.bf16.msra.mxu0 %v1017
    %3438 = vmatpush.bf16.msra.mxu0 %v1013
    %3439 = vmatmul.bf16.gmra.mxu0 %v3391
    %v3440 = vpop.f32.mrf.mxu0
    %v3441 = vadd.f32 0.0, %v3440
    %v3442 = vpop.f32.mrf.mxu0
    %3443 = vdwg.mxu0
    %3444 = vmatpush.bf16.msra.mxu0 %v1250
    %3445 = vmatpush.bf16.msra.mxu0 %v1246
    %3446 = vmatpush.bf16.msra.mxu0 %v1242
    %3447 = vmatpush.bf16.msra.mxu0 %v1238
    %3448 = vmatpush.bf16.msra.mxu0 %v1234
    %3449 = vmatpush.bf16.msra.mxu0 %v1230
    %3450 = vmatpush.bf16.msra.mxu0 %v1226
    %3451 = vmatpush.bf16.msra.mxu0 %v1222
    %3452 = vmatmul.bf16.gmra.mxu0 %v3390
    %v3453 = vpop.f32.mrf.mxu0
    %v3454 = vadd.f32 %v3402, %v3453
    %v3455 = vpop.f32.mrf.mxu0
    %3456 = vdwg.mxu0
    %3457 = vmatpush.bf16.msra.mxu0 %v1251
    %3458 = vmatpush.bf16.msra.mxu0 %v1247
    %3459 = vmatpush.bf16.msra.mxu0 %v1243
    %3460 = vmatpush.bf16.msra.mxu0 %v1239
    %3461 = vmatpush.bf16.msra.mxu0 %v1235
    %3462 = vmatpush.bf16.msra.mxu0 %v1231
    %3463 = vmatpush.bf16.msra.mxu0 %v1227
    %3464 = vmatpush.bf16.msra.mxu0 %v1223
    %3465 = vmatmul.bf16.gmra.mxu0 %v3390
    %v3466 = vpop.f32.mrf.mxu0
    %v3467 = vadd.f32 %v3415, %v3466
    %v3468 = vpop.f32.mrf.mxu0
    %3469 = vdwg.mxu0
    %3470 = vmatpush.bf16.msra.mxu0 %v1252
    %3471 = vmatpush.bf16.msra.mxu0 %v1248
    %3472 = vmatpush.bf16.msra.mxu0 %v1244
    %3473 = vmatpush.bf16.msra.mxu0 %v1240
    %3474 = vmatpush.bf16.msra.mxu0 %v1236
    %3475 = vmatpush.bf16.msra.mxu0 %v1232
    %3476 = vmatpush.bf16.msra.mxu0 %v1228
    %3477 = vmatpush.bf16.msra.mxu0 %v1224
    %3478 = vmatmul.bf16.gmra.mxu0 %v3390
    %v3479 = vpop.f32.mrf.mxu0
    %v3480 = vadd.f32 %v3428, %v3479
    %v3481 = vpop.f32.mrf.mxu0
    %3482 = vdwg.mxu0
    %3483 = vmatpush.bf16.msra.mxu0 %v1253
    %3484 = vmatpush.bf16.msra.mxu0 %v1249
    %3485 = vmatpush.bf16.msra.mxu0 %v1245
    %3486 = vmatpush.bf16.msra.mxu0 %v1241
    %3487 = vmatpush.bf16.msra.mxu0 %v1237
    %3488 = vmatpush.bf16.msra.mxu0 %v1233
    %3489 = vmatpush.bf16.msra.mxu0 %v1229
    %3490 = vmatpush.bf16.msra.mxu0 %v1225
    %3491 = vmatmul.bf16.gmra.mxu0 %v3390
    %v3492 = vpop.f32.mrf.mxu0
    %v3493 = vadd.f32 %v3441, %v3492
    %v3494 = vpop.f32.mrf.mxu0
    %3495 = vdwg.mxu0
    %v3496 = vadd.f32 %v3454, %v1339
    %v3497 = vadd.f32 %v3467, %v1340
    %v3498 = vadd.f32 %v3480, %v1341
    %v3499 = vadd.f32 %v3493, %v1342
    %v3500 = vxor.u32 %v3496, 2147483648
    %v3501 = vmul.f32 %v3500, 1.442695
    %v3502 = vpow.pop %v3501
    %v3503 = vadd.f32 %v3502, 1.0
    %v3504 = vrcp.pop %v3503
    %v3505 = vmul.f32 %v3503, %v3504
    %v3506 = vsub.f32 1.0, %v3505
    %v3507 = vmul.f32 %v3504, %v3506
    %v3508 = vadd.f32 %v3504, %v3507
    %vm3509 = vweird.f32 %v3503
    %vm3510 = vweird.f32 %v3504
    %vm3511 = vmor %vm3509, %vm3510
    %v3512 = vsel %vm3511, %v3504, %v3508
    %v3513 = vand.u32 2147483647, %v3503
    %vm3514 = vcmp.eq.f32.partialorder %v3513, 8.507059e+37
    %v3515 = vand.u32 %v3503, 2147483648
    %v3516 = vor.u32 1.1754944e-38, %v3515
    %v3517 = vsel %vm3514, %v3516, %v3512
    %v3518 = vmul.f32 1.0, %v3517
    %v3519 = vxor.u32 %v3497, 2147483648
    %v3520 = vmul.f32 %v3519, 1.442695
    %v3521 = vpow.pop %v3520
    %v3522 = vadd.f32 %v3521, 1.0
    %v3523 = vrcp.pop %v3522
    %v3524 = vmul.f32 %v3522, %v3523
    %v3525 = vsub.f32 1.0, %v3524
    %v3526 = vmul.f32 %v3523, %v3525
    %v3527 = vadd.f32 %v3523, %v3526
    %vm3528 = vweird.f32 %v3522
    %vm3529 = vweird.f32 %v3523
    %vm3530 = vmor %vm3528, %vm3529
    %v3531 = vsel %vm3530, %v3523, %v3527
    %v3532 = vand.u32 2147483647, %v3522
    %vm3533 = vcmp.eq.f32.partialorder %v3532, 8.507059e+37
    %v3534 = vand.u32 %v3522, 2147483648
    %v3535 = vor.u32 1.1754944e-38, %v3534
    %v3536 = vsel %vm3533, %v3535, %v3531
    %v3537 = vmul.f32 1.0, %v3536
    %v3538 = vtanh.pop %v3498
    %v3539 = vxor.u32 %v3499, 2147483648
    %v3540 = vmul.f32 %v3539, 1.442695
    %v3541 = vpow.pop %v3540
    %v3542 = vadd.f32 %v3541, 1.0
    %v3543 = vrcp.pop %v3542
    %v3544 = vmul.f32 %v3542, %v3543
    %v3545 = vsub.f32 1.0, %v3544
    %v3546 = vmul.f32 %v3543, %v3545
    %v3547 = vadd.f32 %v3543, %v3546
    %vm3548 = vweird.f32 %v3542
    %vm3549 = vweird.f32 %v3543
    %vm3550 = vmor %vm3548, %vm3549
    %v3551 = vsel %vm3550, %v3543, %v3547
    %v3552 = vand.u32 2147483647, %v3542
    %vm3553 = vcmp.eq.f32.partialorder %v3552, 8.507059e+37
    %v3554 = vand.u32 %v3542, 2147483648
    %v3555 = vor.u32 1.1754944e-38, %v3554
    %v3556 = vsel %vm3553, %v3555, %v3551
    %v3557 = vmul.f32 1.0, %v3556
    %v3558 = vmul.f32 %v3537, %v3259
    %v3559 = vmul.f32 %v3518, %v3538
    %v3560 = vadd.f32 %v3558, %v3559
    %v3561 = vtanh.pop %v3560
    %v3562 = vmul.f32 %v3557, %v3561
    %v3563 = vmax.f32 %v3562, 0.0
    %v3564 = vmax.f32 %v3560, 0.0
    %v3565 = vsel %vm3262, %v3563, %v3258
    %v3566 = vsel %vm3262, %v3564, %v3259
    %s3567 = scalar_lea.vmem [#allocation6], 64
    %v3568 = vld [vmem:[%s3567] sm:$0xff]
    %vm3569 = vcmp.gt.f32.partialorder %v3568, 0.5
    %v3570 = vld [vmem:[#allocation2 + $0x100] sm:$0xff]
    %v3571 = vld [vmem:[#allocation2 + $0x108] sm:$0xff]
    %v3572 = vld [vmem:[#allocation2 + $0x110] sm:$0xff]
    %v3573 = vld [vmem:[#allocation2 + $0x118] sm:$0xff]
    %3574 = vmatpush.bf16.msra.mxu0 %v754
    %3575 = vmatpush.bf16.msra.mxu0 %v750
    %3576 = vmatpush.bf16.msra.mxu0 %v746
    %3577 = vmatpush.bf16.msra.mxu0 %v742
    %3578 = vmatpush.bf16.msra.mxu0 %v738
    %3579 = vmatpush.bf16.msra.mxu0 %v734
    %3580 = vmatpush.bf16.msra.mxu0 %v730
    %3581 = vmatpush.bf16.msra.mxu0 %v726
    %3582 = vmatmul.bf16.gmra.mxu0 %v3390
    %v3583 = vpop.f32.mrf.mxu0
    %v3584 = vadd.f32 0.0, %v3583
    %v3585 = vpop.f32.mrf.mxu0
    %3586 = vdwg.mxu0
    %3587 = vmatpush.bf16.msra.mxu0 %v755
    %3588 = vmatpush.bf16.msra.mxu0 %v751
    %3589 = vmatpush.bf16.msra.mxu0 %v747
    %3590 = vmatpush.bf16.msra.mxu0 %v743
    %3591 = vmatpush.bf16.msra.mxu0 %v739
    %3592 = vmatpush.bf16.msra.mxu0 %v735
    %3593 = vmatpush.bf16.msra.mxu0 %v731
    %3594 = vmatpush.bf16.msra.mxu0 %v727
    %3595 = vmatmul.bf16.gmra.mxu0 %v3390
    %v3596 = vpop.f32.mrf.mxu0
    %v3597 = vadd.f32 0.0, %v3596
    %v3598 = vpop.f32.mrf.mxu0
    %3599 = vdwg.mxu0
    %3600 = vmatpush.bf16.msra.mxu0 %v756
    %3601 = vmatpush.bf16.msra.mxu0 %v752
    %3602 = vmatpush.bf16.msra.mxu0 %v748
    %3603 = vmatpush.bf16.msra.mxu0 %v744
    %3604 = vmatpush.bf16.msra.mxu0 %v740
    %3605 = vmatpush.bf16.msra.mxu0 %v736
    %3606 = vmatpush.bf16.msra.mxu0 %v732
    %3607 = vmatpush.bf16.msra.mxu0 %v728
    %3608 = vmatmul.bf16.gmra.mxu0 %v3390
    %v3609 = vpop.f32.mrf.mxu0
    %v3610 = vadd.f32 0.0, %v3609
    %v3611 = vpop.f32.mrf.mxu0
    %3612 = vdwg.mxu0
    %3613 = vmatpush.bf16.msra.mxu0 %v757
    %3614 = vmatpush.bf16.msra.mxu0 %v753
    %3615 = vmatpush.bf16.msra.mxu0 %v749
    %3616 = vmatpush.bf16.msra.mxu0 %v745
    %3617 = vmatpush.bf16.msra.mxu0 %v741
    %3618 = vmatpush.bf16.msra.mxu0 %v737
    %3619 = vmatpush.bf16.msra.mxu0 %v733
    %3620 = vmatpush.bf16.msra.mxu0 %v729
    %3621 = vmatmul.bf16.gmra.mxu0 %v3390
    %v3622 = vpop.f32.mrf.mxu0
    %v3623 = vadd.f32 0.0, %v3622
    %v3624 = vpop.f32.mrf.mxu0
    %3625 = vdwg.mxu0
    %v3626 = vadd.f32 %v3570, %v3584
    %v3627 = vadd.f32 %v3571, %v3597
    %v3628 = vadd.f32 %v3572, %v3610
    %v3629 = vadd.f32 %v3573, %v3623
    %v3630 = vxor.u32 %v3626, 2147483648
    %v3631 = vmul.f32 %v3630, 1.442695
    %v3632 = vpow.pop %v3631
    %v3633 = vadd.f32 %v3632, 1.0
    %v3634 = vrcp.pop %v3633
    %v3635 = vmul.f32 %v3633, %v3634
    %v3636 = vsub.f32 1.0, %v3635
    %v3637 = vmul.f32 %v3634, %v3636
    %v3638 = vadd.f32 %v3634, %v3637
    %vm3639 = vweird.f32 %v3633
    %vm3640 = vweird.f32 %v3634
    %vm3641 = vmor %vm3639, %vm3640
    %v3642 = vsel %vm3641, %v3634, %v3638
    %v3643 = vand.u32 2147483647, %v3633
    %vm3644 = vcmp.eq.f32.partialorder %v3643, 8.507059e+37
    %v3645 = vand.u32 %v3633, 2147483648
    %v3646 = vor.u32 1.1754944e-38, %v3645
    %v3647 = vsel %vm3644, %v3646, %v3642
    %v3648 = vmul.f32 1.0, %v3647
    %v3649 = vxor.u32 %v3627, 2147483648
    %v3650 = vmul.f32 %v3649, 1.442695
    %v3651 = vpow.pop %v3650
    %v3652 = vadd.f32 %v3651, 1.0
    %v3653 = vrcp.pop %v3652
    %v3654 = vmul.f32 %v3652, %v3653
    %v3655 = vsub.f32 1.0, %v3654
    %v3656 = vmul.f32 %v3653, %v3655
    %v3657 = vadd.f32 %v3653, %v3656
    %vm3658 = vweird.f32 %v3652
    %vm3659 = vweird.f32 %v3653
    %vm3660 = vmor %vm3658, %vm3659
    %v3661 = vsel %vm3660, %v3653, %v3657
    %v3662 = vand.u32 2147483647, %v3652
    %vm3663 = vcmp.eq.f32.partialorder %v3662, 8.507059e+37
    %v3664 = vand.u32 %v3652, 2147483648
    %v3665 = vor.u32 1.1754944e-38, %v3664
    %v3666 = vsel %vm3663, %v3665, %v3661
    %v3667 = vmul.f32 1.0, %v3666
    %v3668 = vtanh.pop %v3628
    %v3669 = vxor.u32 %v3629, 2147483648
    %v3670 = vmul.f32 %v3669, 1.442695
    %v3671 = vpow.pop %v3670
    %v3672 = vadd.f32 %v3671, 1.0
    %v3673 = vrcp.pop %v3672
    %v3674 = vmul.f32 %v3672, %v3673
    %v3675 = vsub.f32 1.0, %v3674
    %v3676 = vmul.f32 %v3673, %v3675
    %v3677 = vadd.f32 %v3673, %v3676
    %vm3678 = vweird.f32 %v3672
    %vm3679 = vweird.f32 %v3673
    %vm3680 = vmor %vm3678, %vm3679
    %v3681 = vsel %vm3680, %v3673, %v3677
    %v3682 = vand.u32 2147483647, %v3672
    %vm3683 = vcmp.eq.f32.partialorder %v3682, 8.507059e+37
    %v3684 = vand.u32 %v3672, 2147483648
    %v3685 = vor.u32 1.1754944e-38, %v3684
    %v3686 = vsel %vm3683, %v3685, %v3681
    %v3687 = vmul.f32 1.0, %v3686
    %v3688 = vmul.f32 %v3667, %v3389
    %v3689 = vmul.f32 %v3648, %v3668
    %v3690 = vadd.f32 %v3688, %v3689
    %v3691 = vtanh.pop %v3690
    %v3692 = vmul.f32 %v3687, %v3691
    %v3693 = vmax.f32 %v3692, 0.0
    %v3694 = vmax.f32 %v3690, 0.0
    %v3695 = vsel %vm3569, %v3693, %v3388
    %v3696 = vsel %vm3569, %v3694, %v3389
    %v3697 = vpack.c.bf16 %v3695, %v3695
    %v3698 = vpack.c.bf16 %v3565, %v3565
    %3699 = vmatpush.bf16.msra.mxu0 %v1038
    %3700 = vmatpush.bf16.msra.mxu0 %v1034
    %3701 = vmatpush.bf16.msra.mxu0 %v1030
    %3702 = vmatpush.bf16.msra.mxu0 %v1026
    %3703 = vmatpush.bf16.msra.mxu0 %v1022
    %3704 = vmatpush.bf16.msra.mxu0 %v1018
    %3705 = vmatpush.bf16.msra.mxu0 %v1014
    %3706 = vmatpush.bf16.msra.mxu0 %v1010
    %3707 = vmatmul.bf16.gmra.mxu0 %v3698
    %v3708 = vpop.f32.mrf.mxu0
    %v3709 = vadd.f32 0.0, %v3708
    %v3710 = vpop.f32.mrf.mxu0
    %3711 = vdwg.mxu0
    %3712 = vmatpush.bf16.msra.mxu0 %v1039
    %3713 = vmatpush.bf16.msra.mxu0 %v1035
    %3714 = vmatpush.bf16.msra.mxu0 %v1031
    %3715 = vmatpush.bf16.msra.mxu0 %v1027
    %3716 = vmatpush.bf16.msra.mxu0 %v1023
    %3717 = vmatpush.bf16.msra.mxu0 %v1019
    %3718 = vmatpush.bf16.msra.mxu0 %v1015
    %3719 = vmatpush.bf16.msra.mxu0 %v1011
    %3720 = vmatmul.bf16.gmra.mxu0 %v3698
    %v3721 = vpop.f32.mrf.mxu0
    %v3722 = vadd.f32 0.0, %v3721
    %v3723 = vpop.f32.mrf.mxu0
    %3724 = vdwg.mxu0
    %3725 = vmatpush.bf16.msra.mxu0 %v1040
    %3726 = vmatpush.bf16.msra.mxu0 %v1036
    %3727 = vmatpush.bf16.msra.mxu0 %v1032
    %3728 = vmatpush.bf16.msra.mxu0 %v1028
    %3729 = vmatpush.bf16.msra.mxu0 %v1024
    %3730 = vmatpush.bf16.msra.mxu0 %v1020
    %3731 = vmatpush.bf16.msra.mxu0 %v1016
    %3732 = vmatpush.bf16.msra.mxu0 %v1012
    %3733 = vmatmul.bf16.gmra.mxu0 %v3698
    %v3734 = vpop.f32.mrf.mxu0
    %v3735 = vadd.f32 0.0, %v3734
    %v3736 = vpop.f32.mrf.mxu0
    %3737 = vdwg.mxu0
    %3738 = vmatpush.bf16.msra.mxu0 %v1041
    %3739 = vmatpush.bf16.msra.mxu0 %v1037
    %3740 = vmatpush.bf16.msra.mxu0 %v1033
    %3741 = vmatpush.bf16.msra.mxu0 %v1029
    %3742 = vmatpush.bf16.msra.mxu0 %v1025
    %3743 = vmatpush.bf16.msra.mxu0 %v1021
    %3744 = vmatpush.bf16.msra.mxu0 %v1017
    %3745 = vmatpush.bf16.msra.mxu0 %v1013
    %3746 = vmatmul.bf16.gmra.mxu0 %v3698
    %v3747 = vpop.f32.mrf.mxu0
    %v3748 = vadd.f32 0.0, %v3747
    %v3749 = vpop.f32.mrf.mxu0
    %3750 = vdwg.mxu0
    %3751 = vmatpush.bf16.msra.mxu0 %v1250
    %3752 = vmatpush.bf16.msra.mxu0 %v1246
    %3753 = vmatpush.bf16.msra.mxu0 %v1242
    %3754 = vmatpush.bf16.msra.mxu0 %v1238
    %3755 = vmatpush.bf16.msra.mxu0 %v1234
    %3756 = vmatpush.bf16.msra.mxu0 %v1230
    %3757 = vmatpush.bf16.msra.mxu0 %v1226
    %3758 = vmatpush.bf16.msra.mxu0 %v1222
    %3759 = vmatmul.bf16.gmra.mxu0 %v3697
    %v3760 = vpop.f32.mrf.mxu0
    %v3761 = vadd.f32 %v3709, %v3760
    %v3762 = vpop.f32.mrf.mxu0
    %3763 = vdwg.mxu0
    %3764 = vmatpush.bf16.msra.mxu0 %v1251
    %3765 = vmatpush.bf16.msra.mxu0 %v1247
    %3766 = vmatpush.bf16.msra.mxu0 %v1243
    %3767 = vmatpush.bf16.msra.mxu0 %v1239
    %3768 = vmatpush.bf16.msra.mxu0 %v1235
    %3769 = vmatpush.bf16.msra.mxu0 %v1231
    %3770 = vmatpush.bf16.msra.mxu0 %v1227
    %3771 = vmatpush.bf16.msra.mxu0 %v1223
    %3772 = vmatmul.bf16.gmra.mxu0 %v3697
    %v3773 = vpop.f32.mrf.mxu0
    %v3774 = vadd.f32 %v3722, %v3773
    %v3775 = vpop.f32.mrf.mxu0
    %3776 = vdwg.mxu0
    %3777 = vmatpush.bf16.msra.mxu0 %v1252
    %3778 = vmatpush.bf16.msra.mxu0 %v1248
    %3779 = vmatpush.bf16.msra.mxu0 %v1244
    %3780 = vmatpush.bf16.msra.mxu0 %v1240
    %3781 = vmatpush.bf16.msra.mxu0 %v1236
    %3782 = vmatpush.bf16.msra.mxu0 %v1232
    %3783 = vmatpush.bf16.msra.mxu0 %v1228
    %3784 = vmatpush.bf16.msra.mxu0 %v1224
    %3785 = vmatmul.bf16.gmra.mxu0 %v3697
    %v3786 = vpop.f32.mrf.mxu0
    %v3787 = vadd.f32 %v3735, %v3786
    %v3788 = vpop.f32.mrf.mxu0
    %3789 = vdwg.mxu0
    %3790 = vmatpush.bf16.msra.mxu0 %v1253
    %3791 = vmatpush.bf16.msra.mxu0 %v1249
    %3792 = vmatpush.bf16.msra.mxu0 %v1245
    %3793 = vmatpush.bf16.msra.mxu0 %v1241
    %3794 = vmatpush.bf16.msra.mxu0 %v1237
    %3795 = vmatpush.bf16.msra.mxu0 %v1233
    %3796 = vmatpush.bf16.msra.mxu0 %v1229
    %3797 = vmatpush.bf16.msra.mxu0 %v1225
    %3798 = vmatmul.bf16.gmra.mxu0 %v3697
    %v3799 = vpop.f32.mrf.mxu0
    %v3800 = vadd.f32 %v3748, %v3799
    %v3801 = vpop.f32.mrf.mxu0
    %3802 = vdwg.mxu0
    %v3803 = vadd.f32 %v3761, %v1339
    %v3804 = vadd.f32 %v3774, %v1340
    %v3805 = vadd.f32 %v3787, %v1341
    %v3806 = vadd.f32 %v3800, %v1342
    %v3807 = vxor.u32 %v3803, 2147483648
    %v3808 = vmul.f32 %v3807, 1.442695
    %v3809 = vpow.pop %v3808
    %v3810 = vadd.f32 %v3809, 1.0
    %v3811 = vrcp.pop %v3810
    %v3812 = vmul.f32 %v3810, %v3811
    %v3813 = vsub.f32 1.0, %v3812
    %v3814 = vmul.f32 %v3811, %v3813
    %v3815 = vadd.f32 %v3811, %v3814
    %vm3816 = vweird.f32 %v3810
    %vm3817 = vweird.f32 %v3811
    %vm3818 = vmor %vm3816, %vm3817
    %v3819 = vsel %vm3818, %v3811, %v3815
    %v3820 = vand.u32 2147483647, %v3810
    %vm3821 = vcmp.eq.f32.partialorder %v3820, 8.507059e+37
    %v3822 = vand.u32 %v3810, 2147483648
    %v3823 = vor.u32 1.1754944e-38, %v3822
    %v3824 = vsel %vm3821, %v3823, %v3819
    %v3825 = vmul.f32 1.0, %v3824
    %v3826 = vxor.u32 %v3804, 2147483648
    %v3827 = vmul.f32 %v3826, 1.442695
    %v3828 = vpow.pop %v3827
    %v3829 = vadd.f32 %v3828, 1.0
    %v3830 = vrcp.pop %v3829
    %v3831 = vmul.f32 %v3829, %v3830
    %v3832 = vsub.f32 1.0, %v3831
    %v3833 = vmul.f32 %v3830, %v3832
    %v3834 = vadd.f32 %v3830, %v3833
    %vm3835 = vweird.f32 %v3829
    %vm3836 = vweird.f32 %v3830
    %vm3837 = vmor %vm3835, %vm3836
    %v3838 = vsel %vm3837, %v3830, %v3834
    %v3839 = vand.u32 2147483647, %v3829
    %vm3840 = vcmp.eq.f32.partialorder %v3839, 8.507059e+37
    %v3841 = vand.u32 %v3829, 2147483648
    %v3842 = vor.u32 1.1754944e-38, %v3841
    %v3843 = vsel %vm3840, %v3842, %v3838
    %v3844 = vmul.f32 1.0, %v3843
    %v3845 = vtanh.pop %v3805
    %v3846 = vxor.u32 %v3806, 2147483648
    %v3847 = vmul.f32 %v3846, 1.442695
    %v3848 = vpow.pop %v3847
    %v3849 = vadd.f32 %v3848, 1.0
    %v3850 = vrcp.pop %v3849
    %v3851 = vmul.f32 %v3849, %v3850
    %v3852 = vsub.f32 1.0, %v3851
    %v3853 = vmul.f32 %v3850, %v3852
    %v3854 = vadd.f32 %v3850, %v3853
    %vm3855 = vweird.f32 %v3849
    %vm3856 = vweird.f32 %v3850
    %vm3857 = vmor %vm3855, %vm3856
    %v3858 = vsel %vm3857, %v3850, %v3854
    %v3859 = vand.u32 2147483647, %v3849
    %vm3860 = vcmp.eq.f32.partialorder %v3859, 8.507059e+37
    %v3861 = vand.u32 %v3849, 2147483648
    %v3862 = vor.u32 1.1754944e-38, %v3861
    %v3863 = vsel %vm3860, %v3862, %v3858
    %v3864 = vmul.f32 1.0, %v3863
    %v3865 = vmul.f32 %v3844, %v3566
    %v3866 = vmul.f32 %v3825, %v3845
    %v3867 = vadd.f32 %v3865, %v3866
    %v3868 = vtanh.pop %v3867
    %v3869 = vmul.f32 %v3864, %v3868
    %v3870 = vmax.f32 %v3869, 0.0
    %v3871 = vmax.f32 %v3867, 0.0
    %v3872 = vsel %vm3569, %v3870, %v3565
    %v3873 = vsel %vm3569, %v3871, %v3566
    %s3874 = scalar_lea.vmem [#allocation6], 72
    %v3875 = vld [vmem:[%s3874] sm:$0xff]
    %vm3876 = vcmp.gt.f32.partialorder %v3875, 0.5
    %v3877 = vld [vmem:[#allocation2 + $0x120] sm:$0xff]
    %v3878 = vld [vmem:[#allocation2 + $0x128] sm:$0xff]
    %v3879 = vld [vmem:[#allocation2 + $0x130] sm:$0xff]
    %v3880 = vld [vmem:[#allocation2 + $0x138] sm:$0xff]
    %3881 = vmatpush.bf16.msra.mxu0 %v754
    %3882 = vmatpush.bf16.msra.mxu0 %v750
    %3883 = vmatpush.bf16.msra.mxu0 %v746
    %3884 = vmatpush.bf16.msra.mxu0 %v742
    %3885 = vmatpush.bf16.msra.mxu0 %v738
    %3886 = vmatpush.bf16.msra.mxu0 %v734
    %3887 = vmatpush.bf16.msra.mxu0 %v730
    %3888 = vmatpush.bf16.msra.mxu0 %v726
    %3889 = vmatmul.bf16.gmra.mxu0 %v3697
    %v3890 = vpop.f32.mrf.mxu0
    %v3891 = vadd.f32 0.0, %v3890
    %v3892 = vpop.f32.mrf.mxu0
    %3893 = vdwg.mxu0
    %3894 = vmatpush.bf16.msra.mxu0 %v755
    %3895 = vmatpush.bf16.msra.mxu0 %v751
    %3896 = vmatpush.bf16.msra.mxu0 %v747
    %3897 = vmatpush.bf16.msra.mxu0 %v743
    %3898 = vmatpush.bf16.msra.mxu0 %v739
    %3899 = vmatpush.bf16.msra.mxu0 %v735
    %3900 = vmatpush.bf16.msra.mxu0 %v731
    %3901 = vmatpush.bf16.msra.mxu0 %v727
    %3902 = vmatmul.bf16.gmra.mxu0 %v3697
    %v3903 = vpop.f32.mrf.mxu0
    %v3904 = vadd.f32 0.0, %v3903
    %v3905 = vpop.f32.mrf.mxu0
    %3906 = vdwg.mxu0
    %3907 = vmatpush.bf16.msra.mxu0 %v756
    %3908 = vmatpush.bf16.msra.mxu0 %v752
    %3909 = vmatpush.bf16.msra.mxu0 %v748
    %3910 = vmatpush.bf16.msra.mxu0 %v744
    %3911 = vmatpush.bf16.msra.mxu0 %v740
    %3912 = vmatpush.bf16.msra.mxu0 %v736
    %3913 = vmatpush.bf16.msra.mxu0 %v732
    %3914 = vmatpush.bf16.msra.mxu0 %v728
    %3915 = vmatmul.bf16.gmra.mxu0 %v3697
    %v3916 = vpop.f32.mrf.mxu0
    %v3917 = vadd.f32 0.0, %v3916
    %v3918 = vpop.f32.mrf.mxu0
    %3919 = vdwg.mxu0
    %3920 = vmatpush.bf16.msra.mxu0 %v757
    %3921 = vmatpush.bf16.msra.mxu0 %v753
    %3922 = vmatpush.bf16.msra.mxu0 %v749
    %3923 = vmatpush.bf16.msra.mxu0 %v745
    %3924 = vmatpush.bf16.msra.mxu0 %v741
    %3925 = vmatpush.bf16.msra.mxu0 %v737
    %3926 = vmatpush.bf16.msra.mxu0 %v733
    %3927 = vmatpush.bf16.msra.mxu0 %v729
    %3928 = vmatmul.bf16.gmra.mxu0 %v3697
    %v3929 = vpop.f32.mrf.mxu0
    %v3930 = vadd.f32 0.0, %v3929
    %v3931 = vpop.f32.mrf.mxu0
    %3932 = vdwg.mxu0
    %v3933 = vadd.f32 %v3877, %v3891
    %v3934 = vadd.f32 %v3878, %v3904
    %v3935 = vadd.f32 %v3879, %v3917
    %v3936 = vadd.f32 %v3880, %v3930
    %v3937 = vxor.u32 %v3933, 2147483648
    %v3938 = vmul.f32 %v3937, 1.442695
    %v3939 = vpow.pop %v3938
    %v3940 = vadd.f32 %v3939, 1.0
    %v3941 = vrcp.pop %v3940
    %v3942 = vmul.f32 %v3940, %v3941
    %v3943 = vsub.f32 1.0, %v3942
    %v3944 = vmul.f32 %v3941, %v3943
    %v3945 = vadd.f32 %v3941, %v3944
    %vm3946 = vweird.f32 %v3940
    %vm3947 = vweird.f32 %v3941
    %vm3948 = vmor %vm3946, %vm3947
    %v3949 = vsel %vm3948, %v3941, %v3945
    %v3950 = vand.u32 2147483647, %v3940
    %vm3951 = vcmp.eq.f32.partialorder %v3950, 8.507059e+37
    %v3952 = vand.u32 %v3940, 2147483648
    %v3953 = vor.u32 1.1754944e-38, %v3952
    %v3954 = vsel %vm3951, %v3953, %v3949
    %v3955 = vmul.f32 1.0, %v3954
    %v3956 = vxor.u32 %v3934, 2147483648
    %v3957 = vmul.f32 %v3956, 1.442695
    %v3958 = vpow.pop %v3957
    %v3959 = vadd.f32 %v3958, 1.0
    %v3960 = vrcp.pop %v3959
    %v3961 = vmul.f32 %v3959, %v3960
    %v3962 = vsub.f32 1.0, %v3961
    %v3963 = vmul.f32 %v3960, %v3962
    %v3964 = vadd.f32 %v3960, %v3963
    %vm3965 = vweird.f32 %v3959
    %vm3966 = vweird.f32 %v3960
    %vm3967 = vmor %vm3965, %vm3966
    %v3968 = vsel %vm3967, %v3960, %v3964
    %v3969 = vand.u32 2147483647, %v3959
    %vm3970 = vcmp.eq.f32.partialorder %v3969, 8.507059e+37
    %v3971 = vand.u32 %v3959, 2147483648
    %v3972 = vor.u32 1.1754944e-38, %v3971
    %v3973 = vsel %vm3970, %v3972, %v3968
    %v3974 = vmul.f32 1.0, %v3973
    %v3975 = vtanh.pop %v3935
    %v3976 = vxor.u32 %v3936, 2147483648
    %v3977 = vmul.f32 %v3976, 1.442695
    %v3978 = vpow.pop %v3977
    %v3979 = vadd.f32 %v3978, 1.0
    %v3980 = vrcp.pop %v3979
    %v3981 = vmul.f32 %v3979, %v3980
    %v3982 = vsub.f32 1.0, %v3981
    %v3983 = vmul.f32 %v3980, %v3982
    %v3984 = vadd.f32 %v3980, %v3983
    %vm3985 = vweird.f32 %v3979
    %vm3986 = vweird.f32 %v3980
    %vm3987 = vmor %vm3985, %vm3986
    %v3988 = vsel %vm3987, %v3980, %v3984
    %v3989 = vand.u32 2147483647, %v3979
    %vm3990 = vcmp.eq.f32.partialorder %v3989, 8.507059e+37
    %v3991 = vand.u32 %v3979, 2147483648
    %v3992 = vor.u32 1.1754944e-38, %v3991
    %v3993 = vsel %vm3990, %v3992, %v3988
    %v3994 = vmul.f32 1.0, %v3993
    %v3995 = vmul.f32 %v3974, %v3696
    %v3996 = vmul.f32 %v3955, %v3975
    %v3997 = vadd.f32 %v3995, %v3996
    %v3998 = vtanh.pop %v3997
    %v3999 = vmul.f32 %v3994, %v3998
    %v4000 = vmax.f32 %v3999, 0.0
    %v4001 = vsel %vm3876, %v4000, %v3695
    %v4002 = vpack.c.bf16 %v4001, %v4001
    %v4003 = vpack.c.bf16 %v3872, %v3872
    %4004 = vmatpush.bf16.msra.mxu0 %v1038
    %4005 = vmatpush.bf16.msra.mxu0 %v1034
    %4006 = vmatpush.bf16.msra.mxu0 %v1030
    %4007 = vmatpush.bf16.msra.mxu0 %v1026
    %4008 = vmatpush.bf16.msra.mxu0 %v1022
    %4009 = vmatpush.bf16.msra.mxu0 %v1018
    %4010 = vmatpush.bf16.msra.mxu0 %v1014
    %4011 = vmatpush.bf16.msra.mxu0 %v1010
    %4012 = vmatmul.bf16.gmra.mxu0 %v4003
    %v4013 = vpop.f32.mrf.mxu0
    %v4014 = vadd.f32 0.0, %v4013
    %v4015 = vpop.f32.mrf.mxu0
    %4016 = vdwg.mxu0
    %4017 = vmatpush.bf16.msra.mxu0 %v1039
    %4018 = vmatpush.bf16.msra.mxu0 %v1035
    %4019 = vmatpush.bf16.msra.mxu0 %v1031
    %4020 = vmatpush.bf16.msra.mxu0 %v1027
    %4021 = vmatpush.bf16.msra.mxu0 %v1023
    %4022 = vmatpush.bf16.msra.mxu0 %v1019
    %4023 = vmatpush.bf16.msra.mxu0 %v1015
    %4024 = vmatpush.bf16.msra.mxu0 %v1011
    %4025 = vmatmul.bf16.gmra.mxu0 %v4003
    %v4026 = vpop.f32.mrf.mxu0
    %v4027 = vadd.f32 0.0, %v4026
    %v4028 = vpop.f32.mrf.mxu0
    %4029 = vdwg.mxu0
    %4030 = vmatpush.bf16.msra.mxu0 %v1040
    %4031 = vmatpush.bf16.msra.mxu0 %v1036
    %4032 = vmatpush.bf16.msra.mxu0 %v1032
    %4033 = vmatpush.bf16.msra.mxu0 %v1028
    %4034 = vmatpush.bf16.msra.mxu0 %v1024
    %4035 = vmatpush.bf16.msra.mxu0 %v1020
    %4036 = vmatpush.bf16.msra.mxu0 %v1016
    %4037 = vmatpush.bf16.msra.mxu0 %v1012
    %4038 = vmatmul.bf16.gmra.mxu0 %v4003
    %v4039 = vpop.f32.mrf.mxu0
    %v4040 = vadd.f32 0.0, %v4039
    %v4041 = vpop.f32.mrf.mxu0
    %4042 = vdwg.mxu0
    %4043 = vmatpush.bf16.msra.mxu0 %v1041
    %4044 = vmatpush.bf16.msra.mxu0 %v1037
    %4045 = vmatpush.bf16.msra.mxu0 %v1033
    %4046 = vmatpush.bf16.msra.mxu0 %v1029
    %4047 = vmatpush.bf16.msra.mxu0 %v1025
    %4048 = vmatpush.bf16.msra.mxu0 %v1021
    %4049 = vmatpush.bf16.msra.mxu0 %v1017
    %4050 = vmatpush.bf16.msra.mxu0 %v1013
    %4051 = vmatmul.bf16.gmra.mxu0 %v4003
    %v4052 = vpop.f32.mrf.mxu0
    %v4053 = vadd.f32 0.0, %v4052
    %v4054 = vpop.f32.mrf.mxu0
    %4055 = vdwg.mxu0
    %4056 = vmatpush.bf16.msra.mxu0 %v1250
    %4057 = vmatpush.bf16.msra.mxu0 %v1246
    %4058 = vmatpush.bf16.msra.mxu0 %v1242
    %4059 = vmatpush.bf16.msra.mxu0 %v1238
    %4060 = vmatpush.bf16.msra.mxu0 %v1234
    %4061 = vmatpush.bf16.msra.mxu0 %v1230
    %4062 = vmatpush.bf16.msra.mxu0 %v1226
    %4063 = vmatpush.bf16.msra.mxu0 %v1222
    %4064 = vmatmul.bf16.gmra.mxu0 %v4002
    %v4065 = vpop.f32.mrf.mxu0
    %v4066 = vadd.f32 %v4014, %v4065
    %v4067 = vpop.f32.mrf.mxu0
    %4068 = vdwg.mxu0
    %4069 = vmatpush.bf16.msra.mxu0 %v1251
    %4070 = vmatpush.bf16.msra.mxu0 %v1247
    %4071 = vmatpush.bf16.msra.mxu0 %v1243
    %4072 = vmatpush.bf16.msra.mxu0 %v1239
    %4073 = vmatpush.bf16.msra.mxu0 %v1235
    %4074 = vmatpush.bf16.msra.mxu0 %v1231
    %4075 = vmatpush.bf16.msra.mxu0 %v1227
    %4076 = vmatpush.bf16.msra.mxu0 %v1223
    %4077 = vmatmul.bf16.gmra.mxu0 %v4002
    %v4078 = vpop.f32.mrf.mxu0
    %v4079 = vadd.f32 %v4027, %v4078
    %v4080 = vpop.f32.mrf.mxu0
    %4081 = vdwg.mxu0
    %4082 = vmatpush.bf16.msra.mxu0 %v1252
    %4083 = vmatpush.bf16.msra.mxu0 %v1248
    %4084 = vmatpush.bf16.msra.mxu0 %v1244
    %4085 = vmatpush.bf16.msra.mxu0 %v1240
    %4086 = vmatpush.bf16.msra.mxu0 %v1236
    %4087 = vmatpush.bf16.msra.mxu0 %v1232
    %4088 = vmatpush.bf16.msra.mxu0 %v1228
    %4089 = vmatpush.bf16.msra.mxu0 %v1224
    %4090 = vmatmul.bf16.gmra.mxu0 %v4002
    %v4091 = vpop.f32.mrf.mxu0
    %v4092 = vadd.f32 %v4040, %v4091
    %v4093 = vpop.f32.mrf.mxu0
    %4094 = vdwg.mxu0
    %4095 = vmatpush.bf16.msra.mxu0 %v1253
    %4096 = vmatpush.bf16.msra.mxu0 %v1249
    %4097 = vmatpush.bf16.msra.mxu0 %v1245
    %4098 = vmatpush.bf16.msra.mxu0 %v1241
    %4099 = vmatpush.bf16.msra.mxu0 %v1237
    %4100 = vmatpush.bf16.msra.mxu0 %v1233
    %4101 = vmatpush.bf16.msra.mxu0 %v1229
    %4102 = vmatpush.bf16.msra.mxu0 %v1225
    %4103 = vmatmul.bf16.gmra.mxu0 %v4002
    %v4104 = vpop.f32.mrf.mxu0
    %v4105 = vadd.f32 %v4053, %v4104
    %v4106 = vpop.f32.mrf.mxu0
    %4107 = vdwg.mxu0
    %v4108 = vadd.f32 %v4066, %v1339
    %v4109 = vadd.f32 %v4079, %v1340
    %v4110 = vadd.f32 %v4092, %v1341
    %v4111 = vadd.f32 %v4105, %v1342
    %v4112 = vxor.u32 %v4108, 2147483648
    %v4113 = vmul.f32 %v4112, 1.442695
    %v4114 = vpow.pop %v4113
    %v4115 = vadd.f32 %v4114, 1.0
    %v4116 = vrcp.pop %v4115
    %v4117 = vmul.f32 %v4115, %v4116
    %v4118 = vsub.f32 1.0, %v4117
    %v4119 = vmul.f32 %v4116, %v4118
    %v4120 = vadd.f32 %v4116, %v4119
    %vm4121 = vweird.f32 %v4115
    %vm4122 = vweird.f32 %v4116
    %vm4123 = vmor %vm4121, %vm4122
    %v4124 = vsel %vm4123, %v4116, %v4120
    %v4125 = vand.u32 2147483647, %v4115
    %vm4126 = vcmp.eq.f32.partialorder %v4125, 8.507059e+37
    %v4127 = vand.u32 %v4115, 2147483648
    %v4128 = vor.u32 1.1754944e-38, %v4127
    %v4129 = vsel %vm4126, %v4128, %v4124
    %v4130 = vmul.f32 1.0, %v4129
    %v4131 = vxor.u32 %v4109, 2147483648
    %v4132 = vmul.f32 %v4131, 1.442695
    %v4133 = vpow.pop %v4132
    %v4134 = vadd.f32 %v4133, 1.0
    %v4135 = vrcp.pop %v4134
    %v4136 = vmul.f32 %v4134, %v4135
    %v4137 = vsub.f32 1.0, %v4136
    %v4138 = vmul.f32 %v4135, %v4137
    %v4139 = vadd.f32 %v4135, %v4138
    %vm4140 = vweird.f32 %v4134
    %vm4141 = vweird.f32 %v4135
    %vm4142 = vmor %vm4140, %vm4141
    %v4143 = vsel %vm4142, %v4135, %v4139
    %v4144 = vand.u32 2147483647, %v4134
    %vm4145 = vcmp.eq.f32.partialorder %v4144, 8.507059e+37
    %v4146 = vand.u32 %v4134, 2147483648
    %v4147 = vor.u32 1.1754944e-38, %v4146
    %v4148 = vsel %vm4145, %v4147, %v4143
    %v4149 = vmul.f32 1.0, %v4148
    %v4150 = vtanh.pop %v4110
    %v4151 = vxor.u32 %v4111, 2147483648
    %v4152 = vmul.f32 %v4151, 1.442695
    %v4153 = vpow.pop %v4152
    %v4154 = vadd.f32 %v4153, 1.0
    %v4155 = vrcp.pop %v4154
    %v4156 = vmul.f32 %v4154, %v4155
    %v4157 = vsub.f32 1.0, %v4156
    %v4158 = vmul.f32 %v4155, %v4157
    %v4159 = vadd.f32 %v4155, %v4158
    %vm4160 = vweird.f32 %v4154
    %vm4161 = vweird.f32 %v4155
    %vm4162 = vmor %vm4160, %vm4161
    %v4163 = vsel %vm4162, %v4155, %v4159
    %v4164 = vand.u32 2147483647, %v4154
    %vm4165 = vcmp.eq.f32.partialorder %v4164, 8.507059e+37
    %v4166 = vand.u32 %v4154, 2147483648
    %v4167 = vor.u32 1.1754944e-38, %v4166
    %v4168 = vsel %vm4165, %v4167, %v4163
    %v4169 = vmul.f32 1.0, %v4168
    %v4170 = vmul.f32 %v4149, %v3873
    %v4171 = vmul.f32 %v4130, %v4150
    %v4172 = vadd.f32 %v4170, %v4171
    %v4173 = vtanh.pop %v4172
    %v4174 = vmul.f32 %v4169, %v4173
    %v4175 = vmax.f32 %v4174, 0.0
    %v4176 = vsel %vm3876, %v4175, %v3872
    %v4177 = vpack.c.bf16 %v4176, %v4176
    %v4178 = vld [vmem:[#allocation12] sm:$0xf]
    %v4179 = vld [vmem:[#allocation12 + $0x4] sm:$0xf]
    %v4180 = vld [vmem:[#allocation12 + $0x8] sm:$0xf]
    %v4181 = vld [vmem:[#allocation12 + $0xc] sm:$0xf]
    %v4182 = vld [vmem:[#allocation12 + $0x10] sm:$0xf]
    %v4183 = vld [vmem:[#allocation12 + $0x14] sm:$0xf]
    %v4184 = vld [vmem:[#allocation12 + $0x18] sm:$0xf]
    %v4185 = vld [vmem:[#allocation12 + $0x1c] sm:$0xf]
    %v4186 = vld [vmem:[#allocation12 + $0x20] sm:$0xf]
    %v4187 = vld [vmem:[#allocation12 + $0x24] sm:$0xf]
    %v4188 = vld [vmem:[#allocation12 + $0x28] sm:$0xf]
    %v4189 = vld [vmem:[#allocation12 + $0x2c] sm:$0xf]
    %v4190 = vld [vmem:[#allocation12 + $0x30] sm:$0xf]
    %v4191 = vld [vmem:[#allocation12 + $0x34] sm:$0xf]
    %v4192 = vld [vmem:[#allocation12 + $0x38] sm:$0xf]
    %v4193 = vld [vmem:[#allocation12 + $0x3c] sm:$0xf]
    %v4194 = vld [vmem:[#allocation14] sm:$0x1]
    %v4195 = vperm.slane %v4194, 0
    %v4212 = vunpack.c.l.b16 %v4178
    %v4213 = vunpack.c.l.b16 %v4179
    %v4214 = vunpack.c.l.b16 %v4180
    %v4215 = vunpack.c.l.b16 %v4181
    %v4216 = vunpack.c.l.b16 %v4182
    %v4217 = vunpack.c.l.b16 %v4183
    %v4218 = vunpack.c.l.b16 %v4184
    %v4219 = vunpack.c.l.b16 %v4185
    %v4220 = vunpack.c.l.b16 %v4186
    %v4221 = vunpack.c.l.b16 %v4187
    %v4222 = vunpack.c.l.b16 %v4188
    %v4223 = vunpack.c.l.b16 %v4189
    %v4224 = vunpack.c.l.b16 %v4190
    %v4225 = vunpack.c.l.b16 %v4191
    %v4226 = vunpack.c.l.b16 %v4192
    %v4227 = vunpack.c.l.b16 %v4193
    %v4228 = vpack.c.b16 %v4213, %v4212
    %v4229 = vpack.c.b16 %v4215, %v4214
    %v4230 = vpack.c.b16 %v4217, %v4216
    %v4231 = vpack.c.b16 %v4219, %v4218
    %v4232 = vpack.c.b16 %v4221, %v4220
    %v4233 = vpack.c.b16 %v4223, %v4222
    %v4234 = vpack.c.b16 %v4225, %v4224
    %v4235 = vpack.c.b16 %v4227, %v4226
    %4244 = vmatpush.bf16.msra.mxu0 %v4235
    %4245 = vmatpush.bf16.msra.mxu0 %v4234
    %4246 = vmatpush.bf16.msra.mxu0 %v4233
    %4247 = vmatpush.bf16.msra.mxu0 %v4232
    %4248 = vmatpush.bf16.msra.mxu0 %v4231
    %4249 = vmatpush.bf16.msra.mxu0 %v4230
    %4250 = vmatpush.bf16.msra.mxu0 %v4229
    %4251 = vmatpush.bf16.msra.mxu0 %v4228
    %4252 = vmatmul.bf16.gmra.mxu0 %v4177
    %v4253 = vpop.f32.mrf.mxu0
    %v4254 = vadd.f32 %v4195, %v4253
    %v4255 = vpop.f32.mrf.mxu0
    %4256 = vdwg.mxu0
    %v4257 = vmax.f32 %v4254, 0.0
    %v4258 = vpack.c.bf16 %v4257, %v4257
    %s4259 = scalar_lea.vmem [#allocation12], 64
    %v4260 = vld [vmem:[%s4259] sm:$0xf]
    %v4261 = vld [vmem:[%s4259 + $0x4] sm:$0xf]
    %v4262 = vld [vmem:[%s4259 + $0x8] sm:$0xf]
    %v4263 = vld [vmem:[%s4259 + $0xc] sm:$0xf]
    %v4264 = vld [vmem:[%s4259 + $0x10] sm:$0xf]
    %v4265 = vld [vmem:[%s4259 + $0x14] sm:$0xf]
    %v4266 = vld [vmem:[%s4259 + $0x18] sm:$0xf]
    %v4267 = vld [vmem:[%s4259 + $0x1c] sm:$0xf]
    %v4268 = vld [vmem:[%s4259 + $0x20] sm:$0xf]
    %v4269 = vld [vmem:[%s4259 + $0x24] sm:$0xf]
    %v4270 = vld [vmem:[%s4259 + $0x28] sm:$0xf]
    %v4271 = vld [vmem:[%s4259 + $0x2c] sm:$0xf]
    %v4272 = vld [vmem:[%s4259 + $0x30] sm:$0xf]
    %v4273 = vld [vmem:[%s4259 + $0x34] sm:$0xf]
    %v4274 = vld [vmem:[%s4259 + $0x38] sm:$0xf]
    %v4275 = vld [vmem:[%s4259 + $0x3c] sm:$0xf]
    %v4276 = vld [vmem:[#allocation14 + $0x1] sm:$0x1]
    %v4277 = vperm.slane %v4276, 0
    %v4294 = vunpack.c.l.b16 %v4260
    %v4295 = vunpack.c.l.b16 %v4261
    %v4296 = vunpack.c.l.b16 %v4262
    %v4297 = vunpack.c.l.b16 %v4263
    %v4298 = vunpack.c.l.b16 %v4264
    %v4299 = vunpack.c.l.b16 %v4265
    %v4300 = vunpack.c.l.b16 %v4266
    %v4301 = vunpack.c.l.b16 %v4267
    %v4302 = vunpack.c.l.b16 %v4268
    %v4303 = vunpack.c.l.b16 %v4269
    %v4304 = vunpack.c.l.b16 %v4270
    %v4305 = vunpack.c.l.b16 %v4271
    %v4306 = vunpack.c.l.b16 %v4272
    %v4307 = vunpack.c.l.b16 %v4273
    %v4308 = vunpack.c.l.b16 %v4274
    %v4309 = vunpack.c.l.b16 %v4275
    %v4310 = vpack.c.b16 %v4295, %v4294
    %v4311 = vpack.c.b16 %v4297, %v4296
    %v4312 = vpack.c.b16 %v4299, %v4298
    %v4313 = vpack.c.b16 %v4301, %v4300
    %v4314 = vpack.c.b16 %v4303, %v4302
    %v4315 = vpack.c.b16 %v4305, %v4304
    %v4316 = vpack.c.b16 %v4307, %v4306
    %v4317 = vpack.c.b16 %v4309, %v4308
    %4326 = vmatpush.bf16.msra.mxu0 %v4317
    %4327 = vmatpush.bf16.msra.mxu0 %v4316
    %4328 = vmatpush.bf16.msra.mxu0 %v4315
    %4329 = vmatpush.bf16.msra.mxu0 %v4314
    %4330 = vmatpush.bf16.msra.mxu0 %v4313
    %4331 = vmatpush.bf16.msra.mxu0 %v4312
    %4332 = vmatpush.bf16.msra.mxu0 %v4311
    %4333 = vmatpush.bf16.msra.mxu0 %v4310
    %4334 = vmatmul.bf16.gmra.mxu0 %v4258
    %v4335 = vpop.f32.mrf.mxu0
    %v4336 = vadd.f32 %v4277, %v4335
    %v4337 = vpop.f32.mrf.mxu0
    %4338 = vdwg.mxu0
    %v4339 = vmax.f32 %v4336, 0.0
    %v4340 = vpack.c.bf16 %v4339, %v4339
    %s4341 = scalar_lea.vmem [#allocation12], 128
    %v4342 = vld [vmem:[%s4341] sm:$0xf]
    %v4343 = vld [vmem:[%s4341 + $0x4] sm:$0xf]
    %v4344 = vld [vmem:[%s4341 + $0x8] sm:$0xf]
    %v4345 = vld [vmem:[%s4341 + $0xc] sm:$0xf]
    %v4346 = vld [vmem:[%s4341 + $0x10] sm:$0xf]
    %v4347 = vld [vmem:[%s4341 + $0x14] sm:$0xf]
    %v4348 = vld [vmem:[%s4341 + $0x18] sm:$0xf]
    %v4349 = vld [vmem:[%s4341 + $0x1c] sm:$0xf]
    %v4350 = vld [vmem:[%s4341 + $0x20] sm:$0xf]
    %v4351 = vld [vmem:[%s4341 + $0x24] sm:$0xf]
    %v4352 = vld [vmem:[%s4341 + $0x28] sm:$0xf]
    %v4353 = vld [vmem:[%s4341 + $0x2c] sm:$0xf]
    %v4354 = vld [vmem:[%s4341 + $0x30] sm:$0xf]
    %v4355 = vld [vmem:[%s4341 + $0x34] sm:$0xf]
    %v4356 = vld [vmem:[%s4341 + $0x38] sm:$0xf]
    %v4357 = vld [vmem:[%s4341 + $0x3c] sm:$0xf]
    %v4358 = vld [vmem:[#allocation14 + $0x2] sm:$0x1]
    %v4359 = vperm.slane %v4358, 0
    %v4376 = vunpack.c.l.b16 %v4342
    %v4377 = vunpack.c.l.b16 %v4343
    %v4378 = vunpack.c.l.b16 %v4344
    %v4379 = vunpack.c.l.b16 %v4345
    %v4380 = vunpack.c.l.b16 %v4346
    %v4381 = vunpack.c.l.b16 %v4347
    %v4382 = vunpack.c.l.b16 %v4348
    %v4383 = vunpack.c.l.b16 %v4349
    %v4384 = vunpack.c.l.b16 %v4350
    %v4385 = vunpack.c.l.b16 %v4351
    %v4386 = vunpack.c.l.b16 %v4352
    %v4387 = vunpack.c.l.b16 %v4353
    %v4388 = vunpack.c.l.b16 %v4354
    %v4389 = vunpack.c.l.b16 %v4355
    %v4390 = vunpack.c.l.b16 %v4356
    %v4391 = vunpack.c.l.b16 %v4357
    %v4392 = vpack.c.b16 %v4377, %v4376
    %v4393 = vpack.c.b16 %v4379, %v4378
    %v4394 = vpack.c.b16 %v4381, %v4380
    %v4395 = vpack.c.b16 %v4383, %v4382
    %v4396 = vpack.c.b16 %v4385, %v4384
    %v4397 = vpack.c.b16 %v4387, %v4386
    %v4398 = vpack.c.b16 %v4389, %v4388
    %v4399 = vpack.c.b16 %v4391, %v4390
    %4408 = vmatpush.bf16.msra.mxu0 %v4399
    %4409 = vmatpush.bf16.msra.mxu0 %v4398
    %4410 = vmatpush.bf16.msra.mxu0 %v4397
    %4411 = vmatpush.bf16.msra.mxu0 %v4396
    %4412 = vmatpush.bf16.msra.mxu0 %v4395
    %4413 = vmatpush.bf16.msra.mxu0 %v4394
    %4414 = vmatpush.bf16.msra.mxu0 %v4393
    %4415 = vmatpush.bf16.msra.mxu0 %v4392
    %4416 = vmatmul.bf16.gmra.mxu0 %v4340
    %v4417 = vpop.f32.mrf.mxu0
    %v4418 = vadd.f32 %v4359, %v4417
    %v4419 = vpop.f32.mrf.mxu0
    %4420 = vdwg.mxu0
    %v4421 = vxor.u32 %v4418, 2147483648
    %v4422 = vmul.f32 %v4421, 1.442695
    %v4423 = vpow.pop %v4422
    %v4424 = vadd.f32 %v4423, 1.0
    %v4425 = vrcp.pop %v4424
    %v4426 = vmul.f32 %v4424, %v4425
    %v4427 = vsub.f32 1.0, %v4426
    %v4428 = vmul.f32 %v4425, %v4427
    %v4429 = vadd.f32 %v4425, %v4428
    %vm4430 = vweird.f32 %v4424
    %vm4431 = vweird.f32 %v4425
    %vm4432 = vmor %vm4430, %vm4431
    %v4433 = vsel %vm4432, %v4425, %v4429
    %v4434 = vand.u32 2147483647, %v4424
    %vm4435 = vcmp.eq.f32.partialorder %v4434, 8.507059e+37
    %v4436 = vand.u32 %v4424, 2147483648
    %v4437 = vor.u32 1.1754944e-38, %v4436
    %v4438 = vsel %vm4435, %v4437, %v4433
    %v4439 = vmul.f32 1.0, %v4438
    %4440 = vst [vmem:[#allocation15] sm:$0xff] %v4439
    // Predicated region
    $region58: #{tpu_custom_call.1} parent=1 // pred_check
      _
    $region59: #{tpu_custom_call.1} parent=1 // pred_check_branch
      %4442 = sbr.rel (0) target = $region61
    $region60: #{tpu_custom_call.1} parent=1 // pred_region
      %4444 = vsyncadd [#allocation5], 0
      %s4446 = sshll.u32 [#allocation15], 4
      %s4447 = int_to_ptr.vmem [resolvable:$true] %s4446
      %s4448 = sshll.u32 %s7, 4
      %s4449 = int_to_ptr.hbm [resolvable:$true] %s4448
      %4451 = dma.vmem_to_hbm [thread:$0]  %s4447, 128, %s4449, [#allocation5]
    $region61: #{tpu_custom_call.1} parent=1 // pred_fallthru
      _
    // Predicated region
    $region62: #{tpu_custom_call.1} parent=1 // pred_check
      _
    $region63: #{tpu_custom_call.1} parent=1 // pred_check_branch
      %4453 = sbr.rel (0) target = $region65
    $region64: #{tpu_custom_call.1} parent=1 // pred_region
      %4455 = dma.done [#allocation5], 128
    $region65: #{tpu_custom_call.1} parent=1 // pred_fallthru
      _
    %4456 = vsyncpa [#allocation4], 1
    %4457 = vsyncpa [#allocation7], 1
    %4458 = vsyncpa [#allocation10], 1
    %4459 = vsyncpa [#allocation13], 1
    %4460 = vsyncpa [#allocation5], 1

</llo_original>
